<compile_context>
chip_gen: v6e
topology: v6e:2x2x1
jax: 0.10.0
libtpu: 0.0.40
codegen_flags: <defaults>
</compile_context>

<pallas_src>
import math

import jax
import jax.numpy as jnp
import numpy as np
from jax.experimental import pallas as pl
from jax.experimental.pallas import tpu as pltpu

HIDDEN_DIM = 36
INPUT_DIM = 1
NUM_LAYERS = 2
OUTPUT_DIM = 1

H = HIDDEN_DIM
GT = 128              # lanes per fused gate tile (one gate type, both directions)
NGATES = 4
G = NGATES * GT       # 512 gate lanes per fused step, order [i, f, o, g]
HB = 128              # fused hidden-state lanes: fwd h at 0:H, rev h at 64:64+H
OP = 128              # padded output lanes -> unmasked lane-dense final store
FWD = 0               # lane offset of the forward direction inside a tile
REV = 64              # lane offset of the reverse direction inside a tile

assert H <= REV and REV + H <= GT


# --------------------------------- kernel -------------------------------------

def bilstm_kernel(x_ref, w0f_ref, w0r_ref, b0_ref, whh0_ref,
                  w1a_ref, w1b_ref, b1_ref, whh1_ref, fcw_ref, fcb_ref,
                  out_ref, l0_ref):
    # x_ref: (T, TB, I); w0f/w0r/b0: (I or 1, G); whh0/w1a/w1b/whh1: (HB, G)
    # b1: (1, G); fcw: (HB, OP); fcb: (1, OP); out: (TB, OP)
    # l0_ref: VMEM scratch (T*TB, HB) holding fused layer-0 outputs per step.
    T, TB, I = x_ref.shape

    def lstm_step(gates, c):
        # gate layout [i | f | o | g]; each tile carries fwd (0:H) and rev (64:64+H).
        sig = jax.nn.sigmoid(gates[:, :3 * GT])      # i, f, o in one contiguous EUP slab
        i_g = sig[:, 0 * GT:1 * GT]
        f_g = sig[:, 1 * GT:2 * GT]
        o_g = sig[:, 2 * GT:3 * GT]
        g_g = jnp.tanh(gates[:, 3 * GT:4 * GT])
        c_new = f_g * c + i_g * g_g
        h_new = o_g * jnp.tanh(c_new)
        return h_new, c_new

    zeros = jnp.zeros((TB, HB), jnp.float32)
    x = x_ref[...]
    w0f = w0f_ref[...]
    w0r = w0r_ref[...]
    b0 = b0_ref[...]
    whh0 = whh0_ref[...]

    # ---- layer 0: fwd + rev fused into ONE serial chain of T steps.
    # Fused step k advances fwd time k (lanes 0:H) and rev time T-1-k (lanes 64:64+H)
    # through the same gate tiles / same h@W_hh matmul / same sigmoid/tanh slab.
    h, c = zeros, zeros
    for k in range(T):
        if I == 1:
            # per-step input projection: cheap VPU broadcast, no (T*TB, G) slab
            gi = x[k] * w0f + x[T - 1 - k] * w0r + b0
        else:
            gi = (jnp.dot(x[k], w0f, preferred_element_type=jnp.float32)
                  + jnp.dot(x[T - 1 - k], w0r, preferred_element_type=jnp.float32)
                  + b0)
        gates = gi + jnp.dot(h, whh0, preferred_element_type=jnp.float32)
        h, c = lstm_step(gates, c)
        l0_ref[k * TB:(k + 1) * TB, :] = h           # store-only, off the serial chain

    # ---- layer-1 input projection, hoisted: two (T*TB,HB)x(HB,G) matmuls.
    # Row block k of l0 holds [h_fwd_l0(k) | h_rev_l0(T-1-k)]; w1a reads only the fwd
    # lanes (rows 0:H), w1b only the rev lanes (rows 64:64+H), so the time-t input to
    # layer 1 is gi1_a[t] + gi1_b[T-1-t].
    l0 = l0_ref[...]
    gi1_a = (jnp.dot(l0, w1a_ref[...], preferred_element_type=jnp.float32)
             + b1_ref[...])
    gi1_b = jnp.dot(l0, w1b_ref[...], preferred_element_type=jnp.float32)

    whh1 = whh1_ref[...]
    lane = jax.lax.broadcasted_iota(jnp.int32, (1, HB), 1)
    fwd_keep = (lane < REV).astype(jnp.float32)      # 1 on fwd lanes, 0 on rev lanes

    # ---- layer 1: forward chain; the single reverse cell needed by out[:, -1, :]
    # rides along in the rev lanes of the LAST step (its recurrent weights never
    # matter since it starts from h0 = c0 = 0; just reset the rev lanes of c first).
    h1, c1 = zeros, zeros
    for t in range(T):
        if t == T - 1:
            c1 = c1 * fwd_keep
        gates = (gi1_a[t * TB:(t + 1) * TB, :]
                 + gi1_b[(T - 1 - t) * TB:(T - t) * TB, :]
                 + jnp.dot(h1, whh1, preferred_element_type=jnp.float32))
        h1, c1 = lstm_step(gates, c1)

    # ---- fc head: one matmul; rows 0:H = fwd fc half, rows 64:64+H = rev fc half.
    out_ref[...] = (jnp.dot(h1, fcw_ref[...], preferred_element_type=jnp.float32)
                    + fcb_ref[...])


# ----------------------------- parameter handling -----------------------------

def init_params(key, input_dim=INPUT_DIM, hidden_dim=HIDDEN_DIM,
                output_dim=OUTPUT_DIM, num_layers=NUM_LAYERS):
    """PyTorch-layout params with PyTorch-default uniform init."""
    k_lstm = 1.0 / math.sqrt(hidden_dim)
    k_fc = 1.0 / math.sqrt(2 * hidden_dim)
    specs = []
    for layer in range(num_layers):
        in_size = input_dim if layer == 0 else 2 * hidden_dim
        for d in ("", "_reverse"):
            specs.append((f"weight_ih_l{layer}{d}", (4 * hidden_dim, in_size), k_lstm))
            specs.append((f"weight_hh_l{layer}{d}", (4 * hidden_dim, hidden_dim), k_lstm))
            specs.append((f"bias_ih_l{layer}{d}", (4 * hidden_dim,), k_lstm))
            specs.append((f"bias_hh_l{layer}{d}", (4 * hidden_dim,), k_lstm))
    specs.append(("fc_weight", (output_dim, 2 * hidden_dim), k_fc))
    specs.append(("fc_bias", (output_dim,), k_fc))

    keys = jax.random.split(key, len(specs))
    return {name: jax.random.uniform(k, shape, jnp.float32, -bound, bound)
            for k, (name, shape, bound) in zip(keys, specs)}


def _scatter_gates(w_t, off):
    """(R, 4H) in PyTorch gate order [i,f,g,o] -> (R, G) in kernel order [i,f,o,g],
    with each gate's H columns placed at lanes [gate_tile*GT + off : + H]."""
    i, f, g, o = jnp.split(w_t, 4, axis=-1)
    out = jnp.zeros((w_t.shape[0], G), jnp.float32)
    for idx, blk in enumerate((i, f, o, g)):
        out = out.at[:, idx * GT + off: idx * GT + off + H].set(blk)
    return out


def _embed_rows(w, row_off):
    """Embed (R, G) into (HB, G) at row offset row_off (other rows zero)."""
    out = jnp.zeros((HB, w.shape[1]), jnp.float32)
    return out.at[row_off:row_off + w.shape[0], :].set(w)


def prepare_kernel_params(params):
    """One-time repack: transpose, reorder gates to [i,f,o,g], fuse fwd/rev into the
    shared 128-lane tiles (fwd @ 0:H, rev @ 64:64+H), fold b_ih + b_hh."""
    p = params

    def bias(layer, d):
        return (p[f"bias_ih_l{layer}{d}"] + p[f"bias_hh_l{layer}{d}"])[None, :]

    kp = {}
    # layer 0 (fused fwd+rev)
    kp["w0f"] = _scatter_gates(p["weight_ih_l0"].T, FWD)                   # (I, G)
    kp["w0r"] = _scatter_gates(p["weight_ih_l0_reverse"].T, REV)           # (I, G)
    kp["b0"] = (_scatter_gates(bias(0, ""), FWD)
                + _scatter_gates(bias(0, "_reverse"), REV))                # (1, G)
    kp["whh0"] = (_embed_rows(_scatter_gates(p["weight_hh_l0"].T, FWD), FWD)
                  + _embed_rows(_scatter_gates(p["weight_hh_l0_reverse"].T, REV), REV))

    # layer 1: w1a consumes h_fwd_l0(t) (rows 0:H), w1b consumes h_rev_l0(t)
    # (rows 64:64+H); each feeds BOTH directions' gate columns.
    w1f_t = p["weight_ih_l1"].T                                            # (2H, 4H)
    w1r_t = p["weight_ih_l1_reverse"].T                                    # (2H, 4H)
    kp["w1a"] = _embed_rows(_scatter_gates(w1f_t[:H], FWD)
                            + _scatter_gates(w1r_t[:H], REV), FWD)
    kp["w1b"] = _embed_rows(_scatter_gates(w1f_t[H:], FWD)
                            + _scatter_gates(w1r_t[H:], REV), REV)
    kp["b1"] = (_scatter_gates(bias(1, ""), FWD)
                + _scatter_gates(bias(1, "_reverse"), REV))                # (1, G)
    # weight_hh_l1_reverse is intentionally dropped: the only reverse layer-1 cell
    # that reaches out[:, -1, :] starts from h0 = c0 = 0.
    kp["whh1"] = _embed_rows(_scatter_gates(p["weight_hh_l1"].T, FWD), FWD)

    # fc head
    fcw_t = p["fc_weight"].T                                               # (2H, O)
    o_dim = fcw_t.shape[1]
    fcw = jnp.zeros((HB, OP), jnp.float32)
    fcw = fcw.at[FWD:FWD + H, :o_dim].set(fcw_t[:H])
    fcw = fcw.at[REV:REV + H, :o_dim].set(fcw_t[H:])
    kp["fcw"] = fcw
    kp["fcb"] = jnp.pad(p["fc_bias"][None, :], ((0, 0), (0, OP - o_dim)))
    return kp


# --------------------------------- wrapper ------------------------------------

def _round_up(n, m):
    return ((n + m - 1) // m) * m


def _choose_batch_tiling(batch):
    """Sublane-aligned batch tile; fill MXU rows when batch is large and keep >= 2
    grid tiles when possible so v7x's second TensorCore gets work."""
    b8 = _round_up(batch, 8)
    if b8 <= 8:
        tile = 8
    elif b8 < 256:
        tile = _round_up(b8 // 2, 8)
    else:
        tile = 128
    return tile, _round_up(b8, tile)


def bilstm_forward(x, kp):
    """x: (B, T, I) float32 (batch_first, like PyTorch). kp: prepare_kernel_params()
    output.  Returns (B, OUTPUT_DIM)."""
    B, T, I = x.shape
    tile_b, b_pad = _choose_batch_tiling(B)

    x_tbi = jnp.transpose(x.astype(jnp.float32), (1, 0, 2))       # (T, B, I)
    x_tbi = jnp.pad(x_tbi, ((0, 0), (0, b_pad - B), (0, 0)))      # (T, Bpad, I)

    weights = (kp["w0f"], kp["w0r"], kp["b0"], kp["whh0"],
               kp["w1a"], kp["w1b"], kp["b1"], kp["whh1"],
               kp["fcw"], kp["fcb"])

    def full_spec(a):
        return pl.BlockSpec(a.shape, lambda b: (0,) * a.ndim)

    out = pl.pallas_call(
        bilstm_kernel,
        out_shape=jax.ShapeDtypeStruct((b_pad, OP), jnp.float32),
        grid=(b_pad // tile_b,),
        in_specs=[pl.BlockSpec((T, tile_b, I), lambda b: (0, b, 0))]
                 + [full_spec(w) for w in weights],
        out_specs=pl.BlockSpec((tile_b, OP), lambda b: (b, 0)),
        scratch_shapes=[pltpu.VMEM((T * tile_b, HB), jnp.float32)],
        compiler_params=pltpu.CompilerParams(
            dimension_semantics=("parallel",)),
    )(x_tbi, *weights)
    return out[:B, :OUTPUT_DIM]


# ------------------------------ pure-JAX reference -----------------------------

def bilstm_reference(x, params):
    """Exact PyTorch biLSTM forward semantics (gate order i,f,g,o), for checking."""
    B, T, _ = x.shape
    hp = jax.lax.Precision.HIGHEST

    def cell(x_t, h, c, wih, whh, bih, bhh):
        gates = (jnp.dot(x_t, wih.T, precision=hp) + bih
                 + jnp.dot(h, whh.T, precision=hp) + bhh)
        i = jax.nn.sigmoid(gates[:, 0:H])
        f = jax.nn.sigmoid(gates[:, H:2 * H])
        g = jnp.tanh(gates[:, 2 * H:3 * H])
        o = jax.nn.sigmoid(gates[:, 3 * H:4 * H])
        c = f * c + i * g
        return o * jnp.tanh(c), c

    def run_layer(inp, layer):
        def run_dir(suffix, order):
            wih = params[f"weight_ih_l{layer}{suffix}"]
            whh = params[f"weight_hh_l{layer}{suffix}"]
            bih = params[f"bias_ih_l{layer}{suffix}"]
            bhh = params[f"bias_hh_l{layer}{suffix}"]
            h = jnp.zeros((B, H), jnp.float32)
            c = jnp.zeros((B, H), jnp.float32)
            outs = [None] * T
            for t in order:
                h, c = cell(inp[:, t, :], h, c, wih, whh, bih, bhh)
                outs[t] = h
            return outs

        outs_f = run_dir("", range(T))
        outs_r = run_dir("_reverse", range(T - 1, -1, -1))
        return jnp.stack([jnp.concatenate([a, b], axis=-1)
                          for a, b in zip(outs_f, outs_r)], axis=1)   # (B, T, 2H)

    y = run_layer(x.astype(jnp.float32), 0)
    y = run_layer(y, 1)
    last = y[:, -1, :]
    return jnp.dot(last, params["fc_weight"].T, precision=hp) + params["fc_bias"]


if __name__ == "__main__":
    key = jax.random.PRNGKey(0)
    k_param, k_x = jax.random.split(key)

    batch, seq = 2, 8
    x = jax.random.normal(k_x, (batch, seq, INPUT_DIM), jnp.float32)
    params = init_params(k_param)

    kp = prepare_kernel_params(params)        # one-time repack, off the per-call path
    fwd = jax.jit(bilstm_forward)

    out = jax.block_until_ready(fwd(x, kp))

    ref = bilstm_reference(x, params)
    np.testing.assert_allclose(np.asarray(out), np.asarray(ref), rtol=1e-3, atol=1e-3)
    assert out.shape == (batch, OUTPUT_DIM) and out.dtype == jnp.float32

    print("KERNEL_OK")
</pallas_src>

<mosaic_0001>
module attributes {stable_mosaic.version = 11 : i64} {
  func.func @bilstm_kernel(%arg0: i32, %arg1: memref<8x8x1xf32, #tpu.memory_space<vmem>>, %arg2: memref<1x512xf32, #tpu.memory_space<vmem>>, %arg3: memref<1x512xf32, #tpu.memory_space<vmem>>, %arg4: memref<1x512xf32, #tpu.memory_space<vmem>>, %arg5: memref<128x512xf32, #tpu.memory_space<vmem>>, %arg6: memref<128x512xf32, #tpu.memory_space<vmem>>, %arg7: memref<128x512xf32, #tpu.memory_space<vmem>>, %arg8: memref<1x512xf32, #tpu.memory_space<vmem>>, %arg9: memref<128x512xf32, #tpu.memory_space<vmem>>, %arg10: memref<128x128xf32, #tpu.memory_space<vmem>>, %arg11: memref<1x128xf32, #tpu.memory_space<vmem>>, %arg12: memref<8x128xf32, #tpu.memory_space<vmem>>, %arg13: memref<64x128xf32, #tpu.memory_space<vmem>>) attributes {dimension_semantics = [#tpu.dimension_semantics<parallel>], iteration_bounds = array<i64: 1>, scalar_prefetch = 0 : i64, scratch_operands = 1 : i64, tpu.core_type = #tpu.core_type<tc>, window_params = [{transform_indices = @transform_0, window_bounds = array<i64: 8, 8, 1>}, {pipeline_mode = #tpu.pipeline_mode<synchronous>, transform_indices = @transform_1, window_bounds = array<i64: 1, 512>}, {pipeline_mode = #tpu.pipeline_mode<synchronous>, transform_indices = @transform_2, window_bounds = array<i64: 1, 512>}, {pipeline_mode = #tpu.pipeline_mode<synchronous>, transform_indices = @transform_3, window_bounds = array<i64: 1, 512>}, {pipeline_mode = #tpu.pipeline_mode<synchronous>, transform_indices = @transform_4, window_bounds = array<i64: 128, 512>}, {pipeline_mode = #tpu.pipeline_mode<synchronous>, transform_indices = @transform_5, window_bounds = array<i64: 128, 512>}, {pipeline_mode = #tpu.pipeline_mode<synchronous>, transform_indices = @transform_6, window_bounds = array<i64: 128, 512>}, {pipeline_mode = #tpu.pipeline_mode<synchronous>, transform_indices = @transform_7, window_bounds = array<i64: 1, 512>}, {pipeline_mode = #tpu.pipeline_mode<synchronous>, transform_indices = @transform_8, window_bounds = array<i64: 128, 512>}, {pipeline_mode = #tpu.pipeline_mode<synchronous>, transform_indices = @transform_9, window_bounds = array<i64: 128, 128>}, {pipeline_mode = #tpu.pipeline_mode<synchronous>, transform_indices = @transform_10, window_bounds = array<i64: 1, 128>}, {transform_indices = @transform_11, window_bounds = array<i64: 8, 128>}]} {
    %cst = arith.constant 0.000000e+00 : f32
    %0 = vector.broadcast %cst : f32 to vector<8x128xf32>
    %c0 = arith.constant 0 : index
    %c0_0 = arith.constant 0 : index
    %c0_1 = arith.constant 0 : index
    %1 = vector.load %arg1[%c0, %c0_0, %c0_1] : memref<8x8x1xf32, #tpu.memory_space<vmem>>, vector<8x8x1xf32>
    %c0_2 = arith.constant 0 : index
    %c0_3 = arith.constant 0 : index
    %2 = vector.load %arg2[%c0_2, %c0_3] : memref<1x512xf32, #tpu.memory_space<vmem>>, vector<1x512xf32>
    %c0_4 = arith.constant 0 : index
    %c0_5 = arith.constant 0 : index
    %3 = vector.load %arg3[%c0_4, %c0_5] : memref<1x512xf32, #tpu.memory_space<vmem>>, vector<1x512xf32>
    %c0_6 = arith.constant 0 : index
    %c0_7 = arith.constant 0 : index
    %4 = vector.load %arg4[%c0_6, %c0_7] : memref<1x512xf32, #tpu.memory_space<vmem>>, vector<1x512xf32>
    %c0_8 = arith.constant 0 : index
    %c0_9 = arith.constant 0 : index
    %5 = vector.load %arg5[%c0_8, %c0_9] : memref<128x512xf32, #tpu.memory_space<vmem>>, vector<128x512xf32>
    %6 = vector.extract_strided_slice %1 {offsets = [0, 0, 0], sizes = [1, 8, 1], strides = [1, 1, 1]} : vector<8x8x1xf32> to vector<1x8x1xf32>
    %7 = vector.shape_cast %6 : vector<1x8x1xf32> to vector<8x1xf32>
    %8 = vector.broadcast %7 : vector<8x1xf32> to vector<8x512xf32>
    %9 = vector.broadcast %2 : vector<1x512xf32> to vector<8x512xf32>
    %10 = arith.mulf %8, %9 : vector<8x512xf32>
    %11 = vector.extract_strided_slice %1 {offsets = [7, 0, 0], sizes = [1, 8, 1], strides = [1, 1, 1]} : vector<8x8x1xf32> to vector<1x8x1xf32>
    %12 = vector.shape_cast %11 : vector<1x8x1xf32> to vector<8x1xf32>
    %13 = vector.broadcast %12 : vector<8x1xf32> to vector<8x512xf32>
    %14 = vector.broadcast %3 : vector<1x512xf32> to vector<8x512xf32>
    %15 = arith.mulf %13, %14 : vector<8x512xf32>
    %16 = arith.addf %10, %15 : vector<8x512xf32>
    %17 = vector.broadcast %4 : vector<1x512xf32> to vector<8x512xf32>
    %18 = arith.addf %16, %17 : vector<8x512xf32>
    %cst_10 = arith.constant dense<0.000000e+00> : vector<8x512xf32>
    %19 = tpu.matmul %0, %5, %cst_10 {dimension_numbers = #tpu.dot_dimension_numbers<[1], [0], [0], [1], [0, 0, 1, 1], [], []>} : vector<8x128xf32>, vector<128x512xf32>, vector<8x512xf32> -> vector<8x512xf32>
    %20 = arith.addf %18, %19 : vector<8x512xf32>
    %21 = vector.extract_strided_slice %20 {offsets = [0, 0], sizes = [8, 384], strides = [1, 1]} : vector<8x512xf32> to vector<8x384xf32>
    %22 = arith.negf %21 : vector<8x384xf32>
    %23 = math.exp %22 : vector<8x384xf32>
    %cst_11 = arith.constant 1.000000e+00 : f32
    %24 = vector.broadcast %cst_11 : f32 to vector<8x384xf32>
    %25 = arith.addf %24, %23 : vector<8x384xf32>
    %26 = arith.divf %24, %25 : vector<8x384xf32>
    %27 = vector.extract_strided_slice %26 {offsets = [0, 0], sizes = [8, 128], strides = [1, 1]} : vector<8x384xf32> to vector<8x128xf32>
    %28 = vector.extract_strided_slice %26 {offsets = [0, 128], sizes = [8, 128], strides = [1, 1]} : vector<8x384xf32> to vector<8x128xf32>
    %29 = vector.extract_strided_slice %26 {offsets = [0, 256], sizes = [8, 128], strides = [1, 1]} : vector<8x384xf32> to vector<8x128xf32>
    %30 = vector.extract_strided_slice %20 {offsets = [0, 384], sizes = [8, 128], strides = [1, 1]} : vector<8x512xf32> to vector<8x128xf32>
    %31 = math.tanh %30 : vector<8x128xf32>
    %32 = arith.mulf %28, %0 : vector<8x128xf32>
    %33 = arith.mulf %27, %31 : vector<8x128xf32>
    %34 = arith.addf %32, %33 : vector<8x128xf32>
    %35 = math.tanh %34 : vector<8x128xf32>
    %36 = arith.mulf %29, %35 : vector<8x128xf32>
    %c0_12 = arith.constant 0 : index
    %c0_13 = arith.constant 0 : index
    %37 = vector.load %arg13[%c0_12, %c0_13] : memref<64x128xf32, #tpu.memory_space<vmem>>, vector<8x128xf32>
    tpu.vector_store %arg13[%c0_12, %c0_13], %36 {strides = array<i32>} : memref<64x128xf32, #tpu.memory_space<vmem>>, vector<8x128xf32>,
    %38 = vector.extract_strided_slice %1 {offsets = [1, 0, 0], sizes = [1, 8, 1], strides = [1, 1, 1]} : vector<8x8x1xf32> to vector<1x8x1xf32>
    %39 = vector.shape_cast %38 : vector<1x8x1xf32> to vector<8x1xf32>
    %40 = vector.broadcast %39 : vector<8x1xf32> to vector<8x512xf32>
    %41 = vector.broadcast %2 : vector<1x512xf32> to vector<8x512xf32>
    %42 = arith.mulf %40, %41 : vector<8x512xf32>
    %43 = vector.extract_strided_slice %1 {offsets = [6, 0, 0], sizes = [1, 8, 1], strides = [1, 1, 1]} : vector<8x8x1xf32> to vector<1x8x1xf32>
    %44 = vector.shape_cast %43 : vector<1x8x1xf32> to vector<8x1xf32>
    %45 = vector.broadcast %44 : vector<8x1xf32> to vector<8x512xf32>
    %46 = vector.broadcast %3 : vector<1x512xf32> to vector<8x512xf32>
    %47 = arith.mulf %45, %46 : vector<8x512xf32>
    %48 = arith.addf %42, %47 : vector<8x512xf32>
    %49 = vector.broadcast %4 : vector<1x512xf32> to vector<8x512xf32>
    %50 = arith.addf %48, %49 : vector<8x512xf32>
    %cst_14 = arith.constant dense<0.000000e+00> : vector<8x512xf32>
    %51 = tpu.matmul %36, %5, %cst_14 {dimension_numbers = #tpu.dot_dimension_numbers<[1], [0], [0], [1], [0, 0, 1, 1], [], []>} : vector<8x128xf32>, vector<128x512xf32>, vector<8x512xf32> -> vector<8x512xf32>
    %52 = arith.addf %50, %51 : vector<8x512xf32>
    %53 = vector.extract_strided_slice %52 {offsets = [0, 0], sizes = [8, 384], strides = [1, 1]} : vector<8x512xf32> to vector<8x384xf32>
    %54 = arith.negf %53 : vector<8x384xf32>
    %55 = math.exp %54 : vector<8x384xf32>
    %cst_15 = arith.constant 1.000000e+00 : f32
    %56 = vector.broadcast %cst_15 : f32 to vector<8x384xf32>
    %57 = arith.addf %56, %55 : vector<8x384xf32>
    %58 = arith.divf %56, %57 : vector<8x384xf32>
    %59 = vector.extract_strided_slice %58 {offsets = [0, 0], sizes = [8, 128], strides = [1, 1]} : vector<8x384xf32> to vector<8x128xf32>
    %60 = vector.extract_strided_slice %58 {offsets = [0, 128], sizes = [8, 128], strides = [1, 1]} : vector<8x384xf32> to vector<8x128xf32>
    %61 = vector.extract_strided_slice %58 {offsets = [0, 256], sizes = [8, 128], strides = [1, 1]} : vector<8x384xf32> to vector<8x128xf32>
    %62 = vector.extract_strided_slice %52 {offsets = [0, 384], sizes = [8, 128], strides = [1, 1]} : vector<8x512xf32> to vector<8x128xf32>
    %63 = math.tanh %62 : vector<8x128xf32>
    %64 = arith.mulf %60, %34 : vector<8x128xf32>
    %65 = arith.mulf %59, %63 : vector<8x128xf32>
    %66 = arith.addf %64, %65 : vector<8x128xf32>
    %67 = math.tanh %66 : vector<8x128xf32>
    %68 = arith.mulf %61, %67 : vector<8x128xf32>
    %c8 = arith.constant 8 : index
    %c0_16 = arith.constant 0 : index
    %69 = vector.load %arg13[%c8, %c0_16] : memref<64x128xf32, #tpu.memory_space<vmem>>, vector<8x128xf32>
    tpu.vector_store %arg13[%c8, %c0_16], %68 {strides = array<i32>} : memref<64x128xf32, #tpu.memory_space<vmem>>, vector<8x128xf32>,
    %70 = vector.extract_strided_slice %1 {offsets = [2, 0, 0], sizes = [1, 8, 1], strides = [1, 1, 1]} : vector<8x8x1xf32> to vector<1x8x1xf32>
    %71 = vector.shape_cast %70 : vector<1x8x1xf32> to vector<8x1xf32>
    %72 = vector.broadcast %71 : vector<8x1xf32> to vector<8x512xf32>
    %73 = vector.broadcast %2 : vector<1x512xf32> to vector<8x512xf32>
    %74 = arith.mulf %72, %73 : vector<8x512xf32>
    %75 = vector.extract_strided_slice %1 {offsets = [5, 0, 0], sizes = [1, 8, 1], strides = [1, 1, 1]} : vector<8x8x1xf32> to vector<1x8x1xf32>
    %76 = vector.shape_cast %75 : vector<1x8x1xf32> to vector<8x1xf32>
    %77 = vector.broadcast %76 : vector<8x1xf32> to vector<8x512xf32>
    %78 = vector.broadcast %3 : vector<1x512xf32> to vector<8x512xf32>
    %79 = arith.mulf %77, %78 : vector<8x512xf32>
    %80 = arith.addf %74, %79 : vector<8x512xf32>
    %81 = vector.broadcast %4 : vector<1x512xf32> to vector<8x512xf32>
    %82 = arith.addf %80, %81 : vector<8x512xf32>
    %cst_17 = arith.constant dense<0.000000e+00> : vector<8x512xf32>
    %83 = tpu.matmul %68, %5, %cst_17 {dimension_numbers = #tpu.dot_dimension_numbers<[1], [0], [0], [1], [0, 0, 1, 1], [], []>} : vector<8x128xf32>, vector<128x512xf32>, vector<8x512xf32> -> vector<8x512xf32>
    %84 = arith.addf %82, %83 : vector<8x512xf32>
    %85 = vector.extract_strided_slice %84 {offsets = [0, 0], sizes = [8, 384], strides = [1, 1]} : vector<8x512xf32> to vector<8x384xf32>
    %86 = arith.negf %85 : vector<8x384xf32>
    %87 = math.exp %86 : vector<8x384xf32>
    %cst_18 = arith.constant 1.000000e+00 : f32
    %88 = vector.broadcast %cst_18 : f32 to vector<8x384xf32>
    %89 = arith.addf %88, %87 : vector<8x384xf32>
    %90 = arith.divf %88, %89 : vector<8x384xf32>
    %91 = vector.extract_strided_slice %90 {offsets = [0, 0], sizes = [8, 128], strides = [1, 1]} : vector<8x384xf32> to vector<8x128xf32>
    %92 = vector.extract_strided_slice %90 {offsets = [0, 128], sizes = [8, 128], strides = [1, 1]} : vector<8x384xf32> to vector<8x128xf32>
    %93 = vector.extract_strided_slice %90 {offsets = [0, 256], sizes = [8, 128], strides = [1, 1]} : vector<8x384xf32> to vector<8x128xf32>
    %94 = vector.extract_strided_slice %84 {offsets = [0, 384], sizes = [8, 128], strides = [1, 1]} : vector<8x512xf32> to vector<8x128xf32>
    %95 = math.tanh %94 : vector<8x128xf32>
    %96 = arith.mulf %92, %66 : vector<8x128xf32>
    %97 = arith.mulf %91, %95 : vector<8x128xf32>
    %98 = arith.addf %96, %97 : vector<8x128xf32>
    %99 = math.tanh %98 : vector<8x128xf32>
    %100 = arith.mulf %93, %99 : vector<8x128xf32>
    %c16 = arith.constant 16 : index
    %c0_19 = arith.constant 0 : index
    %101 = vector.load %arg13[%c16, %c0_19] : memref<64x128xf32, #tpu.memory_space<vmem>>, vector<8x128xf32>
    tpu.vector_store %arg13[%c16, %c0_19], %100 {strides = array<i32>} : memref<64x128xf32, #tpu.memory_space<vmem>>, vector<8x128xf32>,
    %102 = vector.extract_strided_slice %1 {offsets = [3, 0, 0], sizes = [1, 8, 1], strides = [1, 1, 1]} : vector<8x8x1xf32> to vector<1x8x1xf32>
    %103 = vector.shape_cast %102 : vector<1x8x1xf32> to vector<8x1xf32>
    %104 = vector.broadcast %103 : vector<8x1xf32> to vector<8x512xf32>
    %105 = vector.broadcast %2 : vector<1x512xf32> to vector<8x512xf32>
    %106 = arith.mulf %104, %105 : vector<8x512xf32>
    %107 = vector.extract_strided_slice %1 {offsets = [4, 0, 0], sizes = [1, 8, 1], strides = [1, 1, 1]} : vector<8x8x1xf32> to vector<1x8x1xf32>
    %108 = vector.shape_cast %107 : vector<1x8x1xf32> to vector<8x1xf32>
    %109 = vector.broadcast %108 : vector<8x1xf32> to vector<8x512xf32>
    %110 = vector.broadcast %3 : vector<1x512xf32> to vector<8x512xf32>
    %111 = arith.mulf %109, %110 : vector<8x512xf32>
    %112 = arith.addf %106, %111 : vector<8x512xf32>
    %113 = vector.broadcast %4 : vector<1x512xf32> to vector<8x512xf32>
    %114 = arith.addf %112, %113 : vector<8x512xf32>
    %cst_20 = arith.constant dense<0.000000e+00> : vector<8x512xf32>
    %115 = tpu.matmul %100, %5, %cst_20 {dimension_numbers = #tpu.dot_dimension_numbers<[1], [0], [0], [1], [0, 0, 1, 1], [], []>} : vector<8x128xf32>, vector<128x512xf32>, vector<8x512xf32> -> vector<8x512xf32>
    %116 = arith.addf %114, %115 : vector<8x512xf32>
    %117 = vector.extract_strided_slice %116 {offsets = [0, 0], sizes = [8, 384], strides = [1, 1]} : vector<8x512xf32> to vector<8x384xf32>
    %118 = arith.negf %117 : vector<8x384xf32>
    %119 = math.exp %118 : vector<8x384xf32>
    %cst_21 = arith.constant 1.000000e+00 : f32
    %120 = vector.broadcast %cst_21 : f32 to vector<8x384xf32>
    %121 = arith.addf %120, %119 : vector<8x384xf32>
    %122 = arith.divf %120, %121 : vector<8x384xf32>
    %123 = vector.extract_strided_slice %122 {offsets = [0, 0], sizes = [8, 128], strides = [1, 1]} : vector<8x384xf32> to vector<8x128xf32>
    %124 = vector.extract_strided_slice %122 {offsets = [0, 128], sizes = [8, 128], strides = [1, 1]} : vector<8x384xf32> to vector<8x128xf32>
    %125 = vector.extract_strided_slice %122 {offsets = [0, 256], sizes = [8, 128], strides = [1, 1]} : vector<8x384xf32> to vector<8x128xf32>
    %126 = vector.extract_strided_slice %116 {offsets = [0, 384], sizes = [8, 128], strides = [1, 1]} : vector<8x512xf32> to vector<8x128xf32>
    %127 = math.tanh %126 : vector<8x128xf32>
    %128 = arith.mulf %124, %98 : vector<8x128xf32>
    %129 = arith.mulf %123, %127 : vector<8x128xf32>
    %130 = arith.addf %128, %129 : vector<8x128xf32>
    %131 = math.tanh %130 : vector<8x128xf32>
    %132 = arith.mulf %125, %131 : vector<8x128xf32>
    %c24 = arith.constant 24 : index
    %c0_22 = arith.constant 0 : index
    %133 = vector.load %arg13[%c24, %c0_22] : memref<64x128xf32, #tpu.memory_space<vmem>>, vector<8x128xf32>
    tpu.vector_store %arg13[%c24, %c0_22], %132 {strides = array<i32>} : memref<64x128xf32, #tpu.memory_space<vmem>>, vector<8x128xf32>,
    %134 = vector.extract_strided_slice %1 {offsets = [4, 0, 0], sizes = [1, 8, 1], strides = [1, 1, 1]} : vector<8x8x1xf32> to vector<1x8x1xf32>
    %135 = vector.shape_cast %134 : vector<1x8x1xf32> to vector<8x1xf32>
    %136 = vector.broadcast %135 : vector<8x1xf32> to vector<8x512xf32>
    %137 = vector.broadcast %2 : vector<1x512xf32> to vector<8x512xf32>
    %138 = arith.mulf %136, %137 : vector<8x512xf32>
    %139 = vector.extract_strided_slice %1 {offsets = [3, 0, 0], sizes = [1, 8, 1], strides = [1, 1, 1]} : vector<8x8x1xf32> to vector<1x8x1xf32>
    %140 = vector.shape_cast %139 : vector<1x8x1xf32> to vector<8x1xf32>
    %141 = vector.broadcast %140 : vector<8x1xf32> to vector<8x512xf32>
    %142 = vector.broadcast %3 : vector<1x512xf32> to vector<8x512xf32>
    %143 = arith.mulf %141, %142 : vector<8x512xf32>
    %144 = arith.addf %138, %143 : vector<8x512xf32>
    %145 = vector.broadcast %4 : vector<1x512xf32> to vector<8x512xf32>
    %146 = arith.addf %144, %145 : vector<8x512xf32>
    %cst_23 = arith.constant dense<0.000000e+00> : vector<8x512xf32>
    %147 = tpu.matmul %132, %5, %cst_23 {dimension_numbers = #tpu.dot_dimension_numbers<[1], [0], [0], [1], [0, 0, 1, 1], [], []>} : vector<8x128xf32>, vector<128x512xf32>, vector<8x512xf32> -> vector<8x512xf32>
    %148 = arith.addf %146, %147 : vector<8x512xf32>
    %149 = vector.extract_strided_slice %148 {offsets = [0, 0], sizes = [8, 384], strides = [1, 1]} : vector<8x512xf32> to vector<8x384xf32>
    %150 = arith.negf %149 : vector<8x384xf32>
    %151 = math.exp %150 : vector<8x384xf32>
    %cst_24 = arith.constant 1.000000e+00 : f32
    %152 = vector.broadcast %cst_24 : f32 to vector<8x384xf32>
    %153 = arith.addf %152, %151 : vector<8x384xf32>
    %154 = arith.divf %152, %153 : vector<8x384xf32>
    %155 = vector.extract_strided_slice %154 {offsets = [0, 0], sizes = [8, 128], strides = [1, 1]} : vector<8x384xf32> to vector<8x128xf32>
    %156 = vector.extract_strided_slice %154 {offsets = [0, 128], sizes = [8, 128], strides = [1, 1]} : vector<8x384xf32> to vector<8x128xf32>
    %157 = vector.extract_strided_slice %154 {offsets = [0, 256], sizes = [8, 128], strides = [1, 1]} : vector<8x384xf32> to vector<8x128xf32>
    %158 = vector.extract_strided_slice %148 {offsets = [0, 384], sizes = [8, 128], strides = [1, 1]} : vector<8x512xf32> to vector<8x128xf32>
    %159 = math.tanh %158 : vector<8x128xf32>
    %160 = arith.mulf %156, %130 : vector<8x128xf32>
    %161 = arith.mulf %155, %159 : vector<8x128xf32>
    %162 = arith.addf %160, %161 : vector<8x128xf32>
    %163 = math.tanh %162 : vector<8x128xf32>
    %164 = arith.mulf %157, %163 : vector<8x128xf32>
    %c32 = arith.constant 32 : index
    %c0_25 = arith.constant 0 : index
    %165 = vector.load %arg13[%c32, %c0_25] : memref<64x128xf32, #tpu.memory_space<vmem>>, vector<8x128xf32>
    tpu.vector_store %arg13[%c32, %c0_25], %164 {strides = array<i32>} : memref<64x128xf32, #tpu.memory_space<vmem>>, vector<8x128xf32>,
    %166 = vector.extract_strided_slice %1 {offsets = [5, 0, 0], sizes = [1, 8, 1], strides = [1, 1, 1]} : vector<8x8x1xf32> to vector<1x8x1xf32>
    %167 = vector.shape_cast %166 : vector<1x8x1xf32> to vector<8x1xf32>
    %168 = vector.broadcast %167 : vector<8x1xf32> to vector<8x512xf32>
    %169 = vector.broadcast %2 : vector<1x512xf32> to vector<8x512xf32>
    %170 = arith.mulf %168, %169 : vector<8x512xf32>
    %171 = vector.extract_strided_slice %1 {offsets = [2, 0, 0], sizes = [1, 8, 1], strides = [1, 1, 1]} : vector<8x8x1xf32> to vector<1x8x1xf32>
    %172 = vector.shape_cast %171 : vector<1x8x1xf32> to vector<8x1xf32>
    %173 = vector.broadcast %172 : vector<8x1xf32> to vector<8x512xf32>
    %174 = vector.broadcast %3 : vector<1x512xf32> to vector<8x512xf32>
    %175 = arith.mulf %173, %174 : vector<8x512xf32>
    %176 = arith.addf %170, %175 : vector<8x512xf32>
    %177 = vector.broadcast %4 : vector<1x512xf32> to vector<8x512xf32>
    %178 = arith.addf %176, %177 : vector<8x512xf32>
    %cst_26 = arith.constant dense<0.000000e+00> : vector<8x512xf32>
    %179 = tpu.matmul %164, %5, %cst_26 {dimension_numbers = #tpu.dot_dimension_numbers<[1], [0], [0], [1], [0, 0, 1, 1], [], []>} : vector<8x128xf32>, vector<128x512xf32>, vector<8x512xf32> -> vector<8x512xf32>
    %180 = arith.addf %178, %179 : vector<8x512xf32>
    %181 = vector.extract_strided_slice %180 {offsets = [0, 0], sizes = [8, 384], strides = [1, 1]} : vector<8x512xf32> to vector<8x384xf32>
    %182 = arith.negf %181 : vector<8x384xf32>
    %183 = math.exp %182 : vector<8x384xf32>
    %cst_27 = arith.constant 1.000000e+00 : f32
    %184 = vector.broadcast %cst_27 : f32 to vector<8x384xf32>
    %185 = arith.addf %184, %183 : vector<8x384xf32>
    %186 = arith.divf %184, %185 : vector<8x384xf32>
    %187 = vector.extract_strided_slice %186 {offsets = [0, 0], sizes = [8, 128], strides = [1, 1]} : vector<8x384xf32> to vector<8x128xf32>
    %188 = vector.extract_strided_slice %186 {offsets = [0, 128], sizes = [8, 128], strides = [1, 1]} : vector<8x384xf32> to vector<8x128xf32>
    %189 = vector.extract_strided_slice %186 {offsets = [0, 256], sizes = [8, 128], strides = [1, 1]} : vector<8x384xf32> to vector<8x128xf32>
    %190 = vector.extract_strided_slice %180 {offsets = [0, 384], sizes = [8, 128], strides = [1, 1]} : vector<8x512xf32> to vector<8x128xf32>
    %191 = math.tanh %190 : vector<8x128xf32>
    %192 = arith.mulf %188, %162 : vector<8x128xf32>
    %193 = arith.mulf %187, %191 : vector<8x128xf32>
    %194 = arith.addf %192, %193 : vector<8x128xf32>
    %195 = math.tanh %194 : vector<8x128xf32>
    %196 = arith.mulf %189, %195 : vector<8x128xf32>
    %c40 = arith.constant 40 : index
    %c0_28 = arith.constant 0 : index
    %197 = vector.load %arg13[%c40, %c0_28] : memref<64x128xf32, #tpu.memory_space<vmem>>, vector<8x128xf32>
    tpu.vector_store %arg13[%c40, %c0_28], %196 {strides = array<i32>} : memref<64x128xf32, #tpu.memory_space<vmem>>, vector<8x128xf32>,
    %198 = vector.extract_strided_slice %1 {offsets = [6, 0, 0], sizes = [1, 8, 1], strides = [1, 1, 1]} : vector<8x8x1xf32> to vector<1x8x1xf32>
    %199 = vector.shape_cast %198 : vector<1x8x1xf32> to vector<8x1xf32>
    %200 = vector.broadcast %199 : vector<8x1xf32> to vector<8x512xf32>
    %201 = vector.broadcast %2 : vector<1x512xf32> to vector<8x512xf32>
    %202 = arith.mulf %200, %201 : vector<8x512xf32>
    %203 = vector.extract_strided_slice %1 {offsets = [1, 0, 0], sizes = [1, 8, 1], strides = [1, 1, 1]} : vector<8x8x1xf32> to vector<1x8x1xf32>
    %204 = vector.shape_cast %203 : vector<1x8x1xf32> to vector<8x1xf32>
    %205 = vector.broadcast %204 : vector<8x1xf32> to vector<8x512xf32>
    %206 = vector.broadcast %3 : vector<1x512xf32> to vector<8x512xf32>
    %207 = arith.mulf %205, %206 : vector<8x512xf32>
    %208 = arith.addf %202, %207 : vector<8x512xf32>
    %209 = vector.broadcast %4 : vector<1x512xf32> to vector<8x512xf32>
    %210 = arith.addf %208, %209 : vector<8x512xf32>
    %cst_29 = arith.constant dense<0.000000e+00> : vector<8x512xf32>
    %211 = tpu.matmul %196, %5, %cst_29 {dimension_numbers = #tpu.dot_dimension_numbers<[1], [0], [0], [1], [0, 0, 1, 1], [], []>} : vector<8x128xf32>, vector<128x512xf32>, vector<8x512xf32> -> vector<8x512xf32>
    %212 = arith.addf %210, %211 : vector<8x512xf32>
    %213 = vector.extract_strided_slice %212 {offsets = [0, 0], sizes = [8, 384], strides = [1, 1]} : vector<8x512xf32> to vector<8x384xf32>
    %214 = arith.negf %213 : vector<8x384xf32>
    %215 = math.exp %214 : vector<8x384xf32>
    %cst_30 = arith.constant 1.000000e+00 : f32
    %216 = vector.broadcast %cst_30 : f32 to vector<8x384xf32>
    %217 = arith.addf %216, %215 : vector<8x384xf32>
    %218 = arith.divf %216, %217 : vector<8x384xf32>
    %219 = vector.extract_strided_slice %218 {offsets = [0, 0], sizes = [8, 128], strides = [1, 1]} : vector<8x384xf32> to vector<8x128xf32>
    %220 = vector.extract_strided_slice %218 {offsets = [0, 128], sizes = [8, 128], strides = [1, 1]} : vector<8x384xf32> to vector<8x128xf32>
    %221 = vector.extract_strided_slice %218 {offsets = [0, 256], sizes = [8, 128], strides = [1, 1]} : vector<8x384xf32> to vector<8x128xf32>
    %222 = vector.extract_strided_slice %212 {offsets = [0, 384], sizes = [8, 128], strides = [1, 1]} : vector<8x512xf32> to vector<8x128xf32>
    %223 = math.tanh %222 : vector<8x128xf32>
    %224 = arith.mulf %220, %194 : vector<8x128xf32>
    %225 = arith.mulf %219, %223 : vector<8x128xf32>
    %226 = arith.addf %224, %225 : vector<8x128xf32>
    %227 = math.tanh %226 : vector<8x128xf32>
    %228 = arith.mulf %221, %227 : vector<8x128xf32>
    %c48 = arith.constant 48 : index
    %c0_31 = arith.constant 0 : index
    %229 = vector.load %arg13[%c48, %c0_31] : memref<64x128xf32, #tpu.memory_space<vmem>>, vector<8x128xf32>
    tpu.vector_store %arg13[%c48, %c0_31], %228 {strides = array<i32>} : memref<64x128xf32, #tpu.memory_space<vmem>>, vector<8x128xf32>,
    %230 = vector.extract_strided_slice %1 {offsets = [7, 0, 0], sizes = [1, 8, 1], strides = [1, 1, 1]} : vector<8x8x1xf32> to vector<1x8x1xf32>
    %231 = vector.shape_cast %230 : vector<1x8x1xf32> to vector<8x1xf32>
    %232 = vector.broadcast %231 : vector<8x1xf32> to vector<8x512xf32>
    %233 = vector.broadcast %2 : vector<1x512xf32> to vector<8x512xf32>
    %234 = arith.mulf %232, %233 : vector<8x512xf32>
    %235 = vector.extract_strided_slice %1 {offsets = [0, 0, 0], sizes = [1, 8, 1], strides = [1, 1, 1]} : vector<8x8x1xf32> to vector<1x8x1xf32>
    %236 = vector.shape_cast %235 : vector<1x8x1xf32> to vector<8x1xf32>
    %237 = vector.broadcast %236 : vector<8x1xf32> to vector<8x512xf32>
    %238 = vector.broadcast %3 : vector<1x512xf32> to vector<8x512xf32>
    %239 = arith.mulf %237, %238 : vector<8x512xf32>
    %240 = arith.addf %234, %239 : vector<8x512xf32>
    %241 = vector.broadcast %4 : vector<1x512xf32> to vector<8x512xf32>
    %242 = arith.addf %240, %241 : vector<8x512xf32>
    %cst_32 = arith.constant dense<0.000000e+00> : vector<8x512xf32>
    %243 = tpu.matmul %228, %5, %cst_32 {dimension_numbers = #tpu.dot_dimension_numbers<[1], [0], [0], [1], [0, 0, 1, 1], [], []>} : vector<8x128xf32>, vector<128x512xf32>, vector<8x512xf32> -> vector<8x512xf32>
    %244 = arith.addf %242, %243 : vector<8x512xf32>
    %245 = vector.extract_strided_slice %244 {offsets = [0, 0], sizes = [8, 384], strides = [1, 1]} : vector<8x512xf32> to vector<8x384xf32>
    %246 = arith.negf %245 : vector<8x384xf32>
    %247 = math.exp %246 : vector<8x384xf32>
    %cst_33 = arith.constant 1.000000e+00 : f32
    %248 = vector.broadcast %cst_33 : f32 to vector<8x384xf32>
    %249 = arith.addf %248, %247 : vector<8x384xf32>
    %250 = arith.divf %248, %249 : vector<8x384xf32>
    %251 = vector.extract_strided_slice %250 {offsets = [0, 0], sizes = [8, 128], strides = [1, 1]} : vector<8x384xf32> to vector<8x128xf32>
    %252 = vector.extract_strided_slice %250 {offsets = [0, 128], sizes = [8, 128], strides = [1, 1]} : vector<8x384xf32> to vector<8x128xf32>
    %253 = vector.extract_strided_slice %250 {offsets = [0, 256], sizes = [8, 128], strides = [1, 1]} : vector<8x384xf32> to vector<8x128xf32>
    %254 = vector.extract_strided_slice %244 {offsets = [0, 384], sizes = [8, 128], strides = [1, 1]} : vector<8x512xf32> to vector<8x128xf32>
    %255 = math.tanh %254 : vector<8x128xf32>
    %256 = arith.mulf %252, %226 : vector<8x128xf32>
    %257 = arith.mulf %251, %255 : vector<8x128xf32>
    %258 = arith.addf %256, %257 : vector<8x128xf32>
    %259 = math.tanh %258 : vector<8x128xf32>
    %260 = arith.mulf %253, %259 : vector<8x128xf32>
    %c56 = arith.constant 56 : index
    %c0_34 = arith.constant 0 : index
    %261 = vector.load %arg13[%c56, %c0_34] : memref<64x128xf32, #tpu.memory_space<vmem>>, vector<8x128xf32>
    tpu.vector_store %arg13[%c56, %c0_34], %260 {strides = array<i32>} : memref<64x128xf32, #tpu.memory_space<vmem>>, vector<8x128xf32>,
    %c0_35 = arith.constant 0 : index
    %c0_36 = arith.constant 0 : index
    %262 = vector.load %arg13[%c0_35, %c0_36] : memref<64x128xf32, #tpu.memory_space<vmem>>, vector<64x128xf32>
    %c0_37 = arith.constant 0 : index
    %c0_38 = arith.constant 0 : index
    %263 = vector.load %arg6[%c0_37, %c0_38] : memref<128x512xf32, #tpu.memory_space<vmem>>, vector<128x512xf32>
    %cst_39 = arith.constant dense<0.000000e+00> : vector<64x512xf32>
    %264 = tpu.matmul %262, %263, %cst_39 {dimension_numbers = #tpu.dot_dimension_numbers<[1], [0], [0], [1], [0, 0, 1, 1], [], []>} : vector<64x128xf32>, vector<128x512xf32>, vector<64x512xf32> -> vector<64x512xf32>
    %c0_40 = arith.constant 0 : index
    %c0_41 = arith.constant 0 : index
    %265 = vector.load %arg8[%c0_40, %c0_41] : memref<1x512xf32, #tpu.memory_space<vmem>>, vector<1x512xf32>
    %266 = vector.broadcast %265 : vector<1x512xf32> to vector<64x512xf32>
    %267 = arith.addf %264, %266 : vector<64x512xf32>
    %c0_42 = arith.constant 0 : index
    %c0_43 = arith.constant 0 : index
    %268 = vector.load %arg7[%c0_42, %c0_43] : memref<128x512xf32, #tpu.memory_space<vmem>>, vector<128x512xf32>
    %cst_44 = arith.constant dense<0.000000e+00> : vector<64x512xf32>
    %269 = tpu.matmul %262, %268, %cst_44 {dimension_numbers = #tpu.dot_dimension_numbers<[1], [0], [0], [1], [0, 0, 1, 1], [], []>} : vector<64x128xf32>, vector<128x512xf32>, vector<64x512xf32> -> vector<64x512xf32>
    %c0_45 = arith.constant 0 : index
    %c0_46 = arith.constant 0 : index
    %270 = vector.load %arg9[%c0_45, %c0_46] : memref<128x512xf32, #tpu.memory_space<vmem>>, vector<128x512xf32>
    %271 = tpu.iota {dimensions = array<i32: 1>} : vector<1x128xi32>
    %c64_i32 = arith.constant 64 : i32
    %272 = vector.broadcast %c64_i32 : i32 to vector<1x128xi32>
    %273 = arith.cmpi slt, %271, %272 : vector<1x128xi32>
    %274 = arith.extui %273 : vector<1x128xi1> to vector<1x128xi32>
    %275 = arith.sitofp %274 : vector<1x128xi32> to vector<1x128xf32>
    %276 = vector.extract_strided_slice %267 {offsets = [0, 0], sizes = [8, 512], strides = [1, 1]} : vector<64x512xf32> to vector<8x512xf32>
    %277 = vector.extract_strided_slice %269 {offsets = [56, 0], sizes = [8, 512], strides = [1, 1]} : vector<64x512xf32> to vector<8x512xf32>
    %278 = arith.addf %276, %277 : vector<8x512xf32>
    %cst_47 = arith.constant dense<0.000000e+00> : vector<8x512xf32>
    %279 = tpu.matmul %0, %270, %cst_47 {dimension_numbers = #tpu.dot_dimension_numbers<[1], [0], [0], [1], [0, 0, 1, 1], [], []>} : vector<8x128xf32>, vector<128x512xf32>, vector<8x512xf32> -> vector<8x512xf32>
    %280 = arith.addf %278, %279 : vector<8x512xf32>
    %281 = vector.extract_strided_slice %280 {offsets = [0, 0], sizes = [8, 384], strides = [1, 1]} : vector<8x512xf32> to vector<8x384xf32>
    %282 = arith.negf %281 : vector<8x384xf32>
    %283 = math.exp %282 : vector<8x384xf32>
    %cst_48 = arith.constant 1.000000e+00 : f32
    %284 = vector.broadcast %cst_48 : f32 to vector<8x384xf32>
    %285 = arith.addf %284, %283 : vector<8x384xf32>
    %286 = arith.divf %284, %285 : vector<8x384xf32>
    %287 = vector.extract_strided_slice %286 {offsets = [0, 0], sizes = [8, 128], strides = [1, 1]} : vector<8x384xf32> to vector<8x128xf32>
    %288 = vector.extract_strided_slice %286 {offsets = [0, 128], sizes = [8, 128], strides = [1, 1]} : vector<8x384xf32> to vector<8x128xf32>
    %289 = vector.extract_strided_slice %286 {offsets = [0, 256], sizes = [8, 128], strides = [1, 1]} : vector<8x384xf32> to vector<8x128xf32>
    %290 = vector.extract_strided_slice %280 {offsets = [0, 384], sizes = [8, 128], strides = [1, 1]} : vector<8x512xf32> to vector<8x128xf32>
    %291 = math.tanh %290 : vector<8x128xf32>
    %292 = arith.mulf %288, %0 : vector<8x128xf32>
    %293 = arith.mulf %287, %291 : vector<8x128xf32>
    %294 = arith.addf %292, %293 : vector<8x128xf32>
    %295 = math.tanh %294 : vector<8x128xf32>
    %296 = arith.mulf %289, %295 : vector<8x128xf32>
    %297 = vector.extract_strided_slice %267 {offsets = [8, 0], sizes = [8, 512], strides = [1, 1]} : vector<64x512xf32> to vector<8x512xf32>
    %298 = vector.extract_strided_slice %269 {offsets = [48, 0], sizes = [8, 512], strides = [1, 1]} : vector<64x512xf32> to vector<8x512xf32>
    %299 = arith.addf %297, %298 : vector<8x512xf32>
    %cst_49 = arith.constant dense<0.000000e+00> : vector<8x512xf32>
    %300 = tpu.matmul %296, %270, %cst_49 {dimension_numbers = #tpu.dot_dimension_numbers<[1], [0], [0], [1], [0, 0, 1, 1], [], []>} : vector<8x128xf32>, vector<128x512xf32>, vector<8x512xf32> -> vector<8x512xf32>
    %301 = arith.addf %299, %300 : vector<8x512xf32>
    %302 = vector.extract_strided_slice %301 {offsets = [0, 0], sizes = [8, 384], strides = [1, 1]} : vector<8x512xf32> to vector<8x384xf32>
    %303 = arith.negf %302 : vector<8x384xf32>
    %304 = math.exp %303 : vector<8x384xf32>
    %cst_50 = arith.constant 1.000000e+00 : f32
    %305 = vector.broadcast %cst_50 : f32 to vector<8x384xf32>
    %306 = arith.addf %305, %304 : vector<8x384xf32>
    %307 = arith.divf %305, %306 : vector<8x384xf32>
    %308 = vector.extract_strided_slice %307 {offsets = [0, 0], sizes = [8, 128], strides = [1, 1]} : vector<8x384xf32> to vector<8x128xf32>
    %309 = vector.extract_strided_slice %307 {offsets = [0, 128], sizes = [8, 128], strides = [1, 1]} : vector<8x384xf32> to vector<8x128xf32>
    %310 = vector.extract_strided_slice %307 {offsets = [0, 256], sizes = [8, 128], strides = [1, 1]} : vector<8x384xf32> to vector<8x128xf32>
    %311 = vector.extract_strided_slice %301 {offsets = [0, 384], sizes = [8, 128], strides = [1, 1]} : vector<8x512xf32> to vector<8x128xf32>
    %312 = math.tanh %311 : vector<8x128xf32>
    %313 = arith.mulf %309, %294 : vector<8x128xf32>
    %314 = arith.mulf %308, %312 : vector<8x128xf32>
    %315 = arith.addf %313, %314 : vector<8x128xf32>
    %316 = math.tanh %315 : vector<8x128xf32>
    %317 = arith.mulf %310, %316 : vector<8x128xf32>
    %318 = vector.extract_strided_slice %267 {offsets = [16, 0], sizes = [8, 512], strides = [1, 1]} : vector<64x512xf32> to vector<8x512xf32>
    %319 = vector.extract_strided_slice %269 {offsets = [40, 0], sizes = [8, 512], strides = [1, 1]} : vector<64x512xf32> to vector<8x512xf32>
    %320 = arith.addf %318, %319 : vector<8x512xf32>
    %cst_51 = arith.constant dense<0.000000e+00> : vector<8x512xf32>
    %321 = tpu.matmul %317, %270, %cst_51 {dimension_numbers = #tpu.dot_dimension_numbers<[1], [0], [0], [1], [0, 0, 1, 1], [], []>} : vector<8x128xf32>, vector<128x512xf32>, vector<8x512xf32> -> vector<8x512xf32>
    %322 = arith.addf %320, %321 : vector<8x512xf32>
    %323 = vector.extract_strided_slice %322 {offsets = [0, 0], sizes = [8, 384], strides = [1, 1]} : vector<8x512xf32> to vector<8x384xf32>
    %324 = arith.negf %323 : vector<8x384xf32>
    %325 = math.exp %324 : vector<8x384xf32>
    %cst_52 = arith.constant 1.000000e+00 : f32
    %326 = vector.broadcast %cst_52 : f32 to vector<8x384xf32>
    %327 = arith.addf %326, %325 : vector<8x384xf32>
    %328 = arith.divf %326, %327 : vector<8x384xf32>
    %329 = vector.extract_strided_slice %328 {offsets = [0, 0], sizes = [8, 128], strides = [1, 1]} : vector<8x384xf32> to vector<8x128xf32>
    %330 = vector.extract_strided_slice %328 {offsets = [0, 128], sizes = [8, 128], strides = [1, 1]} : vector<8x384xf32> to vector<8x128xf32>
    %331 = vector.extract_strided_slice %328 {offsets = [0, 256], sizes = [8, 128], strides = [1, 1]} : vector<8x384xf32> to vector<8x128xf32>
    %332 = vector.extract_strided_slice %322 {offsets = [0, 384], sizes = [8, 128], strides = [1, 1]} : vector<8x512xf32> to vector<8x128xf32>
    %333 = math.tanh %332 : vector<8x128xf32>
    %334 = arith.mulf %330, %315 : vector<8x128xf32>
    %335 = arith.mulf %329, %333 : vector<8x128xf32>
    %336 = arith.addf %334, %335 : vector<8x128xf32>
    %337 = math.tanh %336 : vector<8x128xf32>
    %338 = arith.mulf %331, %337 : vector<8x128xf32>
    %339 = vector.extract_strided_slice %267 {offsets = [24, 0], sizes = [8, 512], strides = [1, 1]} : vector<64x512xf32> to vector<8x512xf32>
    %340 = vector.extract_strided_slice %269 {offsets = [32, 0], sizes = [8, 512], strides = [1, 1]} : vector<64x512xf32> to vector<8x512xf32>
    %341 = arith.addf %339, %340 : vector<8x512xf32>
    %cst_53 = arith.constant dense<0.000000e+00> : vector<8x512xf32>
    %342 = tpu.matmul %338, %270, %cst_53 {dimension_numbers = #tpu.dot_dimension_numbers<[1], [0], [0], [1], [0, 0, 1, 1], [], []>} : vector<8x128xf32>, vector<128x512xf32>, vector<8x512xf32> -> vector<8x512xf32>
    %343 = arith.addf %341, %342 : vector<8x512xf32>
    %344 = vector.extract_strided_slice %343 {offsets = [0, 0], sizes = [8, 384], strides = [1, 1]} : vector<8x512xf32> to vector<8x384xf32>
    %345 = arith.negf %344 : vector<8x384xf32>
    %346 = math.exp %345 : vector<8x384xf32>
    %cst_54 = arith.constant 1.000000e+00 : f32
    %347 = vector.broadcast %cst_54 : f32 to vector<8x384xf32>
    %348 = arith.addf %347, %346 : vector<8x384xf32>
    %349 = arith.divf %347, %348 : vector<8x384xf32>
    %350 = vector.extract_strided_slice %349 {offsets = [0, 0], sizes = [8, 128], strides = [1, 1]} : vector<8x384xf32> to vector<8x128xf32>
    %351 = vector.extract_strided_slice %349 {offsets = [0, 128], sizes = [8, 128], strides = [1, 1]} : vector<8x384xf32> to vector<8x128xf32>
    %352 = vector.extract_strided_slice %349 {offsets = [0, 256], sizes = [8, 128], strides = [1, 1]} : vector<8x384xf32> to vector<8x128xf32>
    %353 = vector.extract_strided_slice %343 {offsets = [0, 384], sizes = [8, 128], strides = [1, 1]} : vector<8x512xf32> to vector<8x128xf32>
    %354 = math.tanh %353 : vector<8x128xf32>
    %355 = arith.mulf %351, %336 : vector<8x128xf32>
    %356 = arith.mulf %350, %354 : vector<8x128xf32>
    %357 = arith.addf %355, %356 : vector<8x128xf32>
    %358 = math.tanh %357 : vector<8x128xf32>
    %359 = arith.mulf %352, %358 : vector<8x128xf32>
    %360 = vector.extract_strided_slice %267 {offsets = [32, 0], sizes = [8, 512], strides = [1, 1]} : vector<64x512xf32> to vector<8x512xf32>
    %361 = vector.extract_strided_slice %269 {offsets = [24, 0], sizes = [8, 512], strides = [1, 1]} : vector<64x512xf32> to vector<8x512xf32>
    %362 = arith.addf %360, %361 : vector<8x512xf32>
    %cst_55 = arith.constant dense<0.000000e+00> : vector<8x512xf32>
    %363 = tpu.matmul %359, %270, %cst_55 {dimension_numbers = #tpu.dot_dimension_numbers<[1], [0], [0], [1], [0, 0, 1, 1], [], []>} : vector<8x128xf32>, vector<128x512xf32>, vector<8x512xf32> -> vector<8x512xf32>
    %364 = arith.addf %362, %363 : vector<8x512xf32>
    %365 = vector.extract_strided_slice %364 {offsets = [0, 0], sizes = [8, 384], strides = [1, 1]} : vector<8x512xf32> to vector<8x384xf32>
    %366 = arith.negf %365 : vector<8x384xf32>
    %367 = math.exp %366 : vector<8x384xf32>
    %cst_56 = arith.constant 1.000000e+00 : f32
    %368 = vector.broadcast %cst_56 : f32 to vector<8x384xf32>
    %369 = arith.addf %368, %367 : vector<8x384xf32>
    %370 = arith.divf %368, %369 : vector<8x384xf32>
    %371 = vector.extract_strided_slice %370 {offsets = [0, 0], sizes = [8, 128], strides = [1, 1]} : vector<8x384xf32> to vector<8x128xf32>
    %372 = vector.extract_strided_slice %370 {offsets = [0, 128], sizes = [8, 128], strides = [1, 1]} : vector<8x384xf32> to vector<8x128xf32>
    %373 = vector.extract_strided_slice %370 {offsets = [0, 256], sizes = [8, 128], strides = [1, 1]} : vector<8x384xf32> to vector<8x128xf32>
    %374 = vector.extract_strided_slice %364 {offsets = [0, 384], sizes = [8, 128], strides = [1, 1]} : vector<8x512xf32> to vector<8x128xf32>
    %375 = math.tanh %374 : vector<8x128xf32>
    %376 = arith.mulf %372, %357 : vector<8x128xf32>
    %377 = arith.mulf %371, %375 : vector<8x128xf32>
    %378 = arith.addf %376, %377 : vector<8x128xf32>
    %379 = math.tanh %378 : vector<8x128xf32>
    %380 = arith.mulf %373, %379 : vector<8x128xf32>
    %381 = vector.extract_strided_slice %267 {offsets = [40, 0], sizes = [8, 512], strides = [1, 1]} : vector<64x512xf32> to vector<8x512xf32>
    %382 = vector.extract_strided_slice %269 {offsets = [16, 0], sizes = [8, 512], strides = [1, 1]} : vector<64x512xf32> to vector<8x512xf32>
    %383 = arith.addf %381, %382 : vector<8x512xf32>
    %cst_57 = arith.constant dense<0.000000e+00> : vector<8x512xf32>
    %384 = tpu.matmul %380, %270, %cst_57 {dimension_numbers = #tpu.dot_dimension_numbers<[1], [0], [0], [1], [0, 0, 1, 1], [], []>} : vector<8x128xf32>, vector<128x512xf32>, vector<8x512xf32> -> vector<8x512xf32>
    %385 = arith.addf %383, %384 : vector<8x512xf32>
    %386 = vector.extract_strided_slice %385 {offsets = [0, 0], sizes = [8, 384], strides = [1, 1]} : vector<8x512xf32> to vector<8x384xf32>
    %387 = arith.negf %386 : vector<8x384xf32>
    %388 = math.exp %387 : vector<8x384xf32>
    %cst_58 = arith.constant 1.000000e+00 : f32
    %389 = vector.broadcast %cst_58 : f32 to vector<8x384xf32>
    %390 = arith.addf %389, %388 : vector<8x384xf32>
    %391 = arith.divf %389, %390 : vector<8x384xf32>
    %392 = vector.extract_strided_slice %391 {offsets = [0, 0], sizes = [8, 128], strides = [1, 1]} : vector<8x384xf32> to vector<8x128xf32>
    %393 = vector.extract_strided_slice %391 {offsets = [0, 128], sizes = [8, 128], strides = [1, 1]} : vector<8x384xf32> to vector<8x128xf32>
    %394 = vector.extract_strided_slice %391 {offsets = [0, 256], sizes = [8, 128], strides = [1, 1]} : vector<8x384xf32> to vector<8x128xf32>
    %395 = vector.extract_strided_slice %385 {offsets = [0, 384], sizes = [8, 128], strides = [1, 1]} : vector<8x512xf32> to vector<8x128xf32>
    %396 = math.tanh %395 : vector<8x128xf32>
    %397 = arith.mulf %393, %378 : vector<8x128xf32>
    %398 = arith.mulf %392, %396 : vector<8x128xf32>
    %399 = arith.addf %397, %398 : vector<8x128xf32>
    %400 = math.tanh %399 : vector<8x128xf32>
    %401 = arith.mulf %394, %400 : vector<8x128xf32>
    %402 = vector.extract_strided_slice %267 {offsets = [48, 0], sizes = [8, 512], strides = [1, 1]} : vector<64x512xf32> to vector<8x512xf32>
    %403 = vector.extract_strided_slice %269 {offsets = [8, 0], sizes = [8, 512], strides = [1, 1]} : vector<64x512xf32> to vector<8x512xf32>
    %404 = arith.addf %402, %403 : vector<8x512xf32>
    %cst_59 = arith.constant dense<0.000000e+00> : vector<8x512xf32>
    %405 = tpu.matmul %401, %270, %cst_59 {dimension_numbers = #tpu.dot_dimension_numbers<[1], [0], [0], [1], [0, 0, 1, 1], [], []>} : vector<8x128xf32>, vector<128x512xf32>, vector<8x512xf32> -> vector<8x512xf32>
    %406 = arith.addf %404, %405 : vector<8x512xf32>
    %407 = vector.extract_strided_slice %406 {offsets = [0, 0], sizes = [8, 384], strides = [1, 1]} : vector<8x512xf32> to vector<8x384xf32>
    %408 = arith.negf %407 : vector<8x384xf32>
    %409 = math.exp %408 : vector<8x384xf32>
    %cst_60 = arith.constant 1.000000e+00 : f32
    %410 = vector.broadcast %cst_60 : f32 to vector<8x384xf32>
    %411 = arith.addf %410, %409 : vector<8x384xf32>
    %412 = arith.divf %410, %411 : vector<8x384xf32>
    %413 = vector.extract_strided_slice %412 {offsets = [0, 0], sizes = [8, 128], strides = [1, 1]} : vector<8x384xf32> to vector<8x128xf32>
    %414 = vector.extract_strided_slice %412 {offsets = [0, 128], sizes = [8, 128], strides = [1, 1]} : vector<8x384xf32> to vector<8x128xf32>
    %415 = vector.extract_strided_slice %412 {offsets = [0, 256], sizes = [8, 128], strides = [1, 1]} : vector<8x384xf32> to vector<8x128xf32>
    %416 = vector.extract_strided_slice %406 {offsets = [0, 384], sizes = [8, 128], strides = [1, 1]} : vector<8x512xf32> to vector<8x128xf32>
    %417 = math.tanh %416 : vector<8x128xf32>
    %418 = arith.mulf %414, %399 : vector<8x128xf32>
    %419 = arith.mulf %413, %417 : vector<8x128xf32>
    %420 = arith.addf %418, %419 : vector<8x128xf32>
    %421 = math.tanh %420 : vector<8x128xf32>
    %422 = arith.mulf %415, %421 : vector<8x128xf32>
    %423 = vector.broadcast %275 : vector<1x128xf32> to vector<8x128xf32>
    %424 = arith.mulf %420, %423 : vector<8x128xf32>
    %425 = vector.extract_strided_slice %267 {offsets = [56, 0], sizes = [8, 512], strides = [1, 1]} : vector<64x512xf32> to vector<8x512xf32>
    %426 = vector.extract_strided_slice %269 {offsets = [0, 0], sizes = [8, 512], strides = [1, 1]} : vector<64x512xf32> to vector<8x512xf32>
    %427 = arith.addf %425, %426 : vector<8x512xf32>
    %cst_61 = arith.constant dense<0.000000e+00> : vector<8x512xf32>
    %428 = tpu.matmul %422, %270, %cst_61 {dimension_numbers = #tpu.dot_dimension_numbers<[1], [0], [0], [1], [0, 0, 1, 1], [], []>} : vector<8x128xf32>, vector<128x512xf32>, vector<8x512xf32> -> vector<8x512xf32>
    %429 = arith.addf %427, %428 : vector<8x512xf32>
    %430 = vector.extract_strided_slice %429 {offsets = [0, 0], sizes = [8, 384], strides = [1, 1]} : vector<8x512xf32> to vector<8x384xf32>
    %431 = arith.negf %430 : vector<8x384xf32>
    %432 = math.exp %431 : vector<8x384xf32>
    %cst_62 = arith.constant 1.000000e+00 : f32
    %433 = vector.broadcast %cst_62 : f32 to vector<8x384xf32>
    %434 = arith.addf %433, %432 : vector<8x384xf32>
    %435 = arith.divf %433, %434 : vector<8x384xf32>
    %436 = vector.extract_strided_slice %435 {offsets = [0, 0], sizes = [8, 128], strides = [1, 1]} : vector<8x384xf32> to vector<8x128xf32>
    %437 = vector.extract_strided_slice %435 {offsets = [0, 128], sizes = [8, 128], strides = [1, 1]} : vector<8x384xf32> to vector<8x128xf32>
    %438 = vector.extract_strided_slice %435 {offsets = [0, 256], sizes = [8, 128], strides = [1, 1]} : vector<8x384xf32> to vector<8x128xf32>
    %439 = vector.extract_strided_slice %429 {offsets = [0, 384], sizes = [8, 128], strides = [1, 1]} : vector<8x512xf32> to vector<8x128xf32>
    %440 = math.tanh %439 : vector<8x128xf32>
    %441 = arith.mulf %437, %424 : vector<8x128xf32>
    %442 = arith.mulf %436, %440 : vector<8x128xf32>
    %443 = arith.addf %441, %442 : vector<8x128xf32>
    %444 = math.tanh %443 : vector<8x128xf32>
    %445 = arith.mulf %438, %444 : vector<8x128xf32>
    %c0_63 = arith.constant 0 : index
    %c0_64 = arith.constant 0 : index
    %446 = vector.load %arg10[%c0_63, %c0_64] : memref<128x128xf32, #tpu.memory_space<vmem>>, vector<128x128xf32>
    %cst_65 = arith.constant dense<0.000000e+00> : vector<8x128xf32>
    %447 = tpu.matmul %445, %446, %cst_65 {dimension_numbers = #tpu.dot_dimension_numbers<[1], [0], [0], [1], [0, 0, 1, 1], [], []>} : vector<8x128xf32>, vector<128x128xf32>, vector<8x128xf32> -> vector<8x128xf32>
    %c0_66 = arith.constant 0 : index
    %c0_67 = arith.constant 0 : index
    %448 = vector.load %arg11[%c0_66, %c0_67] : memref<1x128xf32, #tpu.memory_space<vmem>>, vector<1x128xf32>
    %449 = vector.broadcast %448 : vector<1x128xf32> to vector<8x128xf32>
    %450 = arith.addf %447, %449 : vector<8x128xf32>
    %c0_68 = arith.constant 0 : index
    %c0_69 = arith.constant 0 : index
    %451 = vector.load %arg12[%c0_68, %c0_69] : memref<8x128xf32, #tpu.memory_space<vmem>>, vector<8x128xf32>
    tpu.vector_store %arg12[%c0_68, %c0_69], %450 {strides = array<i32>} : memref<8x128xf32, #tpu.memory_space<vmem>>, vector<8x128xf32>,
    return
  }
  func.func @transform_0(%arg0: i32) -> (i32, i32, i32) {
    %c0_i32 = arith.constant 0 : i32
    %c0_i32_0 = arith.constant 0 : i32
    %c0_i32_1 = arith.constant 0 : i32
    return %c0_i32, %arg0, %c0_i32_0 : i32, i32, i32
  }
  func.func @transform_1(%arg0: i32) -> (i32, i32) {
    %c0_i32 = arith.constant 0 : i32
    %c0_i32_0 = arith.constant 0 : i32
    %c0_i32_1 = arith.constant 0 : i32
    return %c0_i32, %c0_i32_0 : i32, i32
  }
  func.func @transform_2(%arg0: i32) -> (i32, i32) {
    %c0_i32 = arith.constant 0 : i32
    %c0_i32_0 = arith.constant 0 : i32
    %c0_i32_1 = arith.constant 0 : i32
    return %c0_i32, %c0_i32_0 : i32, i32
  }
  func.func @transform_3(%arg0: i32) -> (i32, i32) {
    %c0_i32 = arith.constant 0 : i32
    %c0_i32_0 = arith.constant 0 : i32
    %c0_i32_1 = arith.constant 0 : i32
    return %c0_i32, %c0_i32_0 : i32, i32
  }
  func.func @transform_4(%arg0: i32) -> (i32, i32) {
    %c0_i32 = arith.constant 0 : i32
    %c0_i32_0 = arith.constant 0 : i32
    %c0_i32_1 = arith.constant 0 : i32
    return %c0_i32, %c0_i32_0 : i32, i32
  }
  func.func @transform_5(%arg0: i32) -> (i32, i32) {
    %c0_i32 = arith.constant 0 : i32
    %c0_i32_0 = arith.constant 0 : i32
    %c0_i32_1 = arith.constant 0 : i32
    return %c0_i32, %c0_i32_0 : i32, i32
  }
  func.func @transform_6(%arg0: i32) -> (i32, i32) {
    %c0_i32 = arith.constant 0 : i32
    %c0_i32_0 = arith.constant 0 : i32
    %c0_i32_1 = arith.constant 0 : i32
    return %c0_i32, %c0_i32_0 : i32, i32
  }
  func.func @transform_7(%arg0: i32) -> (i32, i32) {
    %c0_i32 = arith.constant 0 : i32
    %c0_i32_0 = arith.constant 0 : i32
    %c0_i32_1 = arith.constant 0 : i32
    return %c0_i32, %c0_i32_0 : i32, i32
  }
  func.func @transform_8(%arg0: i32) -> (i32, i32) {
    %c0_i32 = arith.constant 0 : i32
    %c0_i32_0 = arith.constant 0 : i32
    %c0_i32_1 = arith.constant 0 : i32
    return %c0_i32, %c0_i32_0 : i32, i32
  }
  func.func @transform_9(%arg0: i32) -> (i32, i32) {
    %c0_i32 = arith.constant 0 : i32
    %c0_i32_0 = arith.constant 0 : i32
    %c0_i32_1 = arith.constant 0 : i32
    return %c0_i32, %c0_i32_0 : i32, i32
  }
  func.func @transform_10(%arg0: i32) -> (i32, i32) {
    %c0_i32 = arith.constant 0 : i32
    %c0_i32_0 = arith.constant 0 : i32
    %c0_i32_1 = arith.constant 0 : i32
    return %c0_i32, %c0_i32_0 : i32, i32
  }
  func.func @transform_11(%arg0: i32) -> (i32, i32) {
    %c0_i32 = arith.constant 0 : i32
    %c0_i32_0 = arith.constant 0 : i32
    return %arg0, %c0_i32 : i32, i32
  }
}

</mosaic_0001>

<llo_original>
// kernel: bilstm_forward.1
$region0: #{bilstm_forward.1}
  #allocation0 [shape = 'u32[]', space=smem, size = 0x4, offset = 0x4, fixed_abs, tag = 'smem constant byte address 0x4 - core index']
  #allocation1 [shape = 'u32[144,128]{1,0:T(1,128)}', space=vmem, size = 0x12000, scoped, tag = 'internal scratch']
  #allocation2 [shape = 'f32[64,128]{1,0:T(8,128)}', space=vmem, size = 0x8000, scoped, tag = 'scratch operand']
  %s0 = inlined_call_operand.vmem [shape: f32[8,8,1], index: 0, kind: input, shape index: {}]
  %s1 = inlined_call_operand.vmem [shape: f32[1,512], index: 1, kind: input, shape index: {}]
  %s2 = inlined_call_operand.vmem [shape: f32[1,512], index: 2, kind: input, shape index: {}]
  %s3 = inlined_call_operand.vmem [shape: f32[1,512], index: 3, kind: input, shape index: {}]
  %s4 = inlined_call_operand.hbm [shape: f32[128,512], index: 4, kind: input, shape index: {}]
  %s5 = inlined_call_operand.hbm [shape: f32[128,512], index: 5, kind: input, shape index: {}]
  %s6 = inlined_call_operand.hbm [shape: f32[128,512], index: 6, kind: input, shape index: {}]
  %s7 = inlined_call_operand.vmem [shape: f32[1,512], index: 7, kind: input, shape index: {}]
  %s8 = inlined_call_operand.hbm [shape: f32[128,512], index: 8, kind: input, shape index: {}]
  %s9 = inlined_call_operand.hbm [shape: f32[128,128], index: 9, kind: input, shape index: {}]
  %s10 = inlined_call_operand.vmem [shape: f32[1,128], index: 10, kind: input, shape index: {}]
  %s11 = inlined_call_operand.vmem [shape: f32[8,128], index: 11, kind: output, shape index: {}]
  %s12 = sld [smem:[#allocation0]]
  $region74: #{bilstm_forward.1} parent=0
    _
  %s14 = ssub.s32 1, %s12
  %s15 = scalar_select 0, %s14, %s12
  $region1: #{bilstm_forward.1} parent=0
    #allocation3 [shape = 'u8[262144]{0}', space=vmem, size = 0x40000, scoped, tag = 'input window, operand 4, single buffered']
    #allocation4 [shape = 's32[1]{0}', space=sflag, size = 0x4, scoped, tag = 'scoped memory for bilstm_forward.1']
    #allocation5 [shape = 'u8[262144]{0}', space=vmem, size = 0x40000, scoped, tag = 'input window, operand 5, single buffered']
    #allocation6 [shape = 's32[1]{0}', space=sflag, size = 0x4, scoped, tag = 'scoped memory for bilstm_forward.1']
    #allocation7 [shape = 'u8[262144]{0}', space=vmem, size = 0x40000, scoped, tag = 'input window, operand 6, single buffered']
    #allocation8 [shape = 'u8[262144]{0}', space=vmem, size = 0x40000, scoped, tag = 'input window, operand 8, single buffered']
    #allocation9 [shape = 's32[1]{0}', space=sflag, size = 0x4, scoped, tag = 'scoped memory for bilstm_forward.1']
    #allocation10 [shape = 'u8[65536]{0}', space=vmem, size = 0x10000, scoped, tag = 'input window, operand 9, single buffered']
    %16 = vsyncpa [#allocation4], 0
    %17 = vsyncpa [#allocation6], 0
    %18 = vsyncpa [#allocation9], 0
    // Predicated region
    $region2: #{bilstm_forward.1} parent=1 // pred_check
      _
    $region3: #{bilstm_forward.1} parent=1 // pred_check_branch
      %20 = sbr.rel (0) target = $region5
    $region4: #{bilstm_forward.1} parent=1 // pred_region
      _
    $region5: #{bilstm_forward.1} parent=1 // pred_fallthru
      _
    // Predicated region
    $region6: #{bilstm_forward.1} parent=1 // pred_check
      _
    $region7: #{bilstm_forward.1} parent=1 // pred_check_branch
      %22 = sbr.rel (0) target = $region9
    $region8: #{bilstm_forward.1} parent=1 // pred_region
      _
    $region9: #{bilstm_forward.1} parent=1 // pred_fallthru
      _
    // Predicated region
    $region10: #{bilstm_forward.1} parent=1 // pred_check
      _
    $region11: #{bilstm_forward.1} parent=1 // pred_check_branch
      %24 = sbr.rel (0) target = $region13
    $region12: #{bilstm_forward.1} parent=1 // pred_region
      _
    $region13: #{bilstm_forward.1} parent=1 // pred_fallthru
      _
    // Predicated region
    $region14: #{bilstm_forward.1} parent=1 // pred_check
      _
    $region15: #{bilstm_forward.1} parent=1 // pred_check_branch
      %26 = sbr.rel (0) target = $region17
    $region16: #{bilstm_forward.1} parent=1 // pred_region
      _
    $region17: #{bilstm_forward.1} parent=1 // pred_fallthru
      _
    // Predicated region
    $region18: #{bilstm_forward.1} parent=1 // pred_check
      _
    $region19: #{bilstm_forward.1} parent=1 // pred_check_branch
      %28 = sbr.rel (0) target = $region21
    $region20: #{bilstm_forward.1} parent=1 // pred_region
      %s30 = ssub.s32 8192, 8192
      %31 = vsyncadd [#allocation4], %s30
      %s32 = sshll.u32 [#allocation3], 4
      %s33 = int_to_ptr.vmem [resolvable:$true] %s32
      %38 = dma.hbm_to_vmem [thread:$0]  %s4, 8192, %s33, [#allocation4], 512, 512, 32
    $region21: #{bilstm_forward.1} parent=1 // pred_fallthru
      _
    // Predicated region
    $region22: #{bilstm_forward.1} parent=1 // pred_check
      _
    $region23: #{bilstm_forward.1} parent=1 // pred_check_branch
      %40 = sbr.rel (0) target = $region25
    $region24: #{bilstm_forward.1} parent=1 // pred_region
      %s42 = ssub.s32 8192, 8192
      %43 = vsyncadd [#allocation6], %s42
      %s44 = sshll.u32 [#allocation5], 4
      %s45 = int_to_ptr.vmem [resolvable:$true] %s44
      %50 = dma.hbm_to_vmem [thread:$0]  %s5, 8192, %s45, [#allocation6], 512, 512, 32
    $region25: #{bilstm_forward.1} parent=1 // pred_fallthru
      _
    // Predicated region
    $region26: #{bilstm_forward.1} parent=1 // pred_check
      _
    $region27: #{bilstm_forward.1} parent=1 // pred_check_branch
      %52 = sbr.rel (0) target = $region29
    $region28: #{bilstm_forward.1} parent=1 // pred_region
      %s54 = ssub.s32 8192, 8192
      %55 = vsyncadd [#allocation6], %s54
      %s56 = sshll.u32 [#allocation7], 4
      %s57 = int_to_ptr.vmem [resolvable:$true] %s56
      %62 = dma.hbm_to_vmem [thread:$0]  %s6, 8192, %s57, [#allocation6], 512, 512, 32
    $region29: #{bilstm_forward.1} parent=1 // pred_fallthru
      _
    // Predicated region
    $region30: #{bilstm_forward.1} parent=1 // pred_check
      _
    $region31: #{bilstm_forward.1} parent=1 // pred_check_branch
      %64 = sbr.rel (0) target = $region33
    $region32: #{bilstm_forward.1} parent=1 // pred_region
      _
    $region33: #{bilstm_forward.1} parent=1 // pred_fallthru
      _
    // Predicated region
    $region34: #{bilstm_forward.1} parent=1 // pred_check
      _
    $region35: #{bilstm_forward.1} parent=1 // pred_check_branch
      %66 = sbr.rel (0) target = $region37
    $region36: #{bilstm_forward.1} parent=1 // pred_region
      %s68 = ssub.s32 8192, 8192
      %69 = vsyncadd [#allocation9], %s68
      %s70 = sshll.u32 [#allocation8], 4
      %s71 = int_to_ptr.vmem [resolvable:$true] %s70
      %76 = dma.hbm_to_vmem [thread:$0]  %s8, 8192, %s71, [#allocation9], 512, 512, 32
    $region37: #{bilstm_forward.1} parent=1 // pred_fallthru
      _
    // Predicated region
    $region38: #{bilstm_forward.1} parent=1 // pred_check
      _
    $region39: #{bilstm_forward.1} parent=1 // pred_check_branch
      %78 = sbr.rel (0) target = $region41
    $region40: #{bilstm_forward.1} parent=1 // pred_region
      %s80 = ssub.s32 2048, 2048
      %81 = vsyncadd [#allocation9], %s80
      %s82 = sshll.u32 [#allocation10], 4
      %s83 = int_to_ptr.vmem [resolvable:$true] %s82
      %88 = dma.hbm_to_vmem [thread:$0]  %s9, 2048, %s83, [#allocation9], 128, 128, 8
    $region41: #{bilstm_forward.1} parent=1 // pred_fallthru
      _
    // Predicated region
    $region42: #{bilstm_forward.1} parent=1 // pred_check
      _
    $region43: #{bilstm_forward.1} parent=1 // pred_check_branch
      %90 = sbr.rel (0) target = $region45
    $region44: #{bilstm_forward.1} parent=1 // pred_region
      _
    $region45: #{bilstm_forward.1} parent=1 // pred_fallthru
      _
    // Predicated region
    $region46: #{bilstm_forward.1} parent=1 // pred_check
      _
    $region47: #{bilstm_forward.1} parent=1 // pred_check_branch
      %92 = sbr.rel (0) target = $region49
    $region48: #{bilstm_forward.1} parent=1 // pred_region
      %93 = dma.done [#allocation4], 8192
    $region49: #{bilstm_forward.1} parent=1 // pred_fallthru
      _
    // Predicated region
    $region50: #{bilstm_forward.1} parent=1 // pred_check
      _
    $region51: #{bilstm_forward.1} parent=1 // pred_check_branch
      %95 = sbr.rel (0) target = $region53
    $region52: #{bilstm_forward.1} parent=1 // pred_region
      %96 = dma.done [#allocation6], 8192
    $region53: #{bilstm_forward.1} parent=1 // pred_fallthru
      _
    // Predicated region
    $region54: #{bilstm_forward.1} parent=1 // pred_check
      _
    $region55: #{bilstm_forward.1} parent=1 // pred_check_branch
      %98 = sbr.rel (0) target = $region57
    $region56: #{bilstm_forward.1} parent=1 // pred_region
      %99 = dma.done [#allocation6], 8192
    $region57: #{bilstm_forward.1} parent=1 // pred_fallthru
      _
    // Predicated region
    $region58: #{bilstm_forward.1} parent=1 // pred_check
      _
    $region59: #{bilstm_forward.1} parent=1 // pred_check_branch
      %101 = sbr.rel (0) target = $region61
    $region60: #{bilstm_forward.1} parent=1 // pred_region
      %102 = dma.done [#allocation9], 8192
    $region61: #{bilstm_forward.1} parent=1 // pred_fallthru
      _
    // Predicated region
    $region62: #{bilstm_forward.1} parent=1 // pred_check
      _
    $region63: #{bilstm_forward.1} parent=1 // pred_check_branch
      %104 = sbr.rel (0) target = $region65
    $region64: #{bilstm_forward.1} parent=1 // pred_region
      %105 = dma.done [#allocation9], 2048
    $region65: #{bilstm_forward.1} parent=1 // pred_fallthru
      _
    %v106 = vld [vmem:[%s0] sm:$0xff]
    %v107 = vld [vmem:[%s0 + $0x8] sm:$0xff]
    %v108 = vld [vmem:[%s0 + $0x10] sm:$0xff]
    %v109 = vld [vmem:[%s0 + $0x18] sm:$0xff]
    %v110 = vld [vmem:[%s0 + $0x20] sm:$0xff]
    %v111 = vld [vmem:[%s0 + $0x28] sm:$0xff]
    %v112 = vld [vmem:[%s0 + $0x30] sm:$0xff]
    %v113 = vld [vmem:[%s0 + $0x38] sm:$0xff]
    %v114 = vld [vmem:[%s1] sm:$0xf]
    %v115 = vld [vmem:[%s2] sm:$0xf]
    %v116 = vld [vmem:[%s3] sm:$0xf]
    %v117 = vld [vmem:[#allocation3] sm:$0xff]
    %v118 = vld [vmem:[#allocation3 + $0x8] sm:$0xff]
    %v119 = vld [vmem:[#allocation3 + $0x10] sm:$0xff]
    %v120 = vld [vmem:[#allocation3 + $0x18] sm:$0xff]
    %v121 = vld [vmem:[#allocation3 + $0x20] sm:$0xff]
    %v122 = vld [vmem:[#allocation3 + $0x28] sm:$0xff]
    %v123 = vld [vmem:[#allocation3 + $0x30] sm:$0xff]
    %v124 = vld [vmem:[#allocation3 + $0x38] sm:$0xff]
    %v125 = vld [vmem:[#allocation3 + $0x40] sm:$0xff]
    %v126 = vld [vmem:[#allocation3 + $0x48] sm:$0xff]
    %v127 = vld [vmem:[#allocation3 + $0x50] sm:$0xff]
    %v128 = vld [vmem:[#allocation3 + $0x58] sm:$0xff]
    %v129 = vld [vmem:[#allocation3 + $0x60] sm:$0xff]
    %v130 = vld [vmem:[#allocation3 + $0x68] sm:$0xff]
    %v131 = vld [vmem:[#allocation3 + $0x70] sm:$0xff]
    %v132 = vld [vmem:[#allocation3 + $0x78] sm:$0xff]
    %v133 = vld [vmem:[#allocation3 + $0x80] sm:$0xff]
    %v134 = vld [vmem:[#allocation3 + $0x88] sm:$0xff]
    %v135 = vld [vmem:[#allocation3 + $0x90] sm:$0xff]
    %v136 = vld [vmem:[#allocation3 + $0x98] sm:$0xff]
    %v137 = vld [vmem:[#allocation3 + $0xa0] sm:$0xff]
    %v138 = vld [vmem:[#allocation3 + $0xa8] sm:$0xff]
    %v139 = vld [vmem:[#allocation3 + $0xb0] sm:$0xff]
    %v140 = vld [vmem:[#allocation3 + $0xb8] sm:$0xff]
    %v141 = vld [vmem:[#allocation3 + $0xc0] sm:$0xff]
    %v142 = vld [vmem:[#allocation3 + $0xc8] sm:$0xff]
    %v143 = vld [vmem:[#allocation3 + $0xd0] sm:$0xff]
    %v144 = vld [vmem:[#allocation3 + $0xd8] sm:$0xff]
    %v145 = vld [vmem:[#allocation3 + $0xe0] sm:$0xff]
    %v146 = vld [vmem:[#allocation3 + $0xe8] sm:$0xff]
    %v147 = vld [vmem:[#allocation3 + $0xf0] sm:$0xff]
    %v148 = vld [vmem:[#allocation3 + $0xf8] sm:$0xff]
    %v149 = vld [vmem:[#allocation3 + $0x100] sm:$0xff]
    %v150 = vld [vmem:[#allocation3 + $0x108] sm:$0xff]
    %v151 = vld [vmem:[#allocation3 + $0x110] sm:$0xff]
    %v152 = vld [vmem:[#allocation3 + $0x118] sm:$0xff]
    %v153 = vld [vmem:[#allocation3 + $0x120] sm:$0xff]
    %v154 = vld [vmem:[#allocation3 + $0x128] sm:$0xff]
    %v155 = vld [vmem:[#allocation3 + $0x130] sm:$0xff]
    %v156 = vld [vmem:[#allocation3 + $0x138] sm:$0xff]
    %v157 = vld [vmem:[#allocation3 + $0x140] sm:$0xff]
    %v158 = vld [vmem:[#allocation3 + $0x148] sm:$0xff]
    %v159 = vld [vmem:[#allocation3 + $0x150] sm:$0xff]
    %v160 = vld [vmem:[#allocation3 + $0x158] sm:$0xff]
    %v161 = vld [vmem:[#allocation3 + $0x160] sm:$0xff]
    %v162 = vld [vmem:[#allocation3 + $0x168] sm:$0xff]
    %v163 = vld [vmem:[#allocation3 + $0x170] sm:$0xff]
    %v164 = vld [vmem:[#allocation3 + $0x178] sm:$0xff]
    %v165 = vld [vmem:[#allocation3 + $0x180] sm:$0xff]
    %v166 = vld [vmem:[#allocation3 + $0x188] sm:$0xff]
    %v167 = vld [vmem:[#allocation3 + $0x190] sm:$0xff]
    %v168 = vld [vmem:[#allocation3 + $0x198] sm:$0xff]
    %v169 = vld [vmem:[#allocation3 + $0x1a0] sm:$0xff]
    %v170 = vld [vmem:[#allocation3 + $0x1a8] sm:$0xff]
    %v171 = vld [vmem:[#allocation3 + $0x1b0] sm:$0xff]
    %v172 = vld [vmem:[#allocation3 + $0x1b8] sm:$0xff]
    %v173 = vld [vmem:[#allocation3 + $0x1c0] sm:$0xff]
    %v174 = vld [vmem:[#allocation3 + $0x1c8] sm:$0xff]
    %v175 = vld [vmem:[#allocation3 + $0x1d0] sm:$0xff]
    %v176 = vld [vmem:[#allocation3 + $0x1d8] sm:$0xff]
    %v177 = vld [vmem:[#allocation3 + $0x1e0] sm:$0xff]
    %v178 = vld [vmem:[#allocation3 + $0x1e8] sm:$0xff]
    %v179 = vld [vmem:[#allocation3 + $0x1f0] sm:$0xff]
    %v180 = vld [vmem:[#allocation3 + $0x1f8] sm:$0xff]
    %182 = vset.pattern.permute.xlu0 0
    %183 = vperm.xlu0 %182, %v106
    %v184 = vpop.permute.xlu0 %183
    %v187 = vlaneseq
    %v188 = vshrl.u32 %v187, 7
    %v189 = vsub.s32 0, %v188
    %v190 = vrot.slane %v114, %v189
    %v191 = vlaneseq
    %v192 = vshrl.u32 %v191, 7
    %v193 = vsub.s32 1, %v192
    %v194 = vrot.slane %v114, %v193
    %v195 = vlaneseq
    %v196 = vshrl.u32 %v195, 7
    %v197 = vsub.s32 2, %v196
    %v198 = vrot.slane %v114, %v197
    %v199 = vlaneseq
    %v200 = vshrl.u32 %v199, 7
    %v201 = vsub.s32 3, %v200
    %v202 = vrot.slane %v114, %v201
    %v207 = vmul.f32 %v184, %v190
    %v208 = vmul.f32 %v184, %v194
    %v209 = vmul.f32 %v184, %v198
    %v210 = vmul.f32 %v184, %v202
    %212 = vset.pattern.permute.xlu0 0
    %213 = vperm.xlu0 %212, %v113
    %v214 = vpop.permute.xlu0 %213
    %v217 = vlaneseq
    %v218 = vshrl.u32 %v217, 7
    %v219 = vsub.s32 0, %v218
    %v220 = vrot.slane %v115, %v219
    %v221 = vlaneseq
    %v222 = vshrl.u32 %v221, 7
    %v223 = vsub.s32 1, %v222
    %v224 = vrot.slane %v115, %v223
    %v225 = vlaneseq
    %v226 = vshrl.u32 %v225, 7
    %v227 = vsub.s32 2, %v226
    %v228 = vrot.slane %v115, %v227
    %v229 = vlaneseq
    %v230 = vshrl.u32 %v229, 7
    %v231 = vsub.s32 3, %v230
    %v232 = vrot.slane %v115, %v231
    %v237 = vmul.f32 %v214, %v220
    %v238 = vmul.f32 %v214, %v224
    %v239 = vmul.f32 %v214, %v228
    %v240 = vmul.f32 %v214, %v232
    %v241 = vadd.f32 %v207, %v237
    %v242 = vadd.f32 %v208, %v238
    %v243 = vadd.f32 %v209, %v239
    %v244 = vadd.f32 %v210, %v240
    %v246 = vlaneseq
    %v247 = vshrl.u32 %v246, 7
    %v248 = vsub.s32 0, %v247
    %v249 = vrot.slane %v116, %v248
    %v250 = vlaneseq
    %v251 = vshrl.u32 %v250, 7
    %v252 = vsub.s32 1, %v251
    %v253 = vrot.slane %v116, %v252
    %v254 = vlaneseq
    %v255 = vshrl.u32 %v254, 7
    %v256 = vsub.s32 2, %v255
    %v257 = vrot.slane %v116, %v256
    %v258 = vlaneseq
    %v259 = vshrl.u32 %v258, 7
    %v260 = vsub.s32 3, %v259
    %v261 = vrot.slane %v116, %v260
    %v266 = vadd.f32 %v241, %v249
    %v267 = vadd.f32 %v242, %v253
    %v268 = vadd.f32 %v243, %v257
    %v269 = vadd.f32 %v244, %v261
    %270 = vmatprep.subr.mxu0 %v178
    %271 = vmatpush1.msra.mxu0 %v177
    %272 = vmatprep.subr.mxu0 %v174
    %273 = vmatpush1.msra.mxu0 %v173
    %274 = vmatprep.subr.mxu0 %v170
    %275 = vmatpush1.msra.mxu0 %v169
    %276 = vmatprep.subr.mxu0 %v166
    %277 = vmatpush1.msra.mxu0 %v165
    %278 = vmatprep.subr.mxu0 %v162
    %279 = vmatpush1.msra.mxu0 %v161
    %280 = vmatprep.subr.mxu0 %v158
    %281 = vmatpush1.msra.mxu0 %v157
    %282 = vmatprep.subr.mxu0 %v154
    %283 = vmatpush1.msra.mxu0 %v153
    %284 = vmatprep.subr.mxu0 %v150
    %285 = vmatpush1.msra.mxu0 %v149
    %286 = vmatprep.subr.mxu0 %v146
    %287 = vmatpush1.msra.mxu0 %v145
    %288 = vmatprep.subr.mxu0 %v142
    %289 = vmatpush1.msra.mxu0 %v141
    %290 = vmatprep.subr.mxu0 %v138
    %291 = vmatpush1.msra.mxu0 %v137
    %292 = vmatprep.subr.mxu0 %v134
    %293 = vmatpush1.msra.mxu0 %v133
    %294 = vmatprep.subr.mxu0 %v130
    %295 = vmatpush1.msra.mxu0 %v129
    %296 = vmatprep.subr.mxu0 %v126
    %297 = vmatpush1.msra.mxu0 %v125
    %298 = vmatprep.subr.mxu0 %v122
    %299 = vmatpush1.msra.mxu0 %v121
    %300 = vmatprep.subr.mxu0 %v118
    %301 = vmatpush1.msra.mxu0 %v117
    %302 = vmatprep.subr.mxu0 0.0
    %303 = vmatpush2.msra.mxu0 0.0
    %304 = vmatprep.subr.mxu0 0.0
    %305 = vmatpush2.msra.mxu0 0.0
    %306 = vmatprep.subr.mxu0 0.0
    %307 = vmatpush2.msra.mxu0 0.0
    %308 = vmatprep.subr.mxu0 0.0
    %309 = vmatpush2.msra.mxu0 0.0
    %310 = vmatprep.subr.mxu0 0.0
    %311 = vmatpush2.msra.mxu0 0.0
    %312 = vmatprep.subr.mxu0 0.0
    %313 = vmatpush2.msra.mxu0 0.0
    %314 = vmatprep.subr.mxu0 0.0
    %315 = vmatpush2.msra.mxu0 0.0
    %316 = vmatprep.subr.mxu0 0.0
    %317 = vmatpush2.msra.mxu0 0.0
    %318 = vmatprep.subr.mxu0 0.0
    %319 = vmatpush2.msra.mxu0 0.0
    %320 = vmatprep.subr.mxu0 0.0
    %321 = vmatpush2.msra.mxu0 0.0
    %322 = vmatprep.subr.mxu0 0.0
    %323 = vmatpush2.msra.mxu0 0.0
    %324 = vmatprep.subr.mxu0 0.0
    %325 = vmatpush2.msra.mxu0 0.0
    %326 = vmatprep.subr.mxu0 0.0
    %327 = vmatpush2.msra.mxu0 0.0
    %328 = vmatprep.subr.mxu0 0.0
    %329 = vmatpush2.msra.mxu0 0.0
    %330 = vmatprep.subr.mxu0 0.0
    %331 = vmatpush2.msra.mxu0 0.0
    %332 = vmatprep.subr.mxu0 0.0
    %333 = vmatpush2.msra.mxu0 0.0
    %334 = vmatprep.mubr.f32.mxu0 0.0
    %335 = vmatmul.mubr.f32.gmra.mxu0 0.0
    %v336 = vpop.f32.mrf.mxu0
    %v337 = vadd.f32 0.0, %v336
    %v338 = vpop.f32.mrf.mxu0
    %v339 = vadd.f32 0.0, %v338
    %340 = vdwg.mxu0
    %341 = vmatprep.subr.mxu0 %v180
    %342 = vmatpush1.msra.mxu0 %v179
    %343 = vmatprep.subr.mxu0 %v176
    %344 = vmatpush1.msra.mxu0 %v175
    %345 = vmatprep.subr.mxu0 %v172
    %346 = vmatpush1.msra.mxu0 %v171
    %347 = vmatprep.subr.mxu0 %v168
    %348 = vmatpush1.msra.mxu0 %v167
    %349 = vmatprep.subr.mxu0 %v164
    %350 = vmatpush1.msra.mxu0 %v163
    %351 = vmatprep.subr.mxu0 %v160
    %352 = vmatpush1.msra.mxu0 %v159
    %353 = vmatprep.subr.mxu0 %v156
    %354 = vmatpush1.msra.mxu0 %v155
    %355 = vmatprep.subr.mxu0 %v152
    %356 = vmatpush1.msra.mxu0 %v151
    %357 = vmatprep.subr.mxu0 %v148
    %358 = vmatpush1.msra.mxu0 %v147
    %359 = vmatprep.subr.mxu0 %v144
    %360 = vmatpush1.msra.mxu0 %v143
    %361 = vmatprep.subr.mxu0 %v140
    %362 = vmatpush1.msra.mxu0 %v139
    %363 = vmatprep.subr.mxu0 %v136
    %364 = vmatpush1.msra.mxu0 %v135
    %365 = vmatprep.subr.mxu0 %v132
    %366 = vmatpush1.msra.mxu0 %v131
    %367 = vmatprep.subr.mxu0 %v128
    %368 = vmatpush1.msra.mxu0 %v127
    %369 = vmatprep.subr.mxu0 %v124
    %370 = vmatpush1.msra.mxu0 %v123
    %371 = vmatprep.subr.mxu0 %v120
    %372 = vmatpush1.msra.mxu0 %v119
    %373 = vmatprep.subr.mxu0 0.0
    %374 = vmatpush2.msra.mxu0 0.0
    %375 = vmatprep.subr.mxu0 0.0
    %376 = vmatpush2.msra.mxu0 0.0
    %377 = vmatprep.subr.mxu0 0.0
    %378 = vmatpush2.msra.mxu0 0.0
    %379 = vmatprep.subr.mxu0 0.0
    %380 = vmatpush2.msra.mxu0 0.0
    %381 = vmatprep.subr.mxu0 0.0
    %382 = vmatpush2.msra.mxu0 0.0
    %383 = vmatprep.subr.mxu0 0.0
    %384 = vmatpush2.msra.mxu0 0.0
    %385 = vmatprep.subr.mxu0 0.0
    %386 = vmatpush2.msra.mxu0 0.0
    %387 = vmatprep.subr.mxu0 0.0
    %388 = vmatpush2.msra.mxu0 0.0
    %389 = vmatprep.subr.mxu0 0.0
    %390 = vmatpush2.msra.mxu0 0.0
    %391 = vmatprep.subr.mxu0 0.0
    %392 = vmatpush2.msra.mxu0 0.0
    %393 = vmatprep.subr.mxu0 0.0
    %394 = vmatpush2.msra.mxu0 0.0
    %395 = vmatprep.subr.mxu0 0.0
    %396 = vmatpush2.msra.mxu0 0.0
    %397 = vmatprep.subr.mxu0 0.0
    %398 = vmatpush2.msra.mxu0 0.0
    %399 = vmatprep.subr.mxu0 0.0
    %400 = vmatpush2.msra.mxu0 0.0
    %401 = vmatprep.subr.mxu0 0.0
    %402 = vmatpush2.msra.mxu0 0.0
    %403 = vmatprep.subr.mxu0 0.0
    %404 = vmatpush2.msra.mxu0 0.0
    %405 = vmatprep.mubr.f32.mxu0 0.0
    %406 = vmatmul.mubr.f32.gmra.mxu0 0.0
    %v407 = vpop.f32.mrf.mxu0
    %v408 = vadd.f32 0.0, %v407
    %v409 = vpop.f32.mrf.mxu0
    %v410 = vadd.f32 0.0, %v409
    %411 = vdwg.mxu0
    %v412 = vadd.f32 %v266, %v337
    %v413 = vadd.f32 %v267, %v339
    %v414 = vadd.f32 %v268, %v408
    %v415 = vadd.f32 %v269, %v410
    %v416 = vxor.u32 %v412, 2147483648
    %v417 = vxor.u32 %v413, 2147483648
    %v418 = vxor.u32 %v414, 2147483648
    %v419 = vmul.f32 %v416, 1.442695
    %v420 = vpow.pop %v419
    %v421 = vmul.f32 %v417, 1.442695
    %v422 = vpow.pop %v421
    %v423 = vmul.f32 %v418, 1.442695
    %v424 = vpow.pop %v423
    %v425 = vadd.f32 %v420, 1.0
    %v426 = vadd.f32 %v422, 1.0
    %v427 = vadd.f32 %v424, 1.0
    %v428 = vrcp.pop %v425
    %v429 = vmul.f32 1.0, %v428
    %v430 = vrcp.pop %v426
    %v431 = vmul.f32 1.0, %v430
    %v432 = vrcp.pop %v427
    %v433 = vmul.f32 1.0, %v432
    %v434 = vtanh.pop %v415
    %v435 = vmul.f32 %v431, 0.0
    %v436 = vmul.f32 %v429, %v434
    %v437 = vadd.f32 %v435, %v436
    %v438 = vtanh.pop %v437
    %v439 = vmul.f32 %v433, %v438
    %440 = vst [vmem:[#allocation2] sm:$0xff] %v439
    %442 = vset.pattern.permute.xlu0 0
    %443 = vperm.xlu0 %442, %v107
    %v444 = vpop.permute.xlu0 %443
    %v446 = vmul.f32 %v444, %v190
    %v447 = vmul.f32 %v444, %v194
    %v448 = vmul.f32 %v444, %v198
    %v449 = vmul.f32 %v444, %v202
    %451 = vset.pattern.permute.xlu0 0
    %452 = vperm.xlu0 %451, %v112
    %v453 = vpop.permute.xlu0 %452
    %v455 = vmul.f32 %v453, %v220
    %v456 = vmul.f32 %v453, %v224
    %v457 = vmul.f32 %v453, %v228
    %v458 = vmul.f32 %v453, %v232
    %v459 = vadd.f32 %v446, %v455
    %v460 = vadd.f32 %v447, %v456
    %v461 = vadd.f32 %v448, %v457
    %v462 = vadd.f32 %v449, %v458
    %v463 = vadd.f32 %v459, %v249
    %v464 = vadd.f32 %v460, %v253
    %v465 = vadd.f32 %v461, %v257
    %v466 = vadd.f32 %v462, %v261
    %467 = vmatprep.subr.mxu0 %v178
    %468 = vmatpush1.msra.mxu0 %v177
    %469 = vmatprep.subr.mxu0 %v174
    %470 = vmatpush1.msra.mxu0 %v173
    %471 = vmatprep.subr.mxu0 %v170
    %472 = vmatpush1.msra.mxu0 %v169
    %473 = vmatprep.subr.mxu0 %v166
    %474 = vmatpush1.msra.mxu0 %v165
    %475 = vmatprep.subr.mxu0 %v162
    %476 = vmatpush1.msra.mxu0 %v161
    %477 = vmatprep.subr.mxu0 %v158
    %478 = vmatpush1.msra.mxu0 %v157
    %479 = vmatprep.subr.mxu0 %v154
    %480 = vmatpush1.msra.mxu0 %v153
    %481 = vmatprep.subr.mxu0 %v150
    %482 = vmatpush1.msra.mxu0 %v149
    %483 = vmatprep.subr.mxu0 %v146
    %484 = vmatpush1.msra.mxu0 %v145
    %485 = vmatprep.subr.mxu0 %v142
    %486 = vmatpush1.msra.mxu0 %v141
    %487 = vmatprep.subr.mxu0 %v138
    %488 = vmatpush1.msra.mxu0 %v137
    %489 = vmatprep.subr.mxu0 %v134
    %490 = vmatpush1.msra.mxu0 %v133
    %491 = vmatprep.subr.mxu0 %v130
    %492 = vmatpush1.msra.mxu0 %v129
    %493 = vmatprep.subr.mxu0 %v126
    %494 = vmatpush1.msra.mxu0 %v125
    %495 = vmatprep.subr.mxu0 %v122
    %496 = vmatpush1.msra.mxu0 %v121
    %497 = vmatprep.subr.mxu0 %v118
    %498 = vmatpush1.msra.mxu0 %v117
    %499 = vmatprep.subr.mxu0 0.0
    %500 = vmatpush2.msra.mxu0 0.0
    %501 = vmatprep.subr.mxu0 0.0
    %502 = vmatpush2.msra.mxu0 0.0
    %503 = vmatprep.subr.mxu0 0.0
    %504 = vmatpush2.msra.mxu0 0.0
    %505 = vmatprep.subr.mxu0 0.0
    %506 = vmatpush2.msra.mxu0 0.0
    %507 = vmatprep.subr.mxu0 0.0
    %508 = vmatpush2.msra.mxu0 0.0
    %509 = vmatprep.subr.mxu0 0.0
    %510 = vmatpush2.msra.mxu0 0.0
    %511 = vmatprep.subr.mxu0 0.0
    %512 = vmatpush2.msra.mxu0 0.0
    %513 = vmatprep.subr.mxu0 0.0
    %514 = vmatpush2.msra.mxu0 0.0
    %515 = vmatprep.subr.mxu0 0.0
    %516 = vmatpush2.msra.mxu0 0.0
    %517 = vmatprep.subr.mxu0 0.0
    %518 = vmatpush2.msra.mxu0 0.0
    %519 = vmatprep.subr.mxu0 0.0
    %520 = vmatpush2.msra.mxu0 0.0
    %521 = vmatprep.subr.mxu0 0.0
    %522 = vmatpush2.msra.mxu0 0.0
    %523 = vmatprep.subr.mxu0 0.0
    %524 = vmatpush2.msra.mxu0 0.0
    %525 = vmatprep.subr.mxu0 0.0
    %526 = vmatpush2.msra.mxu0 0.0
    %527 = vmatprep.subr.mxu0 0.0
    %528 = vmatpush2.msra.mxu0 0.0
    %529 = vmatprep.subr.mxu0 0.0
    %530 = vmatpush2.msra.mxu0 0.0
    %531 = vmatprep.mubr.f32.mxu0 0.0
    %532 = vmatmul.mubr.f32.gmra.mxu0 %v439
    %v533 = vpop.f32.mrf.mxu0
    %v534 = vadd.f32 0.0, %v533
    %v535 = vpop.f32.mrf.mxu0
    %v536 = vadd.f32 0.0, %v535
    %537 = vdwg.mxu0
    %538 = vmatprep.subr.mxu0 %v180
    %539 = vmatpush1.msra.mxu0 %v179
    %540 = vmatprep.subr.mxu0 %v176
    %541 = vmatpush1.msra.mxu0 %v175
    %542 = vmatprep.subr.mxu0 %v172
    %543 = vmatpush1.msra.mxu0 %v171
    %544 = vmatprep.subr.mxu0 %v168
    %545 = vmatpush1.msra.mxu0 %v167
    %546 = vmatprep.subr.mxu0 %v164
    %547 = vmatpush1.msra.mxu0 %v163
    %548 = vmatprep.subr.mxu0 %v160
    %549 = vmatpush1.msra.mxu0 %v159
    %550 = vmatprep.subr.mxu0 %v156
    %551 = vmatpush1.msra.mxu0 %v155
    %552 = vmatprep.subr.mxu0 %v152
    %553 = vmatpush1.msra.mxu0 %v151
    %554 = vmatprep.subr.mxu0 %v148
    %555 = vmatpush1.msra.mxu0 %v147
    %556 = vmatprep.subr.mxu0 %v144
    %557 = vmatpush1.msra.mxu0 %v143
    %558 = vmatprep.subr.mxu0 %v140
    %559 = vmatpush1.msra.mxu0 %v139
    %560 = vmatprep.subr.mxu0 %v136
    %561 = vmatpush1.msra.mxu0 %v135
    %562 = vmatprep.subr.mxu0 %v132
    %563 = vmatpush1.msra.mxu0 %v131
    %564 = vmatprep.subr.mxu0 %v128
    %565 = vmatpush1.msra.mxu0 %v127
    %566 = vmatprep.subr.mxu0 %v124
    %567 = vmatpush1.msra.mxu0 %v123
    %568 = vmatprep.subr.mxu0 %v120
    %569 = vmatpush1.msra.mxu0 %v119
    %570 = vmatprep.subr.mxu0 0.0
    %571 = vmatpush2.msra.mxu0 0.0
    %572 = vmatprep.subr.mxu0 0.0
    %573 = vmatpush2.msra.mxu0 0.0
    %574 = vmatprep.subr.mxu0 0.0
    %575 = vmatpush2.msra.mxu0 0.0
    %576 = vmatprep.subr.mxu0 0.0
    %577 = vmatpush2.msra.mxu0 0.0
    %578 = vmatprep.subr.mxu0 0.0
    %579 = vmatpush2.msra.mxu0 0.0
    %580 = vmatprep.subr.mxu0 0.0
    %581 = vmatpush2.msra.mxu0 0.0
    %582 = vmatprep.subr.mxu0 0.0
    %583 = vmatpush2.msra.mxu0 0.0
    %584 = vmatprep.subr.mxu0 0.0
    %585 = vmatpush2.msra.mxu0 0.0
    %586 = vmatprep.subr.mxu0 0.0
    %587 = vmatpush2.msra.mxu0 0.0
    %588 = vmatprep.subr.mxu0 0.0
    %589 = vmatpush2.msra.mxu0 0.0
    %590 = vmatprep.subr.mxu0 0.0
    %591 = vmatpush2.msra.mxu0 0.0
    %592 = vmatprep.subr.mxu0 0.0
    %593 = vmatpush2.msra.mxu0 0.0
    %594 = vmatprep.subr.mxu0 0.0
    %595 = vmatpush2.msra.mxu0 0.0
    %596 = vmatprep.subr.mxu0 0.0
    %597 = vmatpush2.msra.mxu0 0.0
    %598 = vmatprep.subr.mxu0 0.0
    %599 = vmatpush2.msra.mxu0 0.0
    %600 = vmatprep.subr.mxu0 0.0
    %601 = vmatpush2.msra.mxu0 0.0
    %602 = vmatprep.mubr.f32.mxu0 0.0
    %603 = vmatmul.mubr.f32.gmra.mxu0 %v439
    %v604 = vpop.f32.mrf.mxu0
    %v605 = vadd.f32 0.0, %v604
    %v606 = vpop.f32.mrf.mxu0
    %v607 = vadd.f32 0.0, %v606
    %608 = vdwg.mxu0
    %v609 = vadd.f32 %v463, %v534
    %v610 = vadd.f32 %v464, %v536
    %v611 = vadd.f32 %v465, %v605
    %v612 = vadd.f32 %v466, %v607
    %v613 = vxor.u32 %v609, 2147483648
    %v614 = vxor.u32 %v610, 2147483648
    %v615 = vxor.u32 %v611, 2147483648
    %v616 = vmul.f32 %v613, 1.442695
    %v617 = vpow.pop %v616
    %v618 = vmul.f32 %v614, 1.442695
    %v619 = vpow.pop %v618
    %v620 = vmul.f32 %v615, 1.442695
    %v621 = vpow.pop %v620
    %v622 = vadd.f32 %v617, 1.0
    %v623 = vadd.f32 %v619, 1.0
    %v624 = vadd.f32 %v621, 1.0
    %v625 = vrcp.pop %v622
    %v626 = vmul.f32 1.0, %v625
    %v627 = vrcp.pop %v623
    %v628 = vmul.f32 1.0, %v627
    %v629 = vrcp.pop %v624
    %v630 = vmul.f32 1.0, %v629
    %v631 = vtanh.pop %v612
    %v632 = vmul.f32 %v628, %v437
    %v633 = vmul.f32 %v626, %v631
    %v634 = vadd.f32 %v632, %v633
    %v635 = vtanh.pop %v634
    %v636 = vmul.f32 %v630, %v635
    %637 = vst [vmem:[#allocation2 + $0x8] sm:$0xff] %v636
    %639 = vset.pattern.permute.xlu0 0
    %640 = vperm.xlu0 %639, %v108
    %v641 = vpop.permute.xlu0 %640
    %v643 = vmul.f32 %v641, %v190
    %v644 = vmul.f32 %v641, %v194
    %v645 = vmul.f32 %v641, %v198
    %v646 = vmul.f32 %v641, %v202
    %648 = vset.pattern.permute.xlu0 0
    %649 = vperm.xlu0 %648, %v111
    %v650 = vpop.permute.xlu0 %649
    %v652 = vmul.f32 %v650, %v220
    %v653 = vmul.f32 %v650, %v224
    %v654 = vmul.f32 %v650, %v228
    %v655 = vmul.f32 %v650, %v232
    %v656 = vadd.f32 %v643, %v652
    %v657 = vadd.f32 %v644, %v653
    %v658 = vadd.f32 %v645, %v654
    %v659 = vadd.f32 %v646, %v655
    %v660 = vadd.f32 %v656, %v249
    %v661 = vadd.f32 %v657, %v253
    %v662 = vadd.f32 %v658, %v257
    %v663 = vadd.f32 %v659, %v261
    %664 = vmatprep.subr.mxu0 %v178
    %665 = vmatpush1.msra.mxu0 %v177
    %666 = vmatprep.subr.mxu0 %v174
    %667 = vmatpush1.msra.mxu0 %v173
    %668 = vmatprep.subr.mxu0 %v170
    %669 = vmatpush1.msra.mxu0 %v169
    %670 = vmatprep.subr.mxu0 %v166
    %671 = vmatpush1.msra.mxu0 %v165
    %672 = vmatprep.subr.mxu0 %v162
    %673 = vmatpush1.msra.mxu0 %v161
    %674 = vmatprep.subr.mxu0 %v158
    %675 = vmatpush1.msra.mxu0 %v157
    %676 = vmatprep.subr.mxu0 %v154
    %677 = vmatpush1.msra.mxu0 %v153
    %678 = vmatprep.subr.mxu0 %v150
    %679 = vmatpush1.msra.mxu0 %v149
    %680 = vmatprep.subr.mxu0 %v146
    %681 = vmatpush1.msra.mxu0 %v145
    %682 = vmatprep.subr.mxu0 %v142
    %683 = vmatpush1.msra.mxu0 %v141
    %684 = vmatprep.subr.mxu0 %v138
    %685 = vmatpush1.msra.mxu0 %v137
    %686 = vmatprep.subr.mxu0 %v134
    %687 = vmatpush1.msra.mxu0 %v133
    %688 = vmatprep.subr.mxu0 %v130
    %689 = vmatpush1.msra.mxu0 %v129
    %690 = vmatprep.subr.mxu0 %v126
    %691 = vmatpush1.msra.mxu0 %v125
    %692 = vmatprep.subr.mxu0 %v122
    %693 = vmatpush1.msra.mxu0 %v121
    %694 = vmatprep.subr.mxu0 %v118
    %695 = vmatpush1.msra.mxu0 %v117
    %696 = vmatprep.subr.mxu0 0.0
    %697 = vmatpush2.msra.mxu0 0.0
    %698 = vmatprep.subr.mxu0 0.0
    %699 = vmatpush2.msra.mxu0 0.0
    %700 = vmatprep.subr.mxu0 0.0
    %701 = vmatpush2.msra.mxu0 0.0
    %702 = vmatprep.subr.mxu0 0.0
    %703 = vmatpush2.msra.mxu0 0.0
    %704 = vmatprep.subr.mxu0 0.0
    %705 = vmatpush2.msra.mxu0 0.0
    %706 = vmatprep.subr.mxu0 0.0
    %707 = vmatpush2.msra.mxu0 0.0
    %708 = vmatprep.subr.mxu0 0.0
    %709 = vmatpush2.msra.mxu0 0.0
    %710 = vmatprep.subr.mxu0 0.0
    %711 = vmatpush2.msra.mxu0 0.0
    %712 = vmatprep.subr.mxu0 0.0
    %713 = vmatpush2.msra.mxu0 0.0
    %714 = vmatprep.subr.mxu0 0.0
    %715 = vmatpush2.msra.mxu0 0.0
    %716 = vmatprep.subr.mxu0 0.0
    %717 = vmatpush2.msra.mxu0 0.0
    %718 = vmatprep.subr.mxu0 0.0
    %719 = vmatpush2.msra.mxu0 0.0
    %720 = vmatprep.subr.mxu0 0.0
    %721 = vmatpush2.msra.mxu0 0.0
    %722 = vmatprep.subr.mxu0 0.0
    %723 = vmatpush2.msra.mxu0 0.0
    %724 = vmatprep.subr.mxu0 0.0
    %725 = vmatpush2.msra.mxu0 0.0
    %726 = vmatprep.subr.mxu0 0.0
    %727 = vmatpush2.msra.mxu0 0.0
    %728 = vmatprep.mubr.f32.mxu0 0.0
    %729 = vmatmul.mubr.f32.gmra.mxu0 %v636
    %v730 = vpop.f32.mrf.mxu0
    %v731 = vadd.f32 0.0, %v730
    %v732 = vpop.f32.mrf.mxu0
    %v733 = vadd.f32 0.0, %v732
    %734 = vdwg.mxu0
    %735 = vmatprep.subr.mxu0 %v180
    %736 = vmatpush1.msra.mxu0 %v179
    %737 = vmatprep.subr.mxu0 %v176
    %738 = vmatpush1.msra.mxu0 %v175
    %739 = vmatprep.subr.mxu0 %v172
    %740 = vmatpush1.msra.mxu0 %v171
    %741 = vmatprep.subr.mxu0 %v168
    %742 = vmatpush1.msra.mxu0 %v167
    %743 = vmatprep.subr.mxu0 %v164
    %744 = vmatpush1.msra.mxu0 %v163
    %745 = vmatprep.subr.mxu0 %v160
    %746 = vmatpush1.msra.mxu0 %v159
    %747 = vmatprep.subr.mxu0 %v156
    %748 = vmatpush1.msra.mxu0 %v155
    %749 = vmatprep.subr.mxu0 %v152
    %750 = vmatpush1.msra.mxu0 %v151
    %751 = vmatprep.subr.mxu0 %v148
    %752 = vmatpush1.msra.mxu0 %v147
    %753 = vmatprep.subr.mxu0 %v144
    %754 = vmatpush1.msra.mxu0 %v143
    %755 = vmatprep.subr.mxu0 %v140
    %756 = vmatpush1.msra.mxu0 %v139
    %757 = vmatprep.subr.mxu0 %v136
    %758 = vmatpush1.msra.mxu0 %v135
    %759 = vmatprep.subr.mxu0 %v132
    %760 = vmatpush1.msra.mxu0 %v131
    %761 = vmatprep.subr.mxu0 %v128
    %762 = vmatpush1.msra.mxu0 %v127
    %763 = vmatprep.subr.mxu0 %v124
    %764 = vmatpush1.msra.mxu0 %v123
    %765 = vmatprep.subr.mxu0 %v120
    %766 = vmatpush1.msra.mxu0 %v119
    %767 = vmatprep.subr.mxu0 0.0
    %768 = vmatpush2.msra.mxu0 0.0
    %769 = vmatprep.subr.mxu0 0.0
    %770 = vmatpush2.msra.mxu0 0.0
    %771 = vmatprep.subr.mxu0 0.0
    %772 = vmatpush2.msra.mxu0 0.0
    %773 = vmatprep.subr.mxu0 0.0
    %774 = vmatpush2.msra.mxu0 0.0
    %775 = vmatprep.subr.mxu0 0.0
    %776 = vmatpush2.msra.mxu0 0.0
    %777 = vmatprep.subr.mxu0 0.0
    %778 = vmatpush2.msra.mxu0 0.0
    %779 = vmatprep.subr.mxu0 0.0
    %780 = vmatpush2.msra.mxu0 0.0
    %781 = vmatprep.subr.mxu0 0.0
    %782 = vmatpush2.msra.mxu0 0.0
    %783 = vmatprep.subr.mxu0 0.0
    %784 = vmatpush2.msra.mxu0 0.0
    %785 = vmatprep.subr.mxu0 0.0
    %786 = vmatpush2.msra.mxu0 0.0
    %787 = vmatprep.subr.mxu0 0.0
    %788 = vmatpush2.msra.mxu0 0.0
    %789 = vmatprep.subr.mxu0 0.0
    %790 = vmatpush2.msra.mxu0 0.0
    %791 = vmatprep.subr.mxu0 0.0
    %792 = vmatpush2.msra.mxu0 0.0
    %793 = vmatprep.subr.mxu0 0.0
    %794 = vmatpush2.msra.mxu0 0.0
    %795 = vmatprep.subr.mxu0 0.0
    %796 = vmatpush2.msra.mxu0 0.0
    %797 = vmatprep.subr.mxu0 0.0
    %798 = vmatpush2.msra.mxu0 0.0
    %799 = vmatprep.mubr.f32.mxu0 0.0
    %800 = vmatmul.mubr.f32.gmra.mxu0 %v636
    %v801 = vpop.f32.mrf.mxu0
    %v802 = vadd.f32 0.0, %v801
    %v803 = vpop.f32.mrf.mxu0
    %v804 = vadd.f32 0.0, %v803
    %805 = vdwg.mxu0
    %v806 = vadd.f32 %v660, %v731
    %v807 = vadd.f32 %v661, %v733
    %v808 = vadd.f32 %v662, %v802
    %v809 = vadd.f32 %v663, %v804
    %v810 = vxor.u32 %v806, 2147483648
    %v811 = vxor.u32 %v807, 2147483648
    %v812 = vxor.u32 %v808, 2147483648
    %v813 = vmul.f32 %v810, 1.442695
    %v814 = vpow.pop %v813
    %v815 = vmul.f32 %v811, 1.442695
    %v816 = vpow.pop %v815
    %v817 = vmul.f32 %v812, 1.442695
    %v818 = vpow.pop %v817
    %v819 = vadd.f32 %v814, 1.0
    %v820 = vadd.f32 %v816, 1.0
    %v821 = vadd.f32 %v818, 1.0
    %v822 = vrcp.pop %v819
    %v823 = vmul.f32 1.0, %v822
    %v824 = vrcp.pop %v820
    %v825 = vmul.f32 1.0, %v824
    %v826 = vrcp.pop %v821
    %v827 = vmul.f32 1.0, %v826
    %v828 = vtanh.pop %v809
    %v829 = vmul.f32 %v825, %v634
    %v830 = vmul.f32 %v823, %v828
    %v831 = vadd.f32 %v829, %v830
    %v832 = vtanh.pop %v831
    %v833 = vmul.f32 %v827, %v832
    %834 = vst [vmem:[#allocation2 + $0x10] sm:$0xff] %v833
    %836 = vset.pattern.permute.xlu0 0
    %837 = vperm.xlu0 %836, %v109
    %v838 = vpop.permute.xlu0 %837
    %v840 = vmul.f32 %v838, %v190
    %v841 = vmul.f32 %v838, %v194
    %v842 = vmul.f32 %v838, %v198
    %v843 = vmul.f32 %v838, %v202
    %845 = vset.pattern.permute.xlu0 0
    %846 = vperm.xlu0 %845, %v110
    %v847 = vpop.permute.xlu0 %846
    %v849 = vmul.f32 %v847, %v220
    %v850 = vmul.f32 %v847, %v224
    %v851 = vmul.f32 %v847, %v228
    %v852 = vmul.f32 %v847, %v232
    %v853 = vadd.f32 %v840, %v849
    %v854 = vadd.f32 %v841, %v850
    %v855 = vadd.f32 %v842, %v851
    %v856 = vadd.f32 %v843, %v852
    %v857 = vadd.f32 %v853, %v249
    %v858 = vadd.f32 %v854, %v253
    %v859 = vadd.f32 %v855, %v257
    %v860 = vadd.f32 %v856, %v261
    %861 = vmatprep.subr.mxu0 %v178
    %862 = vmatpush1.msra.mxu0 %v177
    %863 = vmatprep.subr.mxu0 %v174
    %864 = vmatpush1.msra.mxu0 %v173
    %865 = vmatprep.subr.mxu0 %v170
    %866 = vmatpush1.msra.mxu0 %v169
    %867 = vmatprep.subr.mxu0 %v166
    %868 = vmatpush1.msra.mxu0 %v165
    %869 = vmatprep.subr.mxu0 %v162
    %870 = vmatpush1.msra.mxu0 %v161
    %871 = vmatprep.subr.mxu0 %v158
    %872 = vmatpush1.msra.mxu0 %v157
    %873 = vmatprep.subr.mxu0 %v154
    %874 = vmatpush1.msra.mxu0 %v153
    %875 = vmatprep.subr.mxu0 %v150
    %876 = vmatpush1.msra.mxu0 %v149
    %877 = vmatprep.subr.mxu0 %v146
    %878 = vmatpush1.msra.mxu0 %v145
    %879 = vmatprep.subr.mxu0 %v142
    %880 = vmatpush1.msra.mxu0 %v141
    %881 = vmatprep.subr.mxu0 %v138
    %882 = vmatpush1.msra.mxu0 %v137
    %883 = vmatprep.subr.mxu0 %v134
    %884 = vmatpush1.msra.mxu0 %v133
    %885 = vmatprep.subr.mxu0 %v130
    %886 = vmatpush1.msra.mxu0 %v129
    %887 = vmatprep.subr.mxu0 %v126
    %888 = vmatpush1.msra.mxu0 %v125
    %889 = vmatprep.subr.mxu0 %v122
    %890 = vmatpush1.msra.mxu0 %v121
    %891 = vmatprep.subr.mxu0 %v118
    %892 = vmatpush1.msra.mxu0 %v117
    %893 = vmatprep.subr.mxu0 0.0
    %894 = vmatpush2.msra.mxu0 0.0
    %895 = vmatprep.subr.mxu0 0.0
    %896 = vmatpush2.msra.mxu0 0.0
    %897 = vmatprep.subr.mxu0 0.0
    %898 = vmatpush2.msra.mxu0 0.0
    %899 = vmatprep.subr.mxu0 0.0
    %900 = vmatpush2.msra.mxu0 0.0
    %901 = vmatprep.subr.mxu0 0.0
    %902 = vmatpush2.msra.mxu0 0.0
    %903 = vmatprep.subr.mxu0 0.0
    %904 = vmatpush2.msra.mxu0 0.0
    %905 = vmatprep.subr.mxu0 0.0
    %906 = vmatpush2.msra.mxu0 0.0
    %907 = vmatprep.subr.mxu0 0.0
    %908 = vmatpush2.msra.mxu0 0.0
    %909 = vmatprep.subr.mxu0 0.0
    %910 = vmatpush2.msra.mxu0 0.0
    %911 = vmatprep.subr.mxu0 0.0
    %912 = vmatpush2.msra.mxu0 0.0
    %913 = vmatprep.subr.mxu0 0.0
    %914 = vmatpush2.msra.mxu0 0.0
    %915 = vmatprep.subr.mxu0 0.0
    %916 = vmatpush2.msra.mxu0 0.0
    %917 = vmatprep.subr.mxu0 0.0
    %918 = vmatpush2.msra.mxu0 0.0
    %919 = vmatprep.subr.mxu0 0.0
    %920 = vmatpush2.msra.mxu0 0.0
    %921 = vmatprep.subr.mxu0 0.0
    %922 = vmatpush2.msra.mxu0 0.0
    %923 = vmatprep.subr.mxu0 0.0
    %924 = vmatpush2.msra.mxu0 0.0
    %925 = vmatprep.mubr.f32.mxu0 0.0
    %926 = vmatmul.mubr.f32.gmra.mxu0 %v833
    %v927 = vpop.f32.mrf.mxu0
    %v928 = vadd.f32 0.0, %v927
    %v929 = vpop.f32.mrf.mxu0
    %v930 = vadd.f32 0.0, %v929
    %931 = vdwg.mxu0
    %932 = vmatprep.subr.mxu0 %v180
    %933 = vmatpush1.msra.mxu0 %v179
    %934 = vmatprep.subr.mxu0 %v176
    %935 = vmatpush1.msra.mxu0 %v175
    %936 = vmatprep.subr.mxu0 %v172
    %937 = vmatpush1.msra.mxu0 %v171
    %938 = vmatprep.subr.mxu0 %v168
    %939 = vmatpush1.msra.mxu0 %v167
    %940 = vmatprep.subr.mxu0 %v164
    %941 = vmatpush1.msra.mxu0 %v163
    %942 = vmatprep.subr.mxu0 %v160
    %943 = vmatpush1.msra.mxu0 %v159
    %944 = vmatprep.subr.mxu0 %v156
    %945 = vmatpush1.msra.mxu0 %v155
    %946 = vmatprep.subr.mxu0 %v152
    %947 = vmatpush1.msra.mxu0 %v151
    %948 = vmatprep.subr.mxu0 %v148
    %949 = vmatpush1.msra.mxu0 %v147
    %950 = vmatprep.subr.mxu0 %v144
    %951 = vmatpush1.msra.mxu0 %v143
    %952 = vmatprep.subr.mxu0 %v140
    %953 = vmatpush1.msra.mxu0 %v139
    %954 = vmatprep.subr.mxu0 %v136
    %955 = vmatpush1.msra.mxu0 %v135
    %956 = vmatprep.subr.mxu0 %v132
    %957 = vmatpush1.msra.mxu0 %v131
    %958 = vmatprep.subr.mxu0 %v128
    %959 = vmatpush1.msra.mxu0 %v127
    %960 = vmatprep.subr.mxu0 %v124
    %961 = vmatpush1.msra.mxu0 %v123
    %962 = vmatprep.subr.mxu0 %v120
    %963 = vmatpush1.msra.mxu0 %v119
    %964 = vmatprep.subr.mxu0 0.0
    %965 = vmatpush2.msra.mxu0 0.0
    %966 = vmatprep.subr.mxu0 0.0
    %967 = vmatpush2.msra.mxu0 0.0
    %968 = vmatprep.subr.mxu0 0.0
    %969 = vmatpush2.msra.mxu0 0.0
    %970 = vmatprep.subr.mxu0 0.0
    %971 = vmatpush2.msra.mxu0 0.0
    %972 = vmatprep.subr.mxu0 0.0
    %973 = vmatpush2.msra.mxu0 0.0
    %974 = vmatprep.subr.mxu0 0.0
    %975 = vmatpush2.msra.mxu0 0.0
    %976 = vmatprep.subr.mxu0 0.0
    %977 = vmatpush2.msra.mxu0 0.0
    %978 = vmatprep.subr.mxu0 0.0
    %979 = vmatpush2.msra.mxu0 0.0
    %980 = vmatprep.subr.mxu0 0.0
    %981 = vmatpush2.msra.mxu0 0.0
    %982 = vmatprep.subr.mxu0 0.0
    %983 = vmatpush2.msra.mxu0 0.0
    %984 = vmatprep.subr.mxu0 0.0
    %985 = vmatpush2.msra.mxu0 0.0
    %986 = vmatprep.subr.mxu0 0.0
    %987 = vmatpush2.msra.mxu0 0.0
    %988 = vmatprep.subr.mxu0 0.0
    %989 = vmatpush2.msra.mxu0 0.0
    %990 = vmatprep.subr.mxu0 0.0
    %991 = vmatpush2.msra.mxu0 0.0
    %992 = vmatprep.subr.mxu0 0.0
    %993 = vmatpush2.msra.mxu0 0.0
    %994 = vmatprep.subr.mxu0 0.0
    %995 = vmatpush2.msra.mxu0 0.0
    %996 = vmatprep.mubr.f32.mxu0 0.0
    %997 = vmatmul.mubr.f32.gmra.mxu0 %v833
    %v998 = vpop.f32.mrf.mxu0
    %v999 = vadd.f32 0.0, %v998
    %v1000 = vpop.f32.mrf.mxu0
    %v1001 = vadd.f32 0.0, %v1000
    %1002 = vdwg.mxu0
    %v1003 = vadd.f32 %v857, %v928
    %v1004 = vadd.f32 %v858, %v930
    %v1005 = vadd.f32 %v859, %v999
    %v1006 = vadd.f32 %v860, %v1001
    %v1007 = vxor.u32 %v1003, 2147483648
    %v1008 = vxor.u32 %v1004, 2147483648
    %v1009 = vxor.u32 %v1005, 2147483648
    %v1010 = vmul.f32 %v1007, 1.442695
    %v1011 = vpow.pop %v1010
    %v1012 = vmul.f32 %v1008, 1.442695
    %v1013 = vpow.pop %v1012
    %v1014 = vmul.f32 %v1009, 1.442695
    %v1015 = vpow.pop %v1014
    %v1016 = vadd.f32 %v1011, 1.0
    %v1017 = vadd.f32 %v1013, 1.0
    %v1018 = vadd.f32 %v1015, 1.0
    %v1019 = vrcp.pop %v1016
    %v1020 = vmul.f32 1.0, %v1019
    %v1021 = vrcp.pop %v1017
    %v1022 = vmul.f32 1.0, %v1021
    %v1023 = vrcp.pop %v1018
    %v1024 = vmul.f32 1.0, %v1023
    %v1025 = vtanh.pop %v1006
    %v1026 = vmul.f32 %v1022, %v831
    %v1027 = vmul.f32 %v1020, %v1025
    %v1028 = vadd.f32 %v1026, %v1027
    %v1029 = vtanh.pop %v1028
    %v1030 = vmul.f32 %v1024, %v1029
    %1031 = vst [vmem:[#allocation2 + $0x18] sm:$0xff] %v1030
    %v1032 = vmul.f32 %v847, %v190
    %v1033 = vmul.f32 %v847, %v194
    %v1034 = vmul.f32 %v847, %v198
    %v1035 = vmul.f32 %v847, %v202
    %v1036 = vmul.f32 %v838, %v220
    %v1037 = vmul.f32 %v838, %v224
    %v1038 = vmul.f32 %v838, %v228
    %v1039 = vmul.f32 %v838, %v232
    %v1040 = vadd.f32 %v1032, %v1036
    %v1041 = vadd.f32 %v1033, %v1037
    %v1042 = vadd.f32 %v1034, %v1038
    %v1043 = vadd.f32 %v1035, %v1039
    %v1044 = vadd.f32 %v1040, %v249
    %v1045 = vadd.f32 %v1041, %v253
    %v1046 = vadd.f32 %v1042, %v257
    %v1047 = vadd.f32 %v1043, %v261
    %1048 = vmatprep.subr.mxu0 %v178
    %1049 = vmatpush1.msra.mxu0 %v177
    %1050 = vmatprep.subr.mxu0 %v174
    %1051 = vmatpush1.msra.mxu0 %v173
    %1052 = vmatprep.subr.mxu0 %v170
    %1053 = vmatpush1.msra.mxu0 %v169
    %1054 = vmatprep.subr.mxu0 %v166
    %1055 = vmatpush1.msra.mxu0 %v165
    %1056 = vmatprep.subr.mxu0 %v162
    %1057 = vmatpush1.msra.mxu0 %v161
    %1058 = vmatprep.subr.mxu0 %v158
    %1059 = vmatpush1.msra.mxu0 %v157
    %1060 = vmatprep.subr.mxu0 %v154
    %1061 = vmatpush1.msra.mxu0 %v153
    %1062 = vmatprep.subr.mxu0 %v150
    %1063 = vmatpush1.msra.mxu0 %v149
    %1064 = vmatprep.subr.mxu0 %v146
    %1065 = vmatpush1.msra.mxu0 %v145
    %1066 = vmatprep.subr.mxu0 %v142
    %1067 = vmatpush1.msra.mxu0 %v141
    %1068 = vmatprep.subr.mxu0 %v138
    %1069 = vmatpush1.msra.mxu0 %v137
    %1070 = vmatprep.subr.mxu0 %v134
    %1071 = vmatpush1.msra.mxu0 %v133
    %1072 = vmatprep.subr.mxu0 %v130
    %1073 = vmatpush1.msra.mxu0 %v129
    %1074 = vmatprep.subr.mxu0 %v126
    %1075 = vmatpush1.msra.mxu0 %v125
    %1076 = vmatprep.subr.mxu0 %v122
    %1077 = vmatpush1.msra.mxu0 %v121
    %1078 = vmatprep.subr.mxu0 %v118
    %1079 = vmatpush1.msra.mxu0 %v117
    %1080 = vmatprep.subr.mxu0 0.0
    %1081 = vmatpush2.msra.mxu0 0.0
    %1082 = vmatprep.subr.mxu0 0.0
    %1083 = vmatpush2.msra.mxu0 0.0
    %1084 = vmatprep.subr.mxu0 0.0
    %1085 = vmatpush2.msra.mxu0 0.0
    %1086 = vmatprep.subr.mxu0 0.0
    %1087 = vmatpush2.msra.mxu0 0.0
    %1088 = vmatprep.subr.mxu0 0.0
    %1089 = vmatpush2.msra.mxu0 0.0
    %1090 = vmatprep.subr.mxu0 0.0
    %1091 = vmatpush2.msra.mxu0 0.0
    %1092 = vmatprep.subr.mxu0 0.0
    %1093 = vmatpush2.msra.mxu0 0.0
    %1094 = vmatprep.subr.mxu0 0.0
    %1095 = vmatpush2.msra.mxu0 0.0
    %1096 = vmatprep.subr.mxu0 0.0
    %1097 = vmatpush2.msra.mxu0 0.0
    %1098 = vmatprep.subr.mxu0 0.0
    %1099 = vmatpush2.msra.mxu0 0.0
    %1100 = vmatprep.subr.mxu0 0.0
    %1101 = vmatpush2.msra.mxu0 0.0
    %1102 = vmatprep.subr.mxu0 0.0
    %1103 = vmatpush2.msra.mxu0 0.0
    %1104 = vmatprep.subr.mxu0 0.0
    %1105 = vmatpush2.msra.mxu0 0.0
    %1106 = vmatprep.subr.mxu0 0.0
    %1107 = vmatpush2.msra.mxu0 0.0
    %1108 = vmatprep.subr.mxu0 0.0
    %1109 = vmatpush2.msra.mxu0 0.0
    %1110 = vmatprep.subr.mxu0 0.0
    %1111 = vmatpush2.msra.mxu0 0.0
    %1112 = vmatprep.mubr.f32.mxu0 0.0
    %1113 = vmatmul.mubr.f32.gmra.mxu0 %v1030
    %v1114 = vpop.f32.mrf.mxu0
    %v1115 = vadd.f32 0.0, %v1114
    %v1116 = vpop.f32.mrf.mxu0
    %v1117 = vadd.f32 0.0, %v1116
    %1118 = vdwg.mxu0
    %1119 = vmatprep.subr.mxu0 %v180
    %1120 = vmatpush1.msra.mxu0 %v179
    %1121 = vmatprep.subr.mxu0 %v176
    %1122 = vmatpush1.msra.mxu0 %v175
    %1123 = vmatprep.subr.mxu0 %v172
    %1124 = vmatpush1.msra.mxu0 %v171
    %1125 = vmatprep.subr.mxu0 %v168
    %1126 = vmatpush1.msra.mxu0 %v167
    %1127 = vmatprep.subr.mxu0 %v164
    %1128 = vmatpush1.msra.mxu0 %v163
    %1129 = vmatprep.subr.mxu0 %v160
    %1130 = vmatpush1.msra.mxu0 %v159
    %1131 = vmatprep.subr.mxu0 %v156
    %1132 = vmatpush1.msra.mxu0 %v155
    %1133 = vmatprep.subr.mxu0 %v152
    %1134 = vmatpush1.msra.mxu0 %v151
    %1135 = vmatprep.subr.mxu0 %v148
    %1136 = vmatpush1.msra.mxu0 %v147
    %1137 = vmatprep.subr.mxu0 %v144
    %1138 = vmatpush1.msra.mxu0 %v143
    %1139 = vmatprep.subr.mxu0 %v140
    %1140 = vmatpush1.msra.mxu0 %v139
    %1141 = vmatprep.subr.mxu0 %v136
    %1142 = vmatpush1.msra.mxu0 %v135
    %1143 = vmatprep.subr.mxu0 %v132
    %1144 = vmatpush1.msra.mxu0 %v131
    %1145 = vmatprep.subr.mxu0 %v128
    %1146 = vmatpush1.msra.mxu0 %v127
    %1147 = vmatprep.subr.mxu0 %v124
    %1148 = vmatpush1.msra.mxu0 %v123
    %1149 = vmatprep.subr.mxu0 %v120
    %1150 = vmatpush1.msra.mxu0 %v119
    %1151 = vmatprep.subr.mxu0 0.0
    %1152 = vmatpush2.msra.mxu0 0.0
    %1153 = vmatprep.subr.mxu0 0.0
    %1154 = vmatpush2.msra.mxu0 0.0
    %1155 = vmatprep.subr.mxu0 0.0
    %1156 = vmatpush2.msra.mxu0 0.0
    %1157 = vmatprep.subr.mxu0 0.0
    %1158 = vmatpush2.msra.mxu0 0.0
    %1159 = vmatprep.subr.mxu0 0.0
    %1160 = vmatpush2.msra.mxu0 0.0
    %1161 = vmatprep.subr.mxu0 0.0
    %1162 = vmatpush2.msra.mxu0 0.0
    %1163 = vmatprep.subr.mxu0 0.0
    %1164 = vmatpush2.msra.mxu0 0.0
    %1165 = vmatprep.subr.mxu0 0.0
    %1166 = vmatpush2.msra.mxu0 0.0
    %1167 = vmatprep.subr.mxu0 0.0
    %1168 = vmatpush2.msra.mxu0 0.0
    %1169 = vmatprep.subr.mxu0 0.0
    %1170 = vmatpush2.msra.mxu0 0.0
    %1171 = vmatprep.subr.mxu0 0.0
    %1172 = vmatpush2.msra.mxu0 0.0
    %1173 = vmatprep.subr.mxu0 0.0
    %1174 = vmatpush2.msra.mxu0 0.0
    %1175 = vmatprep.subr.mxu0 0.0
    %1176 = vmatpush2.msra.mxu0 0.0
    %1177 = vmatprep.subr.mxu0 0.0
    %1178 = vmatpush2.msra.mxu0 0.0
    %1179 = vmatprep.subr.mxu0 0.0
    %1180 = vmatpush2.msra.mxu0 0.0
    %1181 = vmatprep.subr.mxu0 0.0
    %1182 = vmatpush2.msra.mxu0 0.0
    %1183 = vmatprep.mubr.f32.mxu0 0.0
    %1184 = vmatmul.mubr.f32.gmra.mxu0 %v1030
    %v1185 = vpop.f32.mrf.mxu0
    %v1186 = vadd.f32 0.0, %v1185
    %v1187 = vpop.f32.mrf.mxu0
    %v1188 = vadd.f32 0.0, %v1187
    %1189 = vdwg.mxu0
    %v1190 = vadd.f32 %v1044, %v1115
    %v1191 = vadd.f32 %v1045, %v1117
    %v1192 = vadd.f32 %v1046, %v1186
    %v1193 = vadd.f32 %v1047, %v1188
    %v1194 = vxor.u32 %v1190, 2147483648
    %v1195 = vxor.u32 %v1191, 2147483648
    %v1196 = vxor.u32 %v1192, 2147483648
    %v1197 = vmul.f32 %v1194, 1.442695
    %v1198 = vpow.pop %v1197
    %v1199 = vmul.f32 %v1195, 1.442695
    %v1200 = vpow.pop %v1199
    %v1201 = vmul.f32 %v1196, 1.442695
    %v1202 = vpow.pop %v1201
    %v1203 = vadd.f32 %v1198, 1.0
    %v1204 = vadd.f32 %v1200, 1.0
    %v1205 = vadd.f32 %v1202, 1.0
    %v1206 = vrcp.pop %v1203
    %v1207 = vmul.f32 1.0, %v1206
    %v1208 = vrcp.pop %v1204
    %v1209 = vmul.f32 1.0, %v1208
    %v1210 = vrcp.pop %v1205
    %v1211 = vmul.f32 1.0, %v1210
    %v1212 = vtanh.pop %v1193
    %v1213 = vmul.f32 %v1209, %v1028
    %v1214 = vmul.f32 %v1207, %v1212
    %v1215 = vadd.f32 %v1213, %v1214
    %v1216 = vtanh.pop %v1215
    %v1217 = vmul.f32 %v1211, %v1216
    %1218 = vst [vmem:[#allocation2 + $0x20] sm:$0xff] %v1217
    %v1219 = vmul.f32 %v650, %v190
    %v1220 = vmul.f32 %v650, %v194
    %v1221 = vmul.f32 %v650, %v198
    %v1222 = vmul.f32 %v650, %v202
    %v1223 = vmul.f32 %v641, %v220
    %v1224 = vmul.f32 %v641, %v224
    %v1225 = vmul.f32 %v641, %v228
    %v1226 = vmul.f32 %v641, %v232
    %v1227 = vadd.f32 %v1219, %v1223
    %v1228 = vadd.f32 %v1220, %v1224
    %v1229 = vadd.f32 %v1221, %v1225
    %v1230 = vadd.f32 %v1222, %v1226
    %v1231 = vadd.f32 %v1227, %v249
    %v1232 = vadd.f32 %v1228, %v253
    %v1233 = vadd.f32 %v1229, %v257
    %v1234 = vadd.f32 %v1230, %v261
    %1235 = vmatprep.subr.mxu0 %v178
    %1236 = vmatpush1.msra.mxu0 %v177
    %1237 = vmatprep.subr.mxu0 %v174
    %1238 = vmatpush1.msra.mxu0 %v173
    %1239 = vmatprep.subr.mxu0 %v170
    %1240 = vmatpush1.msra.mxu0 %v169
    %1241 = vmatprep.subr.mxu0 %v166
    %1242 = vmatpush1.msra.mxu0 %v165
    %1243 = vmatprep.subr.mxu0 %v162
    %1244 = vmatpush1.msra.mxu0 %v161
    %1245 = vmatprep.subr.mxu0 %v158
    %1246 = vmatpush1.msra.mxu0 %v157
    %1247 = vmatprep.subr.mxu0 %v154
    %1248 = vmatpush1.msra.mxu0 %v153
    %1249 = vmatprep.subr.mxu0 %v150
    %1250 = vmatpush1.msra.mxu0 %v149
    %1251 = vmatprep.subr.mxu0 %v146
    %1252 = vmatpush1.msra.mxu0 %v145
    %1253 = vmatprep.subr.mxu0 %v142
    %1254 = vmatpush1.msra.mxu0 %v141
    %1255 = vmatprep.subr.mxu0 %v138
    %1256 = vmatpush1.msra.mxu0 %v137
    %1257 = vmatprep.subr.mxu0 %v134
    %1258 = vmatpush1.msra.mxu0 %v133
    %1259 = vmatprep.subr.mxu0 %v130
    %1260 = vmatpush1.msra.mxu0 %v129
    %1261 = vmatprep.subr.mxu0 %v126
    %1262 = vmatpush1.msra.mxu0 %v125
    %1263 = vmatprep.subr.mxu0 %v122
    %1264 = vmatpush1.msra.mxu0 %v121
    %1265 = vmatprep.subr.mxu0 %v118
    %1266 = vmatpush1.msra.mxu0 %v117
    %1267 = vmatprep.subr.mxu0 0.0
    %1268 = vmatpush2.msra.mxu0 0.0
    %1269 = vmatprep.subr.mxu0 0.0
    %1270 = vmatpush2.msra.mxu0 0.0
    %1271 = vmatprep.subr.mxu0 0.0
    %1272 = vmatpush2.msra.mxu0 0.0
    %1273 = vmatprep.subr.mxu0 0.0
    %1274 = vmatpush2.msra.mxu0 0.0
    %1275 = vmatprep.subr.mxu0 0.0
    %1276 = vmatpush2.msra.mxu0 0.0
    %1277 = vmatprep.subr.mxu0 0.0
    %1278 = vmatpush2.msra.mxu0 0.0
    %1279 = vmatprep.subr.mxu0 0.0
    %1280 = vmatpush2.msra.mxu0 0.0
    %1281 = vmatprep.subr.mxu0 0.0
    %1282 = vmatpush2.msra.mxu0 0.0
    %1283 = vmatprep.subr.mxu0 0.0
    %1284 = vmatpush2.msra.mxu0 0.0
    %1285 = vmatprep.subr.mxu0 0.0
    %1286 = vmatpush2.msra.mxu0 0.0
    %1287 = vmatprep.subr.mxu0 0.0
    %1288 = vmatpush2.msra.mxu0 0.0
    %1289 = vmatprep.subr.mxu0 0.0
    %1290 = vmatpush2.msra.mxu0 0.0
    %1291 = vmatprep.subr.mxu0 0.0
    %1292 = vmatpush2.msra.mxu0 0.0
    %1293 = vmatprep.subr.mxu0 0.0
    %1294 = vmatpush2.msra.mxu0 0.0
    %1295 = vmatprep.subr.mxu0 0.0
    %1296 = vmatpush2.msra.mxu0 0.0
    %1297 = vmatprep.subr.mxu0 0.0
    %1298 = vmatpush2.msra.mxu0 0.0
    %1299 = vmatprep.mubr.f32.mxu0 0.0
    %1300 = vmatmul.mubr.f32.gmra.mxu0 %v1217
    %v1301 = vpop.f32.mrf.mxu0
    %v1302 = vadd.f32 0.0, %v1301
    %v1303 = vpop.f32.mrf.mxu0
    %v1304 = vadd.f32 0.0, %v1303
    %1305 = vdwg.mxu0
    %1306 = vmatprep.subr.mxu0 %v180
    %1307 = vmatpush1.msra.mxu0 %v179
    %1308 = vmatprep.subr.mxu0 %v176
    %1309 = vmatpush1.msra.mxu0 %v175
    %1310 = vmatprep.subr.mxu0 %v172
    %1311 = vmatpush1.msra.mxu0 %v171
    %1312 = vmatprep.subr.mxu0 %v168
    %1313 = vmatpush1.msra.mxu0 %v167
    %1314 = vmatprep.subr.mxu0 %v164
    %1315 = vmatpush1.msra.mxu0 %v163
    %1316 = vmatprep.subr.mxu0 %v160
    %1317 = vmatpush1.msra.mxu0 %v159
    %1318 = vmatprep.subr.mxu0 %v156
    %1319 = vmatpush1.msra.mxu0 %v155
    %1320 = vmatprep.subr.mxu0 %v152
    %1321 = vmatpush1.msra.mxu0 %v151
    %1322 = vmatprep.subr.mxu0 %v148
    %1323 = vmatpush1.msra.mxu0 %v147
    %1324 = vmatprep.subr.mxu0 %v144
    %1325 = vmatpush1.msra.mxu0 %v143
    %1326 = vmatprep.subr.mxu0 %v140
    %1327 = vmatpush1.msra.mxu0 %v139
    %1328 = vmatprep.subr.mxu0 %v136
    %1329 = vmatpush1.msra.mxu0 %v135
    %1330 = vmatprep.subr.mxu0 %v132
    %1331 = vmatpush1.msra.mxu0 %v131
    %1332 = vmatprep.subr.mxu0 %v128
    %1333 = vmatpush1.msra.mxu0 %v127
    %1334 = vmatprep.subr.mxu0 %v124
    %1335 = vmatpush1.msra.mxu0 %v123
    %1336 = vmatprep.subr.mxu0 %v120
    %1337 = vmatpush1.msra.mxu0 %v119
    %1338 = vmatprep.subr.mxu0 0.0
    %1339 = vmatpush2.msra.mxu0 0.0
    %1340 = vmatprep.subr.mxu0 0.0
    %1341 = vmatpush2.msra.mxu0 0.0
    %1342 = vmatprep.subr.mxu0 0.0
    %1343 = vmatpush2.msra.mxu0 0.0
    %1344 = vmatprep.subr.mxu0 0.0
    %1345 = vmatpush2.msra.mxu0 0.0
    %1346 = vmatprep.subr.mxu0 0.0
    %1347 = vmatpush2.msra.mxu0 0.0
    %1348 = vmatprep.subr.mxu0 0.0
    %1349 = vmatpush2.msra.mxu0 0.0
    %1350 = vmatprep.subr.mxu0 0.0
    %1351 = vmatpush2.msra.mxu0 0.0
    %1352 = vmatprep.subr.mxu0 0.0
    %1353 = vmatpush2.msra.mxu0 0.0
    %1354 = vmatprep.subr.mxu0 0.0
    %1355 = vmatpush2.msra.mxu0 0.0
    %1356 = vmatprep.subr.mxu0 0.0
    %1357 = vmatpush2.msra.mxu0 0.0
    %1358 = vmatprep.subr.mxu0 0.0
    %1359 = vmatpush2.msra.mxu0 0.0
    %1360 = vmatprep.subr.mxu0 0.0
    %1361 = vmatpush2.msra.mxu0 0.0
    %1362 = vmatprep.subr.mxu0 0.0
    %1363 = vmatpush2.msra.mxu0 0.0
    %1364 = vmatprep.subr.mxu0 0.0
    %1365 = vmatpush2.msra.mxu0 0.0
    %1366 = vmatprep.subr.mxu0 0.0
    %1367 = vmatpush2.msra.mxu0 0.0
    %1368 = vmatprep.subr.mxu0 0.0
    %1369 = vmatpush2.msra.mxu0 0.0
    %1370 = vmatprep.mubr.f32.mxu0 0.0
    %1371 = vmatmul.mubr.f32.gmra.mxu0 %v1217
    %v1372 = vpop.f32.mrf.mxu0
    %v1373 = vadd.f32 0.0, %v1372
    %v1374 = vpop.f32.mrf.mxu0
    %v1375 = vadd.f32 0.0, %v1374
    %1376 = vdwg.mxu0
    %v1377 = vadd.f32 %v1231, %v1302
    %v1378 = vadd.f32 %v1232, %v1304
    %v1379 = vadd.f32 %v1233, %v1373
    %v1380 = vadd.f32 %v1234, %v1375
    %v1381 = vxor.u32 %v1377, 2147483648
    %v1382 = vxor.u32 %v1378, 2147483648
    %v1383 = vxor.u32 %v1379, 2147483648
    %v1384 = vmul.f32 %v1381, 1.442695
    %v1385 = vpow.pop %v1384
    %v1386 = vmul.f32 %v1382, 1.442695
    %v1387 = vpow.pop %v1386
    %v1388 = vmul.f32 %v1383, 1.442695
    %v1389 = vpow.pop %v1388
    %v1390 = vadd.f32 %v1385, 1.0
    %v1391 = vadd.f32 %v1387, 1.0
    %v1392 = vadd.f32 %v1389, 1.0
    %v1393 = vrcp.pop %v1390
    %v1394 = vmul.f32 1.0, %v1393
    %v1395 = vrcp.pop %v1391
    %v1396 = vmul.f32 1.0, %v1395
    %v1397 = vrcp.pop %v1392
    %v1398 = vmul.f32 1.0, %v1397
    %v1399 = vtanh.pop %v1380
    %v1400 = vmul.f32 %v1396, %v1215
    %v1401 = vmul.f32 %v1394, %v1399
    %v1402 = vadd.f32 %v1400, %v1401
    %v1403 = vtanh.pop %v1402
    %v1404 = vmul.f32 %v1398, %v1403
    %1405 = vst [vmem:[#allocation2 + $0x28] sm:$0xff] %v1404
    %v1406 = vmul.f32 %v453, %v190
    %v1407 = vmul.f32 %v453, %v194
    %v1408 = vmul.f32 %v453, %v198
    %v1409 = vmul.f32 %v453, %v202
    %v1410 = vmul.f32 %v444, %v220
    %v1411 = vmul.f32 %v444, %v224
    %v1412 = vmul.f32 %v444, %v228
    %v1413 = vmul.f32 %v444, %v232
    %v1414 = vadd.f32 %v1406, %v1410
    %v1415 = vadd.f32 %v1407, %v1411
    %v1416 = vadd.f32 %v1408, %v1412
    %v1417 = vadd.f32 %v1409, %v1413
    %v1418 = vadd.f32 %v1414, %v249
    %v1419 = vadd.f32 %v1415, %v253
    %v1420 = vadd.f32 %v1416, %v257
    %v1421 = vadd.f32 %v1417, %v261
    %1422 = vmatprep.subr.mxu0 %v178
    %1423 = vmatpush1.msra.mxu0 %v177
    %1424 = vmatprep.subr.mxu0 %v174
    %1425 = vmatpush1.msra.mxu0 %v173
    %1426 = vmatprep.subr.mxu0 %v170
    %1427 = vmatpush1.msra.mxu0 %v169
    %1428 = vmatprep.subr.mxu0 %v166
    %1429 = vmatpush1.msra.mxu0 %v165
    %1430 = vmatprep.subr.mxu0 %v162
    %1431 = vmatpush1.msra.mxu0 %v161
    %1432 = vmatprep.subr.mxu0 %v158
    %1433 = vmatpush1.msra.mxu0 %v157
    %1434 = vmatprep.subr.mxu0 %v154
    %1435 = vmatpush1.msra.mxu0 %v153
    %1436 = vmatprep.subr.mxu0 %v150
    %1437 = vmatpush1.msra.mxu0 %v149
    %1438 = vmatprep.subr.mxu0 %v146
    %1439 = vmatpush1.msra.mxu0 %v145
    %1440 = vmatprep.subr.mxu0 %v142
    %1441 = vmatpush1.msra.mxu0 %v141
    %1442 = vmatprep.subr.mxu0 %v138
    %1443 = vmatpush1.msra.mxu0 %v137
    %1444 = vmatprep.subr.mxu0 %v134
    %1445 = vmatpush1.msra.mxu0 %v133
    %1446 = vmatprep.subr.mxu0 %v130
    %1447 = vmatpush1.msra.mxu0 %v129
    %1448 = vmatprep.subr.mxu0 %v126
    %1449 = vmatpush1.msra.mxu0 %v125
    %1450 = vmatprep.subr.mxu0 %v122
    %1451 = vmatpush1.msra.mxu0 %v121
    %1452 = vmatprep.subr.mxu0 %v118
    %1453 = vmatpush1.msra.mxu0 %v117
    %1454 = vmatprep.subr.mxu0 0.0
    %1455 = vmatpush2.msra.mxu0 0.0
    %1456 = vmatprep.subr.mxu0 0.0
    %1457 = vmatpush2.msra.mxu0 0.0
    %1458 = vmatprep.subr.mxu0 0.0
    %1459 = vmatpush2.msra.mxu0 0.0
    %1460 = vmatprep.subr.mxu0 0.0
    %1461 = vmatpush2.msra.mxu0 0.0
    %1462 = vmatprep.subr.mxu0 0.0
    %1463 = vmatpush2.msra.mxu0 0.0
    %1464 = vmatprep.subr.mxu0 0.0
    %1465 = vmatpush2.msra.mxu0 0.0
    %1466 = vmatprep.subr.mxu0 0.0
    %1467 = vmatpush2.msra.mxu0 0.0
    %1468 = vmatprep.subr.mxu0 0.0
    %1469 = vmatpush2.msra.mxu0 0.0
    %1470 = vmatprep.subr.mxu0 0.0
    %1471 = vmatpush2.msra.mxu0 0.0
    %1472 = vmatprep.subr.mxu0 0.0
    %1473 = vmatpush2.msra.mxu0 0.0
    %1474 = vmatprep.subr.mxu0 0.0
    %1475 = vmatpush2.msra.mxu0 0.0
    %1476 = vmatprep.subr.mxu0 0.0
    %1477 = vmatpush2.msra.mxu0 0.0
    %1478 = vmatprep.subr.mxu0 0.0
    %1479 = vmatpush2.msra.mxu0 0.0
    %1480 = vmatprep.subr.mxu0 0.0
    %1481 = vmatpush2.msra.mxu0 0.0
    %1482 = vmatprep.subr.mxu0 0.0
    %1483 = vmatpush2.msra.mxu0 0.0
    %1484 = vmatprep.subr.mxu0 0.0
    %1485 = vmatpush2.msra.mxu0 0.0
    %1486 = vmatprep.mubr.f32.mxu0 0.0
    %1487 = vmatmul.mubr.f32.gmra.mxu0 %v1404
    %v1488 = vpop.f32.mrf.mxu0
    %v1489 = vadd.f32 0.0, %v1488
    %v1490 = vpop.f32.mrf.mxu0
    %v1491 = vadd.f32 0.0, %v1490
    %1492 = vdwg.mxu0
    %1493 = vmatprep.subr.mxu0 %v180
    %1494 = vmatpush1.msra.mxu0 %v179
    %1495 = vmatprep.subr.mxu0 %v176
    %1496 = vmatpush1.msra.mxu0 %v175
    %1497 = vmatprep.subr.mxu0 %v172
    %1498 = vmatpush1.msra.mxu0 %v171
    %1499 = vmatprep.subr.mxu0 %v168
    %1500 = vmatpush1.msra.mxu0 %v167
    %1501 = vmatprep.subr.mxu0 %v164
    %1502 = vmatpush1.msra.mxu0 %v163
    %1503 = vmatprep.subr.mxu0 %v160
    %1504 = vmatpush1.msra.mxu0 %v159
    %1505 = vmatprep.subr.mxu0 %v156
    %1506 = vmatpush1.msra.mxu0 %v155
    %1507 = vmatprep.subr.mxu0 %v152
    %1508 = vmatpush1.msra.mxu0 %v151
    %1509 = vmatprep.subr.mxu0 %v148
    %1510 = vmatpush1.msra.mxu0 %v147
    %1511 = vmatprep.subr.mxu0 %v144
    %1512 = vmatpush1.msra.mxu0 %v143
    %1513 = vmatprep.subr.mxu0 %v140
    %1514 = vmatpush1.msra.mxu0 %v139
    %1515 = vmatprep.subr.mxu0 %v136
    %1516 = vmatpush1.msra.mxu0 %v135
    %1517 = vmatprep.subr.mxu0 %v132
    %1518 = vmatpush1.msra.mxu0 %v131
    %1519 = vmatprep.subr.mxu0 %v128
    %1520 = vmatpush1.msra.mxu0 %v127
    %1521 = vmatprep.subr.mxu0 %v124
    %1522 = vmatpush1.msra.mxu0 %v123
    %1523 = vmatprep.subr.mxu0 %v120
    %1524 = vmatpush1.msra.mxu0 %v119
    %1525 = vmatprep.subr.mxu0 0.0
    %1526 = vmatpush2.msra.mxu0 0.0
    %1527 = vmatprep.subr.mxu0 0.0
    %1528 = vmatpush2.msra.mxu0 0.0
    %1529 = vmatprep.subr.mxu0 0.0
    %1530 = vmatpush2.msra.mxu0 0.0
    %1531 = vmatprep.subr.mxu0 0.0
    %1532 = vmatpush2.msra.mxu0 0.0
    %1533 = vmatprep.subr.mxu0 0.0
    %1534 = vmatpush2.msra.mxu0 0.0
    %1535 = vmatprep.subr.mxu0 0.0
    %1536 = vmatpush2.msra.mxu0 0.0
    %1537 = vmatprep.subr.mxu0 0.0
    %1538 = vmatpush2.msra.mxu0 0.0
    %1539 = vmatprep.subr.mxu0 0.0
    %1540 = vmatpush2.msra.mxu0 0.0
    %1541 = vmatprep.subr.mxu0 0.0
    %1542 = vmatpush2.msra.mxu0 0.0
    %1543 = vmatprep.subr.mxu0 0.0
    %1544 = vmatpush2.msra.mxu0 0.0
    %1545 = vmatprep.subr.mxu0 0.0
    %1546 = vmatpush2.msra.mxu0 0.0
    %1547 = vmatprep.subr.mxu0 0.0
    %1548 = vmatpush2.msra.mxu0 0.0
    %1549 = vmatprep.subr.mxu0 0.0
    %1550 = vmatpush2.msra.mxu0 0.0
    %1551 = vmatprep.subr.mxu0 0.0
    %1552 = vmatpush2.msra.mxu0 0.0
    %1553 = vmatprep.subr.mxu0 0.0
    %1554 = vmatpush2.msra.mxu0 0.0
    %1555 = vmatprep.subr.mxu0 0.0
    %1556 = vmatpush2.msra.mxu0 0.0
    %1557 = vmatprep.mubr.f32.mxu0 0.0
    %1558 = vmatmul.mubr.f32.gmra.mxu0 %v1404
    %v1559 = vpop.f32.mrf.mxu0
    %v1560 = vadd.f32 0.0, %v1559
    %v1561 = vpop.f32.mrf.mxu0
    %v1562 = vadd.f32 0.0, %v1561
    %1563 = vdwg.mxu0
    %v1564 = vadd.f32 %v1418, %v1489
    %v1565 = vadd.f32 %v1419, %v1491
    %v1566 = vadd.f32 %v1420, %v1560
    %v1567 = vadd.f32 %v1421, %v1562
    %v1568 = vxor.u32 %v1564, 2147483648
    %v1569 = vxor.u32 %v1565, 2147483648
    %v1570 = vxor.u32 %v1566, 2147483648
    %v1571 = vmul.f32 %v1568, 1.442695
    %v1572 = vpow.pop %v1571
    %v1573 = vmul.f32 %v1569, 1.442695
    %v1574 = vpow.pop %v1573
    %v1575 = vmul.f32 %v1570, 1.442695
    %v1576 = vpow.pop %v1575
    %v1577 = vadd.f32 %v1572, 1.0
    %v1578 = vadd.f32 %v1574, 1.0
    %v1579 = vadd.f32 %v1576, 1.0
    %v1580 = vrcp.pop %v1577
    %v1581 = vmul.f32 1.0, %v1580
    %v1582 = vrcp.pop %v1578
    %v1583 = vmul.f32 1.0, %v1582
    %v1584 = vrcp.pop %v1579
    %v1585 = vmul.f32 1.0, %v1584
    %v1586 = vtanh.pop %v1567
    %v1587 = vmul.f32 %v1583, %v1402
    %v1588 = vmul.f32 %v1581, %v1586
    %v1589 = vadd.f32 %v1587, %v1588
    %v1590 = vtanh.pop %v1589
    %v1591 = vmul.f32 %v1585, %v1590
    %1592 = vst [vmem:[#allocation2 + $0x30] sm:$0xff] %v1591
    %v1593 = vmul.f32 %v214, %v190
    %v1594 = vmul.f32 %v214, %v194
    %v1595 = vmul.f32 %v214, %v198
    %v1596 = vmul.f32 %v214, %v202
    %v1597 = vmul.f32 %v184, %v220
    %v1598 = vmul.f32 %v184, %v224
    %v1599 = vmul.f32 %v184, %v228
    %v1600 = vmul.f32 %v184, %v232
    %v1601 = vadd.f32 %v1593, %v1597
    %v1602 = vadd.f32 %v1594, %v1598
    %v1603 = vadd.f32 %v1595, %v1599
    %v1604 = vadd.f32 %v1596, %v1600
    %v1605 = vadd.f32 %v1601, %v249
    %v1606 = vadd.f32 %v1602, %v253
    %v1607 = vadd.f32 %v1603, %v257
    %v1608 = vadd.f32 %v1604, %v261
    %1609 = vmatprep.subr.mxu0 %v178
    %1610 = vmatpush1.msra.mxu0 %v177
    %1611 = vmatprep.subr.mxu0 %v174
    %1612 = vmatpush1.msra.mxu0 %v173
    %1613 = vmatprep.subr.mxu0 %v170
    %1614 = vmatpush1.msra.mxu0 %v169
    %1615 = vmatprep.subr.mxu0 %v166
    %1616 = vmatpush1.msra.mxu0 %v165
    %1617 = vmatprep.subr.mxu0 %v162
    %1618 = vmatpush1.msra.mxu0 %v161
    %1619 = vmatprep.subr.mxu0 %v158
    %1620 = vmatpush1.msra.mxu0 %v157
    %1621 = vmatprep.subr.mxu0 %v154
    %1622 = vmatpush1.msra.mxu0 %v153
    %1623 = vmatprep.subr.mxu0 %v150
    %1624 = vmatpush1.msra.mxu0 %v149
    %1625 = vmatprep.subr.mxu0 %v146
    %1626 = vmatpush1.msra.mxu0 %v145
    %1627 = vmatprep.subr.mxu0 %v142
    %1628 = vmatpush1.msra.mxu0 %v141
    %1629 = vmatprep.subr.mxu0 %v138
    %1630 = vmatpush1.msra.mxu0 %v137
    %1631 = vmatprep.subr.mxu0 %v134
    %1632 = vmatpush1.msra.mxu0 %v133
    %1633 = vmatprep.subr.mxu0 %v130
    %1634 = vmatpush1.msra.mxu0 %v129
    %1635 = vmatprep.subr.mxu0 %v126
    %1636 = vmatpush1.msra.mxu0 %v125
    %1637 = vmatprep.subr.mxu0 %v122
    %1638 = vmatpush1.msra.mxu0 %v121
    %1639 = vmatprep.subr.mxu0 %v118
    %1640 = vmatpush1.msra.mxu0 %v117
    %1641 = vmatprep.subr.mxu0 0.0
    %1642 = vmatpush2.msra.mxu0 0.0
    %1643 = vmatprep.subr.mxu0 0.0
    %1644 = vmatpush2.msra.mxu0 0.0
    %1645 = vmatprep.subr.mxu0 0.0
    %1646 = vmatpush2.msra.mxu0 0.0
    %1647 = vmatprep.subr.mxu0 0.0
    %1648 = vmatpush2.msra.mxu0 0.0
    %1649 = vmatprep.subr.mxu0 0.0
    %1650 = vmatpush2.msra.mxu0 0.0
    %1651 = vmatprep.subr.mxu0 0.0
    %1652 = vmatpush2.msra.mxu0 0.0
    %1653 = vmatprep.subr.mxu0 0.0
    %1654 = vmatpush2.msra.mxu0 0.0
    %1655 = vmatprep.subr.mxu0 0.0
    %1656 = vmatpush2.msra.mxu0 0.0
    %1657 = vmatprep.subr.mxu0 0.0
    %1658 = vmatpush2.msra.mxu0 0.0
    %1659 = vmatprep.subr.mxu0 0.0
    %1660 = vmatpush2.msra.mxu0 0.0
    %1661 = vmatprep.subr.mxu0 0.0
    %1662 = vmatpush2.msra.mxu0 0.0
    %1663 = vmatprep.subr.mxu0 0.0
    %1664 = vmatpush2.msra.mxu0 0.0
    %1665 = vmatprep.subr.mxu0 0.0
    %1666 = vmatpush2.msra.mxu0 0.0
    %1667 = vmatprep.subr.mxu0 0.0
    %1668 = vmatpush2.msra.mxu0 0.0
    %1669 = vmatprep.subr.mxu0 0.0
    %1670 = vmatpush2.msra.mxu0 0.0
    %1671 = vmatprep.subr.mxu0 0.0
    %1672 = vmatpush2.msra.mxu0 0.0
    %1673 = vmatprep.mubr.f32.mxu0 0.0
    %1674 = vmatmul.mubr.f32.gmra.mxu0 %v1591
    %v1675 = vpop.f32.mrf.mxu0
    %v1676 = vadd.f32 0.0, %v1675
    %v1677 = vpop.f32.mrf.mxu0
    %v1678 = vadd.f32 0.0, %v1677
    %1679 = vdwg.mxu0
    %1680 = vmatprep.subr.mxu0 %v180
    %1681 = vmatpush1.msra.mxu0 %v179
    %1682 = vmatprep.subr.mxu0 %v176
    %1683 = vmatpush1.msra.mxu0 %v175
    %1684 = vmatprep.subr.mxu0 %v172
    %1685 = vmatpush1.msra.mxu0 %v171
    %1686 = vmatprep.subr.mxu0 %v168
    %1687 = vmatpush1.msra.mxu0 %v167
    %1688 = vmatprep.subr.mxu0 %v164
    %1689 = vmatpush1.msra.mxu0 %v163
    %1690 = vmatprep.subr.mxu0 %v160
    %1691 = vmatpush1.msra.mxu0 %v159
    %1692 = vmatprep.subr.mxu0 %v156
    %1693 = vmatpush1.msra.mxu0 %v155
    %1694 = vmatprep.subr.mxu0 %v152
    %1695 = vmatpush1.msra.mxu0 %v151
    %1696 = vmatprep.subr.mxu0 %v148
    %1697 = vmatpush1.msra.mxu0 %v147
    %1698 = vmatprep.subr.mxu0 %v144
    %1699 = vmatpush1.msra.mxu0 %v143
    %1700 = vmatprep.subr.mxu0 %v140
    %1701 = vmatpush1.msra.mxu0 %v139
    %1702 = vmatprep.subr.mxu0 %v136
    %1703 = vmatpush1.msra.mxu0 %v135
    %1704 = vmatprep.subr.mxu0 %v132
    %1705 = vmatpush1.msra.mxu0 %v131
    %1706 = vmatprep.subr.mxu0 %v128
    %1707 = vmatpush1.msra.mxu0 %v127
    %1708 = vmatprep.subr.mxu0 %v124
    %1709 = vmatpush1.msra.mxu0 %v123
    %1710 = vmatprep.subr.mxu0 %v120
    %1711 = vmatpush1.msra.mxu0 %v119
    %1712 = vmatprep.subr.mxu0 0.0
    %1713 = vmatpush2.msra.mxu0 0.0
    %1714 = vmatprep.subr.mxu0 0.0
    %1715 = vmatpush2.msra.mxu0 0.0
    %1716 = vmatprep.subr.mxu0 0.0
    %1717 = vmatpush2.msra.mxu0 0.0
    %1718 = vmatprep.subr.mxu0 0.0
    %1719 = vmatpush2.msra.mxu0 0.0
    %1720 = vmatprep.subr.mxu0 0.0
    %1721 = vmatpush2.msra.mxu0 0.0
    %1722 = vmatprep.subr.mxu0 0.0
    %1723 = vmatpush2.msra.mxu0 0.0
    %1724 = vmatprep.subr.mxu0 0.0
    %1725 = vmatpush2.msra.mxu0 0.0
    %1726 = vmatprep.subr.mxu0 0.0
    %1727 = vmatpush2.msra.mxu0 0.0
    %1728 = vmatprep.subr.mxu0 0.0
    %1729 = vmatpush2.msra.mxu0 0.0
    %1730 = vmatprep.subr.mxu0 0.0
    %1731 = vmatpush2.msra.mxu0 0.0
    %1732 = vmatprep.subr.mxu0 0.0
    %1733 = vmatpush2.msra.mxu0 0.0
    %1734 = vmatprep.subr.mxu0 0.0
    %1735 = vmatpush2.msra.mxu0 0.0
    %1736 = vmatprep.subr.mxu0 0.0
    %1737 = vmatpush2.msra.mxu0 0.0
    %1738 = vmatprep.subr.mxu0 0.0
    %1739 = vmatpush2.msra.mxu0 0.0
    %1740 = vmatprep.subr.mxu0 0.0
    %1741 = vmatpush2.msra.mxu0 0.0
    %1742 = vmatprep.subr.mxu0 0.0
    %1743 = vmatpush2.msra.mxu0 0.0
    %1744 = vmatprep.mubr.f32.mxu0 0.0
    %1745 = vmatmul.mubr.f32.gmra.mxu0 %v1591
    %v1746 = vpop.f32.mrf.mxu0
    %v1747 = vadd.f32 0.0, %v1746
    %v1748 = vpop.f32.mrf.mxu0
    %v1749 = vadd.f32 0.0, %v1748
    %1750 = vdwg.mxu0
    %v1751 = vadd.f32 %v1605, %v1676
    %v1752 = vadd.f32 %v1606, %v1678
    %v1753 = vadd.f32 %v1607, %v1747
    %v1754 = vadd.f32 %v1608, %v1749
    %v1755 = vxor.u32 %v1751, 2147483648
    %v1756 = vxor.u32 %v1752, 2147483648
    %v1757 = vxor.u32 %v1753, 2147483648
    %v1758 = vmul.f32 %v1755, 1.442695
    %v1759 = vpow.pop %v1758
    %v1760 = vmul.f32 %v1756, 1.442695
    %v1761 = vpow.pop %v1760
    %v1762 = vmul.f32 %v1757, 1.442695
    %v1763 = vpow.pop %v1762
    %v1764 = vadd.f32 %v1759, 1.0
    %v1765 = vadd.f32 %v1761, 1.0
    %v1766 = vadd.f32 %v1763, 1.0
    %v1767 = vrcp.pop %v1764
    %v1768 = vmul.f32 1.0, %v1767
    %v1769 = vrcp.pop %v1765
    %v1770 = vmul.f32 1.0, %v1769
    %v1771 = vrcp.pop %v1766
    %v1772 = vmul.f32 1.0, %v1771
    %v1773 = vtanh.pop %v1754
    %v1774 = vmul.f32 %v1770, %v1589
    %v1775 = vmul.f32 %v1768, %v1773
    %v1776 = vadd.f32 %v1774, %v1775
    %v1777 = vtanh.pop %v1776
    %v1778 = vmul.f32 %v1772, %v1777
    %1779 = vst [vmem:[#allocation2 + $0x38] sm:$0xff] %v1778
    %v1780 = vld [vmem:[#allocation2] sm:$0xff]
    %v1781 = vld [vmem:[#allocation2 + $0x8] sm:$0xff]
    %v1782 = vld [vmem:[#allocation2 + $0x10] sm:$0xff]
    %v1783 = vld [vmem:[#allocation2 + $0x18] sm:$0xff]
    %v1784 = vld [vmem:[#allocation2 + $0x20] sm:$0xff]
    %v1785 = vld [vmem:[#allocation2 + $0x28] sm:$0xff]
    %v1786 = vld [vmem:[#allocation2 + $0x30] sm:$0xff]
    %v1787 = vld [vmem:[#allocation2 + $0x38] sm:$0xff]
    %v1788 = vld [vmem:[#allocation5] sm:$0xff]
    %v1789 = vld [vmem:[#allocation5 + $0x8] sm:$0xff]
    %v1790 = vld [vmem:[#allocation5 + $0x10] sm:$0xff]
    %v1791 = vld [vmem:[#allocation5 + $0x18] sm:$0xff]
    %v1792 = vld [vmem:[#allocation5 + $0x20] sm:$0xff]
    %v1793 = vld [vmem:[#allocation5 + $0x28] sm:$0xff]
    %v1794 = vld [vmem:[#allocation5 + $0x30] sm:$0xff]
    %v1795 = vld [vmem:[#allocation5 + $0x38] sm:$0xff]
    %v1796 = vld [vmem:[#allocation5 + $0x40] sm:$0xff]
    %v1797 = vld [vmem:[#allocation5 + $0x48] sm:$0xff]
    %v1798 = vld [vmem:[#allocation5 + $0x50] sm:$0xff]
    %v1799 = vld [vmem:[#allocation5 + $0x58] sm:$0xff]
    %v1800 = vld [vmem:[#allocation5 + $0x60] sm:$0xff]
    %v1801 = vld [vmem:[#allocation5 + $0x68] sm:$0xff]
    %v1802 = vld [vmem:[#allocation5 + $0x70] sm:$0xff]
    %v1803 = vld [vmem:[#allocation5 + $0x78] sm:$0xff]
    %v1804 = vld [vmem:[#allocation5 + $0x80] sm:$0xff]
    %v1805 = vld [vmem:[#allocation5 + $0x88] sm:$0xff]
    %v1806 = vld [vmem:[#allocation5 + $0x90] sm:$0xff]
    %v1807 = vld [vmem:[#allocation5 + $0x98] sm:$0xff]
    %v1808 = vld [vmem:[#allocation5 + $0xa0] sm:$0xff]
    %v1809 = vld [vmem:[#allocation5 + $0xa8] sm:$0xff]
    %v1810 = vld [vmem:[#allocation5 + $0xb0] sm:$0xff]
    %v1811 = vld [vmem:[#allocation5 + $0xb8] sm:$0xff]
    %v1812 = vld [vmem:[#allocation5 + $0xc0] sm:$0xff]
    %v1813 = vld [vmem:[#allocation5 + $0xc8] sm:$0xff]
    %v1814 = vld [vmem:[#allocation5 + $0xd0] sm:$0xff]
    %v1815 = vld [vmem:[#allocation5 + $0xd8] sm:$0xff]
    %v1816 = vld [vmem:[#allocation5 + $0xe0] sm:$0xff]
    %v1817 = vld [vmem:[#allocation5 + $0xe8] sm:$0xff]
    %v1818 = vld [vmem:[#allocation5 + $0xf0] sm:$0xff]
    %v1819 = vld [vmem:[#allocation5 + $0xf8] sm:$0xff]
    %v1820 = vld [vmem:[#allocation5 + $0x100] sm:$0xff]
    %v1821 = vld [vmem:[#allocation5 + $0x108] sm:$0xff]
    %v1822 = vld [vmem:[#allocation5 + $0x110] sm:$0xff]
    %v1823 = vld [vmem:[#allocation5 + $0x118] sm:$0xff]
    %v1824 = vld [vmem:[#allocation5 + $0x120] sm:$0xff]
    %v1825 = vld [vmem:[#allocation5 + $0x128] sm:$0xff]
    %v1826 = vld [vmem:[#allocation5 + $0x130] sm:$0xff]
    %v1827 = vld [vmem:[#allocation5 + $0x138] sm:$0xff]
    %v1828 = vld [vmem:[#allocation5 + $0x140] sm:$0xff]
    %v1829 = vld [vmem:[#allocation5 + $0x148] sm:$0xff]
    %v1830 = vld [vmem:[#allocation5 + $0x150] sm:$0xff]
    %v1831 = vld [vmem:[#allocation5 + $0x158] sm:$0xff]
    %v1832 = vld [vmem:[#allocation5 + $0x160] sm:$0xff]
    %v1833 = vld [vmem:[#allocation5 + $0x168] sm:$0xff]
    %v1834 = vld [vmem:[#allocation5 + $0x170] sm:$0xff]
    %v1835 = vld [vmem:[#allocation5 + $0x178] sm:$0xff]
    %v1836 = vld [vmem:[#allocation5 + $0x180] sm:$0xff]
    %v1837 = vld [vmem:[#allocation5 + $0x188] sm:$0xff]
    %v1838 = vld [vmem:[#allocation5 + $0x190] sm:$0xff]
    %v1839 = vld [vmem:[#allocation5 + $0x198] sm:$0xff]
    %v1840 = vld [vmem:[#allocation5 + $0x1a0] sm:$0xff]
    %v1841 = vld [vmem:[#allocation5 + $0x1a8] sm:$0xff]
    %v1842 = vld [vmem:[#allocation5 + $0x1b0] sm:$0xff]
    %v1843 = vld [vmem:[#allocation5 + $0x1b8] sm:$0xff]
    %v1844 = vld [vmem:[#allocation5 + $0x1c0] sm:$0xff]
    %v1845 = vld [vmem:[#allocation5 + $0x1c8] sm:$0xff]
    %v1846 = vld [vmem:[#allocation5 + $0x1d0] sm:$0xff]
    %v1847 = vld [vmem:[#allocation5 + $0x1d8] sm:$0xff]
    %v1848 = vld [vmem:[#allocation5 + $0x1e0] sm:$0xff]
    %v1849 = vld [vmem:[#allocation5 + $0x1e8] sm:$0xff]
    %v1850 = vld [vmem:[#allocation5 + $0x1f0] sm:$0xff]
    %v1851 = vld [vmem:[#allocation5 + $0x1f8] sm:$0xff]
    %v1852 = vld [vmem:[%s7] sm:$0xf]
    %v1854 = vlaneseq
    %v1855 = vshrl.u32 %v1854, 7
    %v1856 = vsub.s32 0, %v1855
    %v1857 = vrot.slane %v1852, %v1856
    %v1858 = vlaneseq
    %v1859 = vshrl.u32 %v1858, 7
    %v1860 = vsub.s32 1, %v1859
    %v1861 = vrot.slane %v1852, %v1860
    %v1862 = vlaneseq
    %v1863 = vshrl.u32 %v1862, 7
    %v1864 = vsub.s32 2, %v1863
    %v1865 = vrot.slane %v1852, %v1864
    %v1866 = vlaneseq
    %v1867 = vshrl.u32 %v1866, 7
    %v1868 = vsub.s32 3, %v1867
    %v1869 = vrot.slane %v1852, %v1868
    %1874 = vmatprep.subr.mxu0 %v1849
    %1875 = vmatpush1.msra.mxu0 %v1848
    %1876 = vmatprep.subr.mxu0 %v1845
    %1877 = vmatpush1.msra.mxu0 %v1844
    %1878 = vmatprep.subr.mxu0 %v1841
    %1879 = vmatpush1.msra.mxu0 %v1840
    %1880 = vmatprep.subr.mxu0 %v1837
    %1881 = vmatpush1.msra.mxu0 %v1836
    %1882 = vmatprep.subr.mxu0 %v1833
    %1883 = vmatpush1.msra.mxu0 %v1832
    %1884 = vmatprep.subr.mxu0 %v1829
    %1885 = vmatpush1.msra.mxu0 %v1828
    %1886 = vmatprep.subr.mxu0 %v1825
    %1887 = vmatpush1.msra.mxu0 %v1824
    %1888 = vmatprep.subr.mxu0 %v1821
    %1889 = vmatpush1.msra.mxu0 %v1820
    %1890 = vmatprep.subr.mxu0 %v1817
    %1891 = vmatpush1.msra.mxu0 %v1816
    %1892 = vmatprep.subr.mxu0 %v1813
    %1893 = vmatpush1.msra.mxu0 %v1812
    %1894 = vmatprep.subr.mxu0 %v1809
    %1895 = vmatpush1.msra.mxu0 %v1808
    %1896 = vmatprep.subr.mxu0 %v1805
    %1897 = vmatpush1.msra.mxu0 %v1804
    %1898 = vmatprep.subr.mxu0 %v1801
    %1899 = vmatpush1.msra.mxu0 %v1800
    %1900 = vmatprep.subr.mxu0 %v1797
    %1901 = vmatpush1.msra.mxu0 %v1796
    %1902 = vmatprep.subr.mxu0 %v1793
    %1903 = vmatpush1.msra.mxu0 %v1792
    %1904 = vmatprep.subr.mxu0 %v1789
    %1905 = vmatpush1.msra.mxu0 %v1788
    %1906 = vmatprep.subr.mxu0 0.0
    %1907 = vmatpush2.msra.mxu0 0.0
    %1908 = vmatprep.subr.mxu0 0.0
    %1909 = vmatpush2.msra.mxu0 0.0
    %1910 = vmatprep.subr.mxu0 0.0
    %1911 = vmatpush2.msra.mxu0 0.0
    %1912 = vmatprep.subr.mxu0 0.0
    %1913 = vmatpush2.msra.mxu0 0.0
    %1914 = vmatprep.subr.mxu0 0.0
    %1915 = vmatpush2.msra.mxu0 0.0
    %1916 = vmatprep.subr.mxu0 0.0
    %1917 = vmatpush2.msra.mxu0 0.0
    %1918 = vmatprep.subr.mxu0 0.0
    %1919 = vmatpush2.msra.mxu0 0.0
    %1920 = vmatprep.subr.mxu0 0.0
    %1921 = vmatpush2.msra.mxu0 0.0
    %1922 = vmatprep.subr.mxu0 0.0
    %1923 = vmatpush2.msra.mxu0 0.0
    %1924 = vmatprep.subr.mxu0 0.0
    %1925 = vmatpush2.msra.mxu0 0.0
    %1926 = vmatprep.subr.mxu0 0.0
    %1927 = vmatpush2.msra.mxu0 0.0
    %1928 = vmatprep.subr.mxu0 0.0
    %1929 = vmatpush2.msra.mxu0 0.0
    %1930 = vmatprep.subr.mxu0 0.0
    %1931 = vmatpush2.msra.mxu0 0.0
    %1932 = vmatprep.subr.mxu0 0.0
    %1933 = vmatpush2.msra.mxu0 0.0
    %1934 = vmatprep.subr.mxu0 0.0
    %1935 = vmatpush2.msra.mxu0 0.0
    %1936 = vmatprep.subr.mxu0 0.0
    %1937 = vmatpush2.msra.mxu0 0.0
    %1938 = vmatprep.mubr.f32.mxu0 0.0
    %1939 = vmatmul.mubr.f32.gmra.mxu0 %v1780
    %v1940 = vpop.f32.mrf.mxu0
    %v1941 = vadd.f32 %v1857, %v1940
    %v1942 = vpop.f32.mrf.mxu0
    %v1943 = vadd.f32 %v1861, %v1942
    %1944 = vmatprep.mubr.f32.mxu0 0.0
    %1945 = vmatmul.mubr.f32.gmra.mxu0 %v1781
    %v1946 = vpop.f32.mrf.mxu0
    %v1947 = vadd.f32 %v1857, %v1946
    %v1948 = vpop.f32.mrf.mxu0
    %v1949 = vadd.f32 %v1861, %v1948
    %1950 = vmatprep.mubr.f32.mxu0 0.0
    %1951 = vmatmul.mubr.f32.gmra.mxu0 %v1782
    %v1952 = vpop.f32.mrf.mxu0
    %v1953 = vadd.f32 %v1857, %v1952
    %v1954 = vpop.f32.mrf.mxu0
    %v1955 = vadd.f32 %v1861, %v1954
    %1956 = vmatprep.mubr.f32.mxu0 0.0
    %1957 = vmatmul.mubr.f32.gmra.mxu0 %v1783
    %v1958 = vpop.f32.mrf.mxu0
    %v1959 = vadd.f32 %v1857, %v1958
    %v1960 = vpop.f32.mrf.mxu0
    %v1961 = vadd.f32 %v1861, %v1960
    %1962 = vmatprep.mubr.f32.mxu0 0.0
    %1963 = vmatmul.mubr.f32.gmra.mxu0 %v1784
    %v1964 = vpop.f32.mrf.mxu0
    %v1965 = vadd.f32 %v1857, %v1964
    %v1966 = vpop.f32.mrf.mxu0
    %v1967 = vadd.f32 %v1861, %v1966
    %1968 = vmatprep.mubr.f32.mxu0 0.0
    %1969 = vmatmul.mubr.f32.gmra.mxu0 %v1785
    %v1970 = vpop.f32.mrf.mxu0
    %v1971 = vadd.f32 %v1857, %v1970
    %v1972 = vpop.f32.mrf.mxu0
    %v1973 = vadd.f32 %v1861, %v1972
    %1974 = vmatprep.mubr.f32.mxu0 0.0
    %1975 = vmatmul.mubr.f32.gmra.mxu0 %v1786
    %v1976 = vpop.f32.mrf.mxu0
    %v1977 = vadd.f32 %v1857, %v1976
    %v1978 = vpop.f32.mrf.mxu0
    %v1979 = vadd.f32 %v1861, %v1978
    %1980 = vmatprep.mubr.f32.mxu0 0.0
    %1981 = vmatmul.mubr.f32.gmra.mxu0 %v1787
    %v1982 = vpop.f32.mrf.mxu0
    %v1983 = vadd.f32 %v1857, %v1982
    %v1984 = vpop.f32.mrf.mxu0
    %v1985 = vadd.f32 %v1861, %v1984
    %1986 = vdwg.mxu0
    %1987 = vmatprep.subr.mxu0 %v1851
    %1988 = vmatpush1.msra.mxu0 %v1850
    %1989 = vmatprep.subr.mxu0 %v1847
    %1990 = vmatpush1.msra.mxu0 %v1846
    %1991 = vmatprep.subr.mxu0 %v1843
    %1992 = vmatpush1.msra.mxu0 %v1842
    %1993 = vmatprep.subr.mxu0 %v1839
    %1994 = vmatpush1.msra.mxu0 %v1838
    %1995 = vmatprep.subr.mxu0 %v1835
    %1996 = vmatpush1.msra.mxu0 %v1834
    %1997 = vmatprep.subr.mxu0 %v1831
    %1998 = vmatpush1.msra.mxu0 %v1830
    %1999 = vmatprep.subr.mxu0 %v1827
    %2000 = vmatpush1.msra.mxu0 %v1826
    %2001 = vmatprep.subr.mxu0 %v1823
    %2002 = vmatpush1.msra.mxu0 %v1822
    %2003 = vmatprep.subr.mxu0 %v1819
    %2004 = vmatpush1.msra.mxu0 %v1818
    %2005 = vmatprep.subr.mxu0 %v1815
    %2006 = vmatpush1.msra.mxu0 %v1814
    %2007 = vmatprep.subr.mxu0 %v1811
    %2008 = vmatpush1.msra.mxu0 %v1810
    %2009 = vmatprep.subr.mxu0 %v1807
    %2010 = vmatpush1.msra.mxu0 %v1806
    %2011 = vmatprep.subr.mxu0 %v1803
    %2012 = vmatpush1.msra.mxu0 %v1802
    %2013 = vmatprep.subr.mxu0 %v1799
    %2014 = vmatpush1.msra.mxu0 %v1798
    %2015 = vmatprep.subr.mxu0 %v1795
    %2016 = vmatpush1.msra.mxu0 %v1794
    %2017 = vmatprep.subr.mxu0 %v1791
    %2018 = vmatpush1.msra.mxu0 %v1790
    %2019 = vmatprep.subr.mxu0 0.0
    %2020 = vmatpush2.msra.mxu0 0.0
    %2021 = vmatprep.subr.mxu0 0.0
    %2022 = vmatpush2.msra.mxu0 0.0
    %2023 = vmatprep.subr.mxu0 0.0
    %2024 = vmatpush2.msra.mxu0 0.0
    %2025 = vmatprep.subr.mxu0 0.0
    %2026 = vmatpush2.msra.mxu0 0.0
    %2027 = vmatprep.subr.mxu0 0.0
    %2028 = vmatpush2.msra.mxu0 0.0
    %2029 = vmatprep.subr.mxu0 0.0
    %2030 = vmatpush2.msra.mxu0 0.0
    %2031 = vmatprep.subr.mxu0 0.0
    %2032 = vmatpush2.msra.mxu0 0.0
    %2033 = vmatprep.subr.mxu0 0.0
    %2034 = vmatpush2.msra.mxu0 0.0
    %2035 = vmatprep.subr.mxu0 0.0
    %2036 = vmatpush2.msra.mxu0 0.0
    %2037 = vmatprep.subr.mxu0 0.0
    %2038 = vmatpush2.msra.mxu0 0.0
    %2039 = vmatprep.subr.mxu0 0.0
    %2040 = vmatpush2.msra.mxu0 0.0
    %2041 = vmatprep.subr.mxu0 0.0
    %2042 = vmatpush2.msra.mxu0 0.0
    %2043 = vmatprep.subr.mxu0 0.0
    %2044 = vmatpush2.msra.mxu0 0.0
    %2045 = vmatprep.subr.mxu0 0.0
    %2046 = vmatpush2.msra.mxu0 0.0
    %2047 = vmatprep.subr.mxu0 0.0
    %2048 = vmatpush2.msra.mxu0 0.0
    %2049 = vmatprep.subr.mxu0 0.0
    %2050 = vmatpush2.msra.mxu0 0.0
    %2051 = vmatprep.mubr.f32.mxu0 0.0
    %2052 = vmatmul.mubr.f32.gmra.mxu0 %v1780
    %v2053 = vpop.f32.mrf.mxu0
    %v2054 = vadd.f32 %v1865, %v2053
    %v2055 = vpop.f32.mrf.mxu0
    %v2056 = vadd.f32 %v1869, %v2055
    %2057 = vmatprep.mubr.f32.mxu0 0.0
    %2058 = vmatmul.mubr.f32.gmra.mxu0 %v1781
    %v2059 = vpop.f32.mrf.mxu0
    %v2060 = vadd.f32 %v1865, %v2059
    %v2061 = vpop.f32.mrf.mxu0
    %v2062 = vadd.f32 %v1869, %v2061
    %2063 = vmatprep.mubr.f32.mxu0 0.0
    %2064 = vmatmul.mubr.f32.gmra.mxu0 %v1782
    %v2065 = vpop.f32.mrf.mxu0
    %v2066 = vadd.f32 %v1865, %v2065
    %v2067 = vpop.f32.mrf.mxu0
    %v2068 = vadd.f32 %v1869, %v2067
    %2069 = vmatprep.mubr.f32.mxu0 0.0
    %2070 = vmatmul.mubr.f32.gmra.mxu0 %v1783
    %v2071 = vpop.f32.mrf.mxu0
    %v2072 = vadd.f32 %v1865, %v2071
    %v2073 = vpop.f32.mrf.mxu0
    %v2074 = vadd.f32 %v1869, %v2073
    %2075 = vmatprep.mubr.f32.mxu0 0.0
    %2076 = vmatmul.mubr.f32.gmra.mxu0 %v1784
    %v2077 = vpop.f32.mrf.mxu0
    %v2078 = vadd.f32 %v1865, %v2077
    %v2079 = vpop.f32.mrf.mxu0
    %v2080 = vadd.f32 %v1869, %v2079
    %2081 = vmatprep.mubr.f32.mxu0 0.0
    %2082 = vmatmul.mubr.f32.gmra.mxu0 %v1785
    %v2083 = vpop.f32.mrf.mxu0
    %v2084 = vadd.f32 %v1865, %v2083
    %v2085 = vpop.f32.mrf.mxu0
    %v2086 = vadd.f32 %v1869, %v2085
    %2087 = vmatprep.mubr.f32.mxu0 0.0
    %2088 = vmatmul.mubr.f32.gmra.mxu0 %v1786
    %v2089 = vpop.f32.mrf.mxu0
    %v2090 = vadd.f32 %v1865, %v2089
    %v2091 = vpop.f32.mrf.mxu0
    %v2092 = vadd.f32 %v1869, %v2091
    %2093 = vmatprep.mubr.f32.mxu0 0.0
    %2094 = vmatmul.mubr.f32.gmra.mxu0 %v1787
    %v2095 = vpop.f32.mrf.mxu0
    %v2096 = vadd.f32 %v1865, %v2095
    %v2097 = vpop.f32.mrf.mxu0
    %v2098 = vadd.f32 %v1869, %v2097
    %2099 = vdwg.mxu0
    %v2100 = vld [vmem:[#allocation7] sm:$0xff]
    %v2101 = vld [vmem:[#allocation7 + $0x8] sm:$0xff]
    %v2102 = vld [vmem:[#allocation7 + $0x10] sm:$0xff]
    %v2103 = vld [vmem:[#allocation7 + $0x18] sm:$0xff]
    %v2104 = vld [vmem:[#allocation7 + $0x20] sm:$0xff]
    %v2105 = vld [vmem:[#allocation7 + $0x28] sm:$0xff]
    %v2106 = vld [vmem:[#allocation7 + $0x30] sm:$0xff]
    %v2107 = vld [vmem:[#allocation7 + $0x38] sm:$0xff]
    %v2108 = vld [vmem:[#allocation7 + $0x40] sm:$0xff]
    %v2109 = vld [vmem:[#allocation7 + $0x48] sm:$0xff]
    %v2110 = vld [vmem:[#allocation7 + $0x50] sm:$0xff]
    %v2111 = vld [vmem:[#allocation7 + $0x58] sm:$0xff]
    %v2112 = vld [vmem:[#allocation7 + $0x60] sm:$0xff]
    %v2113 = vld [vmem:[#allocation7 + $0x68] sm:$0xff]
    %v2114 = vld [vmem:[#allocation7 + $0x70] sm:$0xff]
    %v2115 = vld [vmem:[#allocation7 + $0x78] sm:$0xff]
    %v2116 = vld [vmem:[#allocation7 + $0x80] sm:$0xff]
    %v2117 = vld [vmem:[#allocation7 + $0x88] sm:$0xff]
    %v2118 = vld [vmem:[#allocation7 + $0x90] sm:$0xff]
    %v2119 = vld [vmem:[#allocation7 + $0x98] sm:$0xff]
    %v2120 = vld [vmem:[#allocation7 + $0xa0] sm:$0xff]
    %v2121 = vld [vmem:[#allocation7 + $0xa8] sm:$0xff]
    %v2122 = vld [vmem:[#allocation7 + $0xb0] sm:$0xff]
    %v2123 = vld [vmem:[#allocation7 + $0xb8] sm:$0xff]
    %v2124 = vld [vmem:[#allocation7 + $0xc0] sm:$0xff]
    %v2125 = vld [vmem:[#allocation7 + $0xc8] sm:$0xff]
    %v2126 = vld [vmem:[#allocation7 + $0xd0] sm:$0xff]
    %v2127 = vld [vmem:[#allocation7 + $0xd8] sm:$0xff]
    %v2128 = vld [vmem:[#allocation7 + $0xe0] sm:$0xff]
    %v2129 = vld [vmem:[#allocation7 + $0xe8] sm:$0xff]
    %v2130 = vld [vmem:[#allocation7 + $0xf0] sm:$0xff]
    %v2131 = vld [vmem:[#allocation7 + $0xf8] sm:$0xff]
    %v2132 = vld [vmem:[#allocation7 + $0x100] sm:$0xff]
    %v2133 = vld [vmem:[#allocation7 + $0x108] sm:$0xff]
    %v2134 = vld [vmem:[#allocation7 + $0x110] sm:$0xff]
    %v2135 = vld [vmem:[#allocation7 + $0x118] sm:$0xff]
    %v2136 = vld [vmem:[#allocation7 + $0x120] sm:$0xff]
    %v2137 = vld [vmem:[#allocation7 + $0x128] sm:$0xff]
    %v2138 = vld [vmem:[#allocation7 + $0x130] sm:$0xff]
    %v2139 = vld [vmem:[#allocation7 + $0x138] sm:$0xff]
    %v2140 = vld [vmem:[#allocation7 + $0x140] sm:$0xff]
    %v2141 = vld [vmem:[#allocation7 + $0x148] sm:$0xff]
    %v2142 = vld [vmem:[#allocation7 + $0x150] sm:$0xff]
    %v2143 = vld [vmem:[#allocation7 + $0x158] sm:$0xff]
    %v2144 = vld [vmem:[#allocation7 + $0x160] sm:$0xff]
    %v2145 = vld [vmem:[#allocation7 + $0x168] sm:$0xff]
    %v2146 = vld [vmem:[#allocation7 + $0x170] sm:$0xff]
    %v2147 = vld [vmem:[#allocation7 + $0x178] sm:$0xff]
    %v2148 = vld [vmem:[#allocation7 + $0x180] sm:$0xff]
    %v2149 = vld [vmem:[#allocation7 + $0x188] sm:$0xff]
    %v2150 = vld [vmem:[#allocation7 + $0x190] sm:$0xff]
    %v2151 = vld [vmem:[#allocation7 + $0x198] sm:$0xff]
    %v2152 = vld [vmem:[#allocation7 + $0x1a0] sm:$0xff]
    %v2153 = vld [vmem:[#allocation7 + $0x1a8] sm:$0xff]
    %v2154 = vld [vmem:[#allocation7 + $0x1b0] sm:$0xff]
    %v2155 = vld [vmem:[#allocation7 + $0x1b8] sm:$0xff]
    %v2156 = vld [vmem:[#allocation7 + $0x1c0] sm:$0xff]
    %v2157 = vld [vmem:[#allocation7 + $0x1c8] sm:$0xff]
    %v2158 = vld [vmem:[#allocation7 + $0x1d0] sm:$0xff]
    %v2159 = vld [vmem:[#allocation7 + $0x1d8] sm:$0xff]
    %v2160 = vld [vmem:[#allocation7 + $0x1e0] sm:$0xff]
    %v2161 = vld [vmem:[#allocation7 + $0x1e8] sm:$0xff]
    %v2162 = vld [vmem:[#allocation7 + $0x1f0] sm:$0xff]
    %v2163 = vld [vmem:[#allocation7 + $0x1f8] sm:$0xff]
    %2164 = vmatprep.subr.mxu0 %v2161
    %2165 = vmatpush1.msra.mxu0 %v2160
    %2166 = vmatprep.subr.mxu0 %v2157
    %2167 = vmatpush1.msra.mxu0 %v2156
    %2168 = vmatprep.subr.mxu0 %v2153
    %2169 = vmatpush1.msra.mxu0 %v2152
    %2170 = vmatprep.subr.mxu0 %v2149
    %2171 = vmatpush1.msra.mxu0 %v2148
    %2172 = vmatprep.subr.mxu0 %v2145
    %2173 = vmatpush1.msra.mxu0 %v2144
    %2174 = vmatprep.subr.mxu0 %v2141
    %2175 = vmatpush1.msra.mxu0 %v2140
    %2176 = vmatprep.subr.mxu0 %v2137
    %2177 = vmatpush1.msra.mxu0 %v2136
    %2178 = vmatprep.subr.mxu0 %v2133
    %2179 = vmatpush1.msra.mxu0 %v2132
    %2180 = vmatprep.subr.mxu0 %v2129
    %2181 = vmatpush1.msra.mxu0 %v2128
    %2182 = vmatprep.subr.mxu0 %v2125
    %2183 = vmatpush1.msra.mxu0 %v2124
    %2184 = vmatprep.subr.mxu0 %v2121
    %2185 = vmatpush1.msra.mxu0 %v2120
    %2186 = vmatprep.subr.mxu0 %v2117
    %2187 = vmatpush1.msra.mxu0 %v2116
    %2188 = vmatprep.subr.mxu0 %v2113
    %2189 = vmatpush1.msra.mxu0 %v2112
    %2190 = vmatprep.subr.mxu0 %v2109
    %2191 = vmatpush1.msra.mxu0 %v2108
    %2192 = vmatprep.subr.mxu0 %v2105
    %2193 = vmatpush1.msra.mxu0 %v2104
    %2194 = vmatprep.subr.mxu0 %v2101
    %2195 = vmatpush1.msra.mxu0 %v2100
    %2196 = vmatprep.subr.mxu0 0.0
    %2197 = vmatpush2.msra.mxu0 0.0
    %2198 = vmatprep.subr.mxu0 0.0
    %2199 = vmatpush2.msra.mxu0 0.0
    %2200 = vmatprep.subr.mxu0 0.0
    %2201 = vmatpush2.msra.mxu0 0.0
    %2202 = vmatprep.subr.mxu0 0.0
    %2203 = vmatpush2.msra.mxu0 0.0
    %2204 = vmatprep.subr.mxu0 0.0
    %2205 = vmatpush2.msra.mxu0 0.0
    %2206 = vmatprep.subr.mxu0 0.0
    %2207 = vmatpush2.msra.mxu0 0.0
    %2208 = vmatprep.subr.mxu0 0.0
    %2209 = vmatpush2.msra.mxu0 0.0
    %2210 = vmatprep.subr.mxu0 0.0
    %2211 = vmatpush2.msra.mxu0 0.0
    %2212 = vmatprep.subr.mxu0 0.0
    %2213 = vmatpush2.msra.mxu0 0.0
    %2214 = vmatprep.subr.mxu0 0.0
    %2215 = vmatpush2.msra.mxu0 0.0
    %2216 = vmatprep.subr.mxu0 0.0
    %2217 = vmatpush2.msra.mxu0 0.0
    %2218 = vmatprep.subr.mxu0 0.0
    %2219 = vmatpush2.msra.mxu0 0.0
    %2220 = vmatprep.subr.mxu0 0.0
    %2221 = vmatpush2.msra.mxu0 0.0
    %2222 = vmatprep.subr.mxu0 0.0
    %2223 = vmatpush2.msra.mxu0 0.0
    %2224 = vmatprep.subr.mxu0 0.0
    %2225 = vmatpush2.msra.mxu0 0.0
    %2226 = vmatprep.subr.mxu0 0.0
    %2227 = vmatpush2.msra.mxu0 0.0
    %2228 = vmatprep.mubr.f32.mxu0 0.0
    %2229 = vmatmul.mubr.f32.gmra.mxu0 %v1780
    %v2230 = vpop.f32.mrf.mxu0
    %v2231 = vadd.f32 0.0, %v2230
    %v2232 = vpop.f32.mrf.mxu0
    %v2233 = vadd.f32 0.0, %v2232
    %2234 = vmatprep.mubr.f32.mxu0 0.0
    %2235 = vmatmul.mubr.f32.gmra.mxu0 %v1781
    %v2236 = vpop.f32.mrf.mxu0
    %v2237 = vadd.f32 0.0, %v2236
    %v2238 = vpop.f32.mrf.mxu0
    %v2239 = vadd.f32 0.0, %v2238
    %2240 = vmatprep.mubr.f32.mxu0 0.0
    %2241 = vmatmul.mubr.f32.gmra.mxu0 %v1782
    %v2242 = vpop.f32.mrf.mxu0
    %v2243 = vadd.f32 0.0, %v2242
    %v2244 = vpop.f32.mrf.mxu0
    %v2245 = vadd.f32 0.0, %v2244
    %2246 = vmatprep.mubr.f32.mxu0 0.0
    %2247 = vmatmul.mubr.f32.gmra.mxu0 %v1783
    %v2248 = vpop.f32.mrf.mxu0
    %v2249 = vadd.f32 0.0, %v2248
    %v2250 = vpop.f32.mrf.mxu0
    %v2251 = vadd.f32 0.0, %v2250
    %2252 = vmatprep.mubr.f32.mxu0 0.0
    %2253 = vmatmul.mubr.f32.gmra.mxu0 %v1784
    %v2254 = vpop.f32.mrf.mxu0
    %v2255 = vadd.f32 0.0, %v2254
    %v2256 = vpop.f32.mrf.mxu0
    %v2257 = vadd.f32 0.0, %v2256
    %2258 = vmatprep.mubr.f32.mxu0 0.0
    %2259 = vmatmul.mubr.f32.gmra.mxu0 %v1785
    %v2260 = vpop.f32.mrf.mxu0
    %v2261 = vadd.f32 0.0, %v2260
    %v2262 = vpop.f32.mrf.mxu0
    %v2263 = vadd.f32 0.0, %v2262
    %2264 = vmatprep.mubr.f32.mxu0 0.0
    %2265 = vmatmul.mubr.f32.gmra.mxu0 %v1786
    %v2266 = vpop.f32.mrf.mxu0
    %v2267 = vadd.f32 0.0, %v2266
    %v2268 = vpop.f32.mrf.mxu0
    %v2269 = vadd.f32 0.0, %v2268
    %2270 = vmatprep.mubr.f32.mxu0 0.0
    %2271 = vmatmul.mubr.f32.gmra.mxu0 %v1787
    %v2272 = vpop.f32.mrf.mxu0
    %v2273 = vadd.f32 0.0, %v2272
    %v2274 = vpop.f32.mrf.mxu0
    %v2275 = vadd.f32 0.0, %v2274
    %2276 = vdwg.mxu0
    %2277 = vmatprep.subr.mxu0 %v2163
    %2278 = vmatpush1.msra.mxu0 %v2162
    %2279 = vmatprep.subr.mxu0 %v2159
    %2280 = vmatpush1.msra.mxu0 %v2158
    %2281 = vmatprep.subr.mxu0 %v2155
    %2282 = vmatpush1.msra.mxu0 %v2154
    %2283 = vmatprep.subr.mxu0 %v2151
    %2284 = vmatpush1.msra.mxu0 %v2150
    %2285 = vmatprep.subr.mxu0 %v2147
    %2286 = vmatpush1.msra.mxu0 %v2146
    %2287 = vmatprep.subr.mxu0 %v2143
    %2288 = vmatpush1.msra.mxu0 %v2142
    %2289 = vmatprep.subr.mxu0 %v2139
    %2290 = vmatpush1.msra.mxu0 %v2138
    %2291 = vmatprep.subr.mxu0 %v2135
    %2292 = vmatpush1.msra.mxu0 %v2134
    %2293 = vmatprep.subr.mxu0 %v2131
    %2294 = vmatpush1.msra.mxu0 %v2130
    %2295 = vmatprep.subr.mxu0 %v2127
    %2296 = vmatpush1.msra.mxu0 %v2126
    %2297 = vmatprep.subr.mxu0 %v2123
    %2298 = vmatpush1.msra.mxu0 %v2122
    %2299 = vmatprep.subr.mxu0 %v2119
    %2300 = vmatpush1.msra.mxu0 %v2118
    %2301 = vmatprep.subr.mxu0 %v2115
    %2302 = vmatpush1.msra.mxu0 %v2114
    %2303 = vmatprep.subr.mxu0 %v2111
    %2304 = vmatpush1.msra.mxu0 %v2110
    %2305 = vmatprep.subr.mxu0 %v2107
    %2306 = vmatpush1.msra.mxu0 %v2106
    %2307 = vmatprep.subr.mxu0 %v2103
    %2308 = vmatpush1.msra.mxu0 %v2102
    %2309 = vmatprep.subr.mxu0 0.0
    %2310 = vmatpush2.msra.mxu0 0.0
    %2311 = vmatprep.subr.mxu0 0.0
    %2312 = vmatpush2.msra.mxu0 0.0
    %2313 = vmatprep.subr.mxu0 0.0
    %2314 = vmatpush2.msra.mxu0 0.0
    %2315 = vmatprep.subr.mxu0 0.0
    %2316 = vmatpush2.msra.mxu0 0.0
    %2317 = vmatprep.subr.mxu0 0.0
    %2318 = vmatpush2.msra.mxu0 0.0
    %2319 = vmatprep.subr.mxu0 0.0
    %2320 = vmatpush2.msra.mxu0 0.0
    %2321 = vmatprep.subr.mxu0 0.0
    %2322 = vmatpush2.msra.mxu0 0.0
    %2323 = vmatprep.subr.mxu0 0.0
    %2324 = vmatpush2.msra.mxu0 0.0
    %2325 = vmatprep.subr.mxu0 0.0
    %2326 = vmatpush2.msra.mxu0 0.0
    %2327 = vmatprep.subr.mxu0 0.0
    %2328 = vmatpush2.msra.mxu0 0.0
    %2329 = vmatprep.subr.mxu0 0.0
    %2330 = vmatpush2.msra.mxu0 0.0
    %2331 = vmatprep.subr.mxu0 0.0
    %2332 = vmatpush2.msra.mxu0 0.0
    %2333 = vmatprep.subr.mxu0 0.0
    %2334 = vmatpush2.msra.mxu0 0.0
    %2335 = vmatprep.subr.mxu0 0.0
    %2336 = vmatpush2.msra.mxu0 0.0
    %2337 = vmatprep.subr.mxu0 0.0
    %2338 = vmatpush2.msra.mxu0 0.0
    %2339 = vmatprep.subr.mxu0 0.0
    %2340 = vmatpush2.msra.mxu0 0.0
    %2341 = vmatprep.mubr.f32.mxu0 0.0
    %2342 = vmatmul.mubr.f32.gmra.mxu0 %v1780
    %v2343 = vpop.f32.mrf.mxu0
    %v2344 = vadd.f32 0.0, %v2343
    %v2345 = vpop.f32.mrf.mxu0
    %v2346 = vadd.f32 0.0, %v2345
    %2347 = vmatprep.mubr.f32.mxu0 0.0
    %2348 = vmatmul.mubr.f32.gmra.mxu0 %v1781
    %v2349 = vpop.f32.mrf.mxu0
    %v2350 = vadd.f32 0.0, %v2349
    %v2351 = vpop.f32.mrf.mxu0
    %v2352 = vadd.f32 0.0, %v2351
    %2353 = vmatprep.mubr.f32.mxu0 0.0
    %2354 = vmatmul.mubr.f32.gmra.mxu0 %v1782
    %v2355 = vpop.f32.mrf.mxu0
    %v2356 = vadd.f32 0.0, %v2355
    %v2357 = vpop.f32.mrf.mxu0
    %v2358 = vadd.f32 0.0, %v2357
    %2359 = vmatprep.mubr.f32.mxu0 0.0
    %2360 = vmatmul.mubr.f32.gmra.mxu0 %v1783
    %v2361 = vpop.f32.mrf.mxu0
    %v2362 = vadd.f32 0.0, %v2361
    %v2363 = vpop.f32.mrf.mxu0
    %v2364 = vadd.f32 0.0, %v2363
    %2365 = vmatprep.mubr.f32.mxu0 0.0
    %2366 = vmatmul.mubr.f32.gmra.mxu0 %v1784
    %v2367 = vpop.f32.mrf.mxu0
    %v2368 = vadd.f32 0.0, %v2367
    %v2369 = vpop.f32.mrf.mxu0
    %v2370 = vadd.f32 0.0, %v2369
    %2371 = vmatprep.mubr.f32.mxu0 0.0
    %2372 = vmatmul.mubr.f32.gmra.mxu0 %v1785
    %v2373 = vpop.f32.mrf.mxu0
    %v2374 = vadd.f32 0.0, %v2373
    %v2375 = vpop.f32.mrf.mxu0
    %v2376 = vadd.f32 0.0, %v2375
    %2377 = vmatprep.mubr.f32.mxu0 0.0
    %2378 = vmatmul.mubr.f32.gmra.mxu0 %v1786
    %v2379 = vpop.f32.mrf.mxu0
    %v2380 = vadd.f32 0.0, %v2379
    %v2381 = vpop.f32.mrf.mxu0
    %v2382 = vadd.f32 0.0, %v2381
    %2383 = vmatprep.mubr.f32.mxu0 0.0
    %2384 = vmatmul.mubr.f32.gmra.mxu0 %v1787
    %v2385 = vpop.f32.mrf.mxu0
    %v2386 = vadd.f32 0.0, %v2385
    %v2387 = vpop.f32.mrf.mxu0
    %v2388 = vadd.f32 0.0, %v2387
    %2389 = vdwg.mxu0
    %v2390 = vld [vmem:[#allocation8] sm:$0xff]
    %v2391 = vld [vmem:[#allocation8 + $0x8] sm:$0xff]
    %v2392 = vld [vmem:[#allocation8 + $0x10] sm:$0xff]
    %v2393 = vld [vmem:[#allocation8 + $0x18] sm:$0xff]
    %v2394 = vld [vmem:[#allocation8 + $0x20] sm:$0xff]
    %v2395 = vld [vmem:[#allocation8 + $0x28] sm:$0xff]
    %v2396 = vld [vmem:[#allocation8 + $0x30] sm:$0xff]
    %v2397 = vld [vmem:[#allocation8 + $0x38] sm:$0xff]
    %v2398 = vld [vmem:[#allocation8 + $0x40] sm:$0xff]
    %v2399 = vld [vmem:[#allocation8 + $0x48] sm:$0xff]
    %v2400 = vld [vmem:[#allocation8 + $0x50] sm:$0xff]
    %v2401 = vld [vmem:[#allocation8 + $0x58] sm:$0xff]
    %v2402 = vld [vmem:[#allocation8 + $0x60] sm:$0xff]
    %v2403 = vld [vmem:[#allocation8 + $0x68] sm:$0xff]
    %v2404 = vld [vmem:[#allocation8 + $0x70] sm:$0xff]
    %v2405 = vld [vmem:[#allocation8 + $0x78] sm:$0xff]
    %v2406 = vld [vmem:[#allocation8 + $0x80] sm:$0xff]
    %v2407 = vld [vmem:[#allocation8 + $0x88] sm:$0xff]
    %v2408 = vld [vmem:[#allocation8 + $0x90] sm:$0xff]
    %v2409 = vld [vmem:[#allocation8 + $0x98] sm:$0xff]
    %v2410 = vld [vmem:[#allocation8 + $0xa0] sm:$0xff]
    %v2411 = vld [vmem:[#allocation8 + $0xa8] sm:$0xff]
    %v2412 = vld [vmem:[#allocation8 + $0xb0] sm:$0xff]
    %v2413 = vld [vmem:[#allocation8 + $0xb8] sm:$0xff]
    %v2414 = vld [vmem:[#allocation8 + $0xc0] sm:$0xff]
    %v2415 = vld [vmem:[#allocation8 + $0xc8] sm:$0xff]
    %v2416 = vld [vmem:[#allocation8 + $0xd0] sm:$0xff]
    %v2417 = vld [vmem:[#allocation8 + $0xd8] sm:$0xff]
    %v2418 = vld [vmem:[#allocation8 + $0xe0] sm:$0xff]
    %v2419 = vld [vmem:[#allocation8 + $0xe8] sm:$0xff]
    %v2420 = vld [vmem:[#allocation8 + $0xf0] sm:$0xff]
    %v2421 = vld [vmem:[#allocation8 + $0xf8] sm:$0xff]
    %v2422 = vld [vmem:[#allocation8 + $0x100] sm:$0xff]
    %v2423 = vld [vmem:[#allocation8 + $0x108] sm:$0xff]
    %v2424 = vld [vmem:[#allocation8 + $0x110] sm:$0xff]
    %v2425 = vld [vmem:[#allocation8 + $0x118] sm:$0xff]
    %v2426 = vld [vmem:[#allocation8 + $0x120] sm:$0xff]
    %v2427 = vld [vmem:[#allocation8 + $0x128] sm:$0xff]
    %v2428 = vld [vmem:[#allocation8 + $0x130] sm:$0xff]
    %v2429 = vld [vmem:[#allocation8 + $0x138] sm:$0xff]
    %v2430 = vld [vmem:[#allocation8 + $0x140] sm:$0xff]
    %v2431 = vld [vmem:[#allocation8 + $0x148] sm:$0xff]
    %v2432 = vld [vmem:[#allocation8 + $0x150] sm:$0xff]
    %v2433 = vld [vmem:[#allocation8 + $0x158] sm:$0xff]
    %v2434 = vld [vmem:[#allocation8 + $0x160] sm:$0xff]
    %v2435 = vld [vmem:[#allocation8 + $0x168] sm:$0xff]
    %v2436 = vld [vmem:[#allocation8 + $0x170] sm:$0xff]
    %v2437 = vld [vmem:[#allocation8 + $0x178] sm:$0xff]
    %v2438 = vld [vmem:[#allocation8 + $0x180] sm:$0xff]
    %v2439 = vld [vmem:[#allocation8 + $0x188] sm:$0xff]
    %v2440 = vld [vmem:[#allocation8 + $0x190] sm:$0xff]
    %v2441 = vld [vmem:[#allocation8 + $0x198] sm:$0xff]
    %v2442 = vld [vmem:[#allocation8 + $0x1a0] sm:$0xff]
    %v2443 = vld [vmem:[#allocation8 + $0x1a8] sm:$0xff]
    %v2444 = vld [vmem:[#allocation8 + $0x1b0] sm:$0xff]
    %v2445 = vld [vmem:[#allocation8 + $0x1b8] sm:$0xff]
    %v2446 = vld [vmem:[#allocation8 + $0x1c0] sm:$0xff]
    %v2447 = vld [vmem:[#allocation8 + $0x1c8] sm:$0xff]
    %v2448 = vld [vmem:[#allocation8 + $0x1d0] sm:$0xff]
    %v2449 = vld [vmem:[#allocation8 + $0x1d8] sm:$0xff]
    %v2450 = vld [vmem:[#allocation8 + $0x1e0] sm:$0xff]
    %v2451 = vld [vmem:[#allocation8 + $0x1e8] sm:$0xff]
    %v2452 = vld [vmem:[#allocation8 + $0x1f0] sm:$0xff]
    %v2453 = vld [vmem:[#allocation8 + $0x1f8] sm:$0xff]
    %v2454 = vlaneseq
    %v2455 = vand.u32 %v2454, 127
    %vm2456 = vcmp.lt.s32.totalorder %v2455, 64
    %v2457 = vsel %vm2456, 1, 0
    %v2458 = vcvt.s32.f32 %v2457
    %v2459 = vadd.f32 %v1941, %v2273
    %v2460 = vadd.f32 %v1943, %v2275
    %v2461 = vadd.f32 %v2054, %v2386
    %v2462 = vadd.f32 %v2056, %v2388
    %2463 = vmatprep.subr.mxu0 %v2451
    %2464 = vmatpush1.msra.mxu0 %v2450
    %2465 = vmatprep.subr.mxu0 %v2447
    %2466 = vmatpush1.msra.mxu0 %v2446
    %2467 = vmatprep.subr.mxu0 %v2443
    %2468 = vmatpush1.msra.mxu0 %v2442
    %2469 = vmatprep.subr.mxu0 %v2439
    %2470 = vmatpush1.msra.mxu0 %v2438
    %2471 = vmatprep.subr.mxu0 %v2435
    %2472 = vmatpush1.msra.mxu0 %v2434
    %2473 = vmatprep.subr.mxu0 %v2431
    %2474 = vmatpush1.msra.mxu0 %v2430
    %2475 = vmatprep.subr.mxu0 %v2427
    %2476 = vmatpush1.msra.mxu0 %v2426
    %2477 = vmatprep.subr.mxu0 %v2423
    %2478 = vmatpush1.msra.mxu0 %v2422
    %2479 = vmatprep.subr.mxu0 %v2419
    %2480 = vmatpush1.msra.mxu0 %v2418
    %2481 = vmatprep.subr.mxu0 %v2415
    %2482 = vmatpush1.msra.mxu0 %v2414
    %2483 = vmatprep.subr.mxu0 %v2411
    %2484 = vmatpush1.msra.mxu0 %v2410
    %2485 = vmatprep.subr.mxu0 %v2407
    %2486 = vmatpush1.msra.mxu0 %v2406
    %2487 = vmatprep.subr.mxu0 %v2403
    %2488 = vmatpush1.msra.mxu0 %v2402
    %2489 = vmatprep.subr.mxu0 %v2399
    %2490 = vmatpush1.msra.mxu0 %v2398
    %2491 = vmatprep.subr.mxu0 %v2395
    %2492 = vmatpush1.msra.mxu0 %v2394
    %2493 = vmatprep.subr.mxu0 %v2391
    %2494 = vmatpush1.msra.mxu0 %v2390
    %2495 = vmatprep.subr.mxu0 0.0
    %2496 = vmatpush2.msra.mxu0 0.0
    %2497 = vmatprep.subr.mxu0 0.0
    %2498 = vmatpush2.msra.mxu0 0.0
    %2499 = vmatprep.subr.mxu0 0.0
    %2500 = vmatpush2.msra.mxu0 0.0
    %2501 = vmatprep.subr.mxu0 0.0
    %2502 = vmatpush2.msra.mxu0 0.0
    %2503 = vmatprep.subr.mxu0 0.0
    %2504 = vmatpush2.msra.mxu0 0.0
    %2505 = vmatprep.subr.mxu0 0.0
    %2506 = vmatpush2.msra.mxu0 0.0
    %2507 = vmatprep.subr.mxu0 0.0
    %2508 = vmatpush2.msra.mxu0 0.0
    %2509 = vmatprep.subr.mxu0 0.0
    %2510 = vmatpush2.msra.mxu0 0.0
    %2511 = vmatprep.subr.mxu0 0.0
    %2512 = vmatpush2.msra.mxu0 0.0
    %2513 = vmatprep.subr.mxu0 0.0
    %2514 = vmatpush2.msra.mxu0 0.0
    %2515 = vmatprep.subr.mxu0 0.0
    %2516 = vmatpush2.msra.mxu0 0.0
    %2517 = vmatprep.subr.mxu0 0.0
    %2518 = vmatpush2.msra.mxu0 0.0
    %2519 = vmatprep.subr.mxu0 0.0
    %2520 = vmatpush2.msra.mxu0 0.0
    %2521 = vmatprep.subr.mxu0 0.0
    %2522 = vmatpush2.msra.mxu0 0.0
    %2523 = vmatprep.subr.mxu0 0.0
    %2524 = vmatpush2.msra.mxu0 0.0
    %2525 = vmatprep.subr.mxu0 0.0
    %2526 = vmatpush2.msra.mxu0 0.0
    %2527 = vmatprep.mubr.f32.mxu0 0.0
    %2528 = vmatmul.mubr.f32.gmra.mxu0 0.0
    %v2529 = vpop.f32.mrf.mxu0
    %v2530 = vadd.f32 0.0, %v2529
    %v2531 = vpop.f32.mrf.mxu0
    %v2532 = vadd.f32 0.0, %v2531
    %2533 = vdwg.mxu0
    %2534 = vmatprep.subr.mxu0 %v2453
    %2535 = vmatpush1.msra.mxu0 %v2452
    %2536 = vmatprep.subr.mxu0 %v2449
    %2537 = vmatpush1.msra.mxu0 %v2448
    %2538 = vmatprep.subr.mxu0 %v2445
    %2539 = vmatpush1.msra.mxu0 %v2444
    %2540 = vmatprep.subr.mxu0 %v2441
    %2541 = vmatpush1.msra.mxu0 %v2440
    %2542 = vmatprep.subr.mxu0 %v2437
    %2543 = vmatpush1.msra.mxu0 %v2436
    %2544 = vmatprep.subr.mxu0 %v2433
    %2545 = vmatpush1.msra.mxu0 %v2432
    %2546 = vmatprep.subr.mxu0 %v2429
    %2547 = vmatpush1.msra.mxu0 %v2428
    %2548 = vmatprep.subr.mxu0 %v2425
    %2549 = vmatpush1.msra.mxu0 %v2424
    %2550 = vmatprep.subr.mxu0 %v2421
    %2551 = vmatpush1.msra.mxu0 %v2420
    %2552 = vmatprep.subr.mxu0 %v2417
    %2553 = vmatpush1.msra.mxu0 %v2416
    %2554 = vmatprep.subr.mxu0 %v2413
    %2555 = vmatpush1.msra.mxu0 %v2412
    %2556 = vmatprep.subr.mxu0 %v2409
    %2557 = vmatpush1.msra.mxu0 %v2408
    %2558 = vmatprep.subr.mxu0 %v2405
    %2559 = vmatpush1.msra.mxu0 %v2404
    %2560 = vmatprep.subr.mxu0 %v2401
    %2561 = vmatpush1.msra.mxu0 %v2400
    %2562 = vmatprep.subr.mxu0 %v2397
    %2563 = vmatpush1.msra.mxu0 %v2396
    %2564 = vmatprep.subr.mxu0 %v2393
    %2565 = vmatpush1.msra.mxu0 %v2392
    %2566 = vmatprep.subr.mxu0 0.0
    %2567 = vmatpush2.msra.mxu0 0.0
    %2568 = vmatprep.subr.mxu0 0.0
    %2569 = vmatpush2.msra.mxu0 0.0
    %2570 = vmatprep.subr.mxu0 0.0
    %2571 = vmatpush2.msra.mxu0 0.0
    %2572 = vmatprep.subr.mxu0 0.0
    %2573 = vmatpush2.msra.mxu0 0.0
    %2574 = vmatprep.subr.mxu0 0.0
    %2575 = vmatpush2.msra.mxu0 0.0
    %2576 = vmatprep.subr.mxu0 0.0
    %2577 = vmatpush2.msra.mxu0 0.0
    %2578 = vmatprep.subr.mxu0 0.0
    %2579 = vmatpush2.msra.mxu0 0.0
    %2580 = vmatprep.subr.mxu0 0.0
    %2581 = vmatpush2.msra.mxu0 0.0
    %2582 = vmatprep.subr.mxu0 0.0
    %2583 = vmatpush2.msra.mxu0 0.0
    %2584 = vmatprep.subr.mxu0 0.0
    %2585 = vmatpush2.msra.mxu0 0.0
    %2586 = vmatprep.subr.mxu0 0.0
    %2587 = vmatpush2.msra.mxu0 0.0
    %2588 = vmatprep.subr.mxu0 0.0
    %2589 = vmatpush2.msra.mxu0 0.0
    %2590 = vmatprep.subr.mxu0 0.0
    %2591 = vmatpush2.msra.mxu0 0.0
    %2592 = vmatprep.subr.mxu0 0.0
    %2593 = vmatpush2.msra.mxu0 0.0
    %2594 = vmatprep.subr.mxu0 0.0
    %2595 = vmatpush2.msra.mxu0 0.0
    %2596 = vmatprep.subr.mxu0 0.0
    %2597 = vmatpush2.msra.mxu0 0.0
    %2598 = vmatprep.mubr.f32.mxu0 0.0
    %2599 = vmatmul.mubr.f32.gmra.mxu0 0.0
    %v2600 = vpop.f32.mrf.mxu0
    %v2601 = vadd.f32 0.0, %v2600
    %v2602 = vpop.f32.mrf.mxu0
    %v2603 = vadd.f32 0.0, %v2602
    %2604 = vdwg.mxu0
    %v2605 = vadd.f32 %v2459, %v2530
    %v2606 = vadd.f32 %v2460, %v2532
    %v2607 = vadd.f32 %v2461, %v2601
    %v2608 = vadd.f32 %v2462, %v2603
    %v2609 = vxor.u32 %v2605, 2147483648
    %v2610 = vxor.u32 %v2606, 2147483648
    %v2611 = vxor.u32 %v2607, 2147483648
    %v2612 = vmul.f32 %v2609, 1.442695
    %v2613 = vpow.pop %v2612
    %v2614 = vmul.f32 %v2610, 1.442695
    %v2615 = vpow.pop %v2614
    %v2616 = vmul.f32 %v2611, 1.442695
    %v2617 = vpow.pop %v2616
    %v2618 = vadd.f32 %v2613, 1.0
    %v2619 = vadd.f32 %v2615, 1.0
    %v2620 = vadd.f32 %v2617, 1.0
    %v2621 = vrcp.pop %v2618
    %v2622 = vmul.f32 1.0, %v2621
    %v2623 = vrcp.pop %v2619
    %v2624 = vmul.f32 1.0, %v2623
    %v2625 = vrcp.pop %v2620
    %v2626 = vmul.f32 1.0, %v2625
    %v2627 = vtanh.pop %v2608
    %v2628 = vmul.f32 %v2624, 0.0
    %v2629 = vmul.f32 %v2622, %v2627
    %v2630 = vadd.f32 %v2628, %v2629
    %v2631 = vtanh.pop %v2630
    %v2632 = vmul.f32 %v2626, %v2631
    %v2633 = vadd.f32 %v1947, %v2267
    %v2634 = vadd.f32 %v1949, %v2269
    %v2635 = vadd.f32 %v2060, %v2380
    %v2636 = vadd.f32 %v2062, %v2382
    %2637 = vmatprep.subr.mxu0 %v2451
    %2638 = vmatpush1.msra.mxu0 %v2450
    %2639 = vmatprep.subr.mxu0 %v2447
    %2640 = vmatpush1.msra.mxu0 %v2446
    %2641 = vmatprep.subr.mxu0 %v2443
    %2642 = vmatpush1.msra.mxu0 %v2442
    %2643 = vmatprep.subr.mxu0 %v2439
    %2644 = vmatpush1.msra.mxu0 %v2438
    %2645 = vmatprep.subr.mxu0 %v2435
    %2646 = vmatpush1.msra.mxu0 %v2434
    %2647 = vmatprep.subr.mxu0 %v2431
    %2648 = vmatpush1.msra.mxu0 %v2430
    %2649 = vmatprep.subr.mxu0 %v2427
    %2650 = vmatpush1.msra.mxu0 %v2426
    %2651 = vmatprep.subr.mxu0 %v2423
    %2652 = vmatpush1.msra.mxu0 %v2422
    %2653 = vmatprep.subr.mxu0 %v2419
    %2654 = vmatpush1.msra.mxu0 %v2418
    %2655 = vmatprep.subr.mxu0 %v2415
    %2656 = vmatpush1.msra.mxu0 %v2414
    %2657 = vmatprep.subr.mxu0 %v2411
    %2658 = vmatpush1.msra.mxu0 %v2410
    %2659 = vmatprep.subr.mxu0 %v2407
    %2660 = vmatpush1.msra.mxu0 %v2406
    %2661 = vmatprep.subr.mxu0 %v2403
    %2662 = vmatpush1.msra.mxu0 %v2402
    %2663 = vmatprep.subr.mxu0 %v2399
    %2664 = vmatpush1.msra.mxu0 %v2398
    %2665 = vmatprep.subr.mxu0 %v2395
    %2666 = vmatpush1.msra.mxu0 %v2394
    %2667 = vmatprep.subr.mxu0 %v2391
    %2668 = vmatpush1.msra.mxu0 %v2390
    %2669 = vmatprep.subr.mxu0 0.0
    %2670 = vmatpush2.msra.mxu0 0.0
    %2671 = vmatprep.subr.mxu0 0.0
    %2672 = vmatpush2.msra.mxu0 0.0
    %2673 = vmatprep.subr.mxu0 0.0
    %2674 = vmatpush2.msra.mxu0 0.0
    %2675 = vmatprep.subr.mxu0 0.0
    %2676 = vmatpush2.msra.mxu0 0.0
    %2677 = vmatprep.subr.mxu0 0.0
    %2678 = vmatpush2.msra.mxu0 0.0
    %2679 = vmatprep.subr.mxu0 0.0
    %2680 = vmatpush2.msra.mxu0 0.0
    %2681 = vmatprep.subr.mxu0 0.0
    %2682 = vmatpush2.msra.mxu0 0.0
    %2683 = vmatprep.subr.mxu0 0.0
    %2684 = vmatpush2.msra.mxu0 0.0
    %2685 = vmatprep.subr.mxu0 0.0
    %2686 = vmatpush2.msra.mxu0 0.0
    %2687 = vmatprep.subr.mxu0 0.0
    %2688 = vmatpush2.msra.mxu0 0.0
    %2689 = vmatprep.subr.mxu0 0.0
    %2690 = vmatpush2.msra.mxu0 0.0
    %2691 = vmatprep.subr.mxu0 0.0
    %2692 = vmatpush2.msra.mxu0 0.0
    %2693 = vmatprep.subr.mxu0 0.0
    %2694 = vmatpush2.msra.mxu0 0.0
    %2695 = vmatprep.subr.mxu0 0.0
    %2696 = vmatpush2.msra.mxu0 0.0
    %2697 = vmatprep.subr.mxu0 0.0
    %2698 = vmatpush2.msra.mxu0 0.0
    %2699 = vmatprep.subr.mxu0 0.0
    %2700 = vmatpush2.msra.mxu0 0.0
    %2701 = vmatprep.mubr.f32.mxu0 0.0
    %2702 = vmatmul.mubr.f32.gmra.mxu0 %v2632
    %v2703 = vpop.f32.mrf.mxu0
    %v2704 = vadd.f32 0.0, %v2703
    %v2705 = vpop.f32.mrf.mxu0
    %v2706 = vadd.f32 0.0, %v2705
    %2707 = vdwg.mxu0
    %2708 = vmatprep.subr.mxu0 %v2453
    %2709 = vmatpush1.msra.mxu0 %v2452
    %2710 = vmatprep.subr.mxu0 %v2449
    %2711 = vmatpush1.msra.mxu0 %v2448
    %2712 = vmatprep.subr.mxu0 %v2445
    %2713 = vmatpush1.msra.mxu0 %v2444
    %2714 = vmatprep.subr.mxu0 %v2441
    %2715 = vmatpush1.msra.mxu0 %v2440
    %2716 = vmatprep.subr.mxu0 %v2437
    %2717 = vmatpush1.msra.mxu0 %v2436
    %2718 = vmatprep.subr.mxu0 %v2433
    %2719 = vmatpush1.msra.mxu0 %v2432
    %2720 = vmatprep.subr.mxu0 %v2429
    %2721 = vmatpush1.msra.mxu0 %v2428
    %2722 = vmatprep.subr.mxu0 %v2425
    %2723 = vmatpush1.msra.mxu0 %v2424
    %2724 = vmatprep.subr.mxu0 %v2421
    %2725 = vmatpush1.msra.mxu0 %v2420
    %2726 = vmatprep.subr.mxu0 %v2417
    %2727 = vmatpush1.msra.mxu0 %v2416
    %2728 = vmatprep.subr.mxu0 %v2413
    %2729 = vmatpush1.msra.mxu0 %v2412
    %2730 = vmatprep.subr.mxu0 %v2409
    %2731 = vmatpush1.msra.mxu0 %v2408
    %2732 = vmatprep.subr.mxu0 %v2405
    %2733 = vmatpush1.msra.mxu0 %v2404
    %2734 = vmatprep.subr.mxu0 %v2401
    %2735 = vmatpush1.msra.mxu0 %v2400
    %2736 = vmatprep.subr.mxu0 %v2397
    %2737 = vmatpush1.msra.mxu0 %v2396
    %2738 = vmatprep.subr.mxu0 %v2393
    %2739 = vmatpush1.msra.mxu0 %v2392
    %2740 = vmatprep.subr.mxu0 0.0
    %2741 = vmatpush2.msra.mxu0 0.0
    %2742 = vmatprep.subr.mxu0 0.0
    %2743 = vmatpush2.msra.mxu0 0.0
    %2744 = vmatprep.subr.mxu0 0.0
    %2745 = vmatpush2.msra.mxu0 0.0
    %2746 = vmatprep.subr.mxu0 0.0
    %2747 = vmatpush2.msra.mxu0 0.0
    %2748 = vmatprep.subr.mxu0 0.0
    %2749 = vmatpush2.msra.mxu0 0.0
    %2750 = vmatprep.subr.mxu0 0.0
    %2751 = vmatpush2.msra.mxu0 0.0
    %2752 = vmatprep.subr.mxu0 0.0
    %2753 = vmatpush2.msra.mxu0 0.0
    %2754 = vmatprep.subr.mxu0 0.0
    %2755 = vmatpush2.msra.mxu0 0.0
    %2756 = vmatprep.subr.mxu0 0.0
    %2757 = vmatpush2.msra.mxu0 0.0
    %2758 = vmatprep.subr.mxu0 0.0
    %2759 = vmatpush2.msra.mxu0 0.0
    %2760 = vmatprep.subr.mxu0 0.0
    %2761 = vmatpush2.msra.mxu0 0.0
    %2762 = vmatprep.subr.mxu0 0.0
    %2763 = vmatpush2.msra.mxu0 0.0
    %2764 = vmatprep.subr.mxu0 0.0
    %2765 = vmatpush2.msra.mxu0 0.0
    %2766 = vmatprep.subr.mxu0 0.0
    %2767 = vmatpush2.msra.mxu0 0.0
    %2768 = vmatprep.subr.mxu0 0.0
    %2769 = vmatpush2.msra.mxu0 0.0
    %2770 = vmatprep.subr.mxu0 0.0
    %2771 = vmatpush2.msra.mxu0 0.0
    %2772 = vmatprep.mubr.f32.mxu0 0.0
    %2773 = vmatmul.mubr.f32.gmra.mxu0 %v2632
    %v2774 = vpop.f32.mrf.mxu0
    %v2775 = vadd.f32 0.0, %v2774
    %v2776 = vpop.f32.mrf.mxu0
    %v2777 = vadd.f32 0.0, %v2776
    %2778 = vdwg.mxu0
    %v2779 = vadd.f32 %v2633, %v2704
    %v2780 = vadd.f32 %v2634, %v2706
    %v2781 = vadd.f32 %v2635, %v2775
    %v2782 = vadd.f32 %v2636, %v2777
    %v2783 = vxor.u32 %v2779, 2147483648
    %v2784 = vxor.u32 %v2780, 2147483648
    %v2785 = vxor.u32 %v2781, 2147483648
    %v2786 = vmul.f32 %v2783, 1.442695
    %v2787 = vpow.pop %v2786
    %v2788 = vmul.f32 %v2784, 1.442695
    %v2789 = vpow.pop %v2788
    %v2790 = vmul.f32 %v2785, 1.442695
    %v2791 = vpow.pop %v2790
    %v2792 = vadd.f32 %v2787, 1.0
    %v2793 = vadd.f32 %v2789, 1.0
    %v2794 = vadd.f32 %v2791, 1.0
    %v2795 = vrcp.pop %v2792
    %v2796 = vmul.f32 1.0, %v2795
    %v2797 = vrcp.pop %v2793
    %v2798 = vmul.f32 1.0, %v2797
    %v2799 = vrcp.pop %v2794
    %v2800 = vmul.f32 1.0, %v2799
    %v2801 = vtanh.pop %v2782
    %v2802 = vmul.f32 %v2798, %v2630
    %v2803 = vmul.f32 %v2796, %v2801
    %v2804 = vadd.f32 %v2802, %v2803
    %v2805 = vtanh.pop %v2804
    %v2806 = vmul.f32 %v2800, %v2805
    %v2807 = vadd.f32 %v1953, %v2261
    %v2808 = vadd.f32 %v1955, %v2263
    %v2809 = vadd.f32 %v2066, %v2374
    %v2810 = vadd.f32 %v2068, %v2376
    %2811 = vmatprep.subr.mxu0 %v2451
    %2812 = vmatpush1.msra.mxu0 %v2450
    %2813 = vmatprep.subr.mxu0 %v2447
    %2814 = vmatpush1.msra.mxu0 %v2446
    %2815 = vmatprep.subr.mxu0 %v2443
    %2816 = vmatpush1.msra.mxu0 %v2442
    %2817 = vmatprep.subr.mxu0 %v2439
    %2818 = vmatpush1.msra.mxu0 %v2438
    %2819 = vmatprep.subr.mxu0 %v2435
    %2820 = vmatpush1.msra.mxu0 %v2434
    %2821 = vmatprep.subr.mxu0 %v2431
    %2822 = vmatpush1.msra.mxu0 %v2430
    %2823 = vmatprep.subr.mxu0 %v2427
    %2824 = vmatpush1.msra.mxu0 %v2426
    %2825 = vmatprep.subr.mxu0 %v2423
    %2826 = vmatpush1.msra.mxu0 %v2422
    %2827 = vmatprep.subr.mxu0 %v2419
    %2828 = vmatpush1.msra.mxu0 %v2418
    %2829 = vmatprep.subr.mxu0 %v2415
    %2830 = vmatpush1.msra.mxu0 %v2414
    %2831 = vmatprep.subr.mxu0 %v2411
    %2832 = vmatpush1.msra.mxu0 %v2410
    %2833 = vmatprep.subr.mxu0 %v2407
    %2834 = vmatpush1.msra.mxu0 %v2406
    %2835 = vmatprep.subr.mxu0 %v2403
    %2836 = vmatpush1.msra.mxu0 %v2402
    %2837 = vmatprep.subr.mxu0 %v2399
    %2838 = vmatpush1.msra.mxu0 %v2398
    %2839 = vmatprep.subr.mxu0 %v2395
    %2840 = vmatpush1.msra.mxu0 %v2394
    %2841 = vmatprep.subr.mxu0 %v2391
    %2842 = vmatpush1.msra.mxu0 %v2390
    %2843 = vmatprep.subr.mxu0 0.0
    %2844 = vmatpush2.msra.mxu0 0.0
    %2845 = vmatprep.subr.mxu0 0.0
    %2846 = vmatpush2.msra.mxu0 0.0
    %2847 = vmatprep.subr.mxu0 0.0
    %2848 = vmatpush2.msra.mxu0 0.0
    %2849 = vmatprep.subr.mxu0 0.0
    %2850 = vmatpush2.msra.mxu0 0.0
    %2851 = vmatprep.subr.mxu0 0.0
    %2852 = vmatpush2.msra.mxu0 0.0
    %2853 = vmatprep.subr.mxu0 0.0
    %2854 = vmatpush2.msra.mxu0 0.0
    %2855 = vmatprep.subr.mxu0 0.0
    %2856 = vmatpush2.msra.mxu0 0.0
    %2857 = vmatprep.subr.mxu0 0.0
    %2858 = vmatpush2.msra.mxu0 0.0
    %2859 = vmatprep.subr.mxu0 0.0
    %2860 = vmatpush2.msra.mxu0 0.0
    %2861 = vmatprep.subr.mxu0 0.0
    %2862 = vmatpush2.msra.mxu0 0.0
    %2863 = vmatprep.subr.mxu0 0.0
    %2864 = vmatpush2.msra.mxu0 0.0
    %2865 = vmatprep.subr.mxu0 0.0
    %2866 = vmatpush2.msra.mxu0 0.0
    %2867 = vmatprep.subr.mxu0 0.0
    %2868 = vmatpush2.msra.mxu0 0.0
    %2869 = vmatprep.subr.mxu0 0.0
    %2870 = vmatpush2.msra.mxu0 0.0
    %2871 = vmatprep.subr.mxu0 0.0
    %2872 = vmatpush2.msra.mxu0 0.0
    %2873 = vmatprep.subr.mxu0 0.0
    %2874 = vmatpush2.msra.mxu0 0.0
    %2875 = vmatprep.mubr.f32.mxu0 0.0
    %2876 = vmatmul.mubr.f32.gmra.mxu0 %v2806
    %v2877 = vpop.f32.mrf.mxu0
    %v2878 = vadd.f32 0.0, %v2877
    %v2879 = vpop.f32.mrf.mxu0
    %v2880 = vadd.f32 0.0, %v2879
    %2881 = vdwg.mxu0
    %2882 = vmatprep.subr.mxu0 %v2453
    %2883 = vmatpush1.msra.mxu0 %v2452
    %2884 = vmatprep.subr.mxu0 %v2449
    %2885 = vmatpush1.msra.mxu0 %v2448
    %2886 = vmatprep.subr.mxu0 %v2445
    %2887 = vmatpush1.msra.mxu0 %v2444
    %2888 = vmatprep.subr.mxu0 %v2441
    %2889 = vmatpush1.msra.mxu0 %v2440
    %2890 = vmatprep.subr.mxu0 %v2437
    %2891 = vmatpush1.msra.mxu0 %v2436
    %2892 = vmatprep.subr.mxu0 %v2433
    %2893 = vmatpush1.msra.mxu0 %v2432
    %2894 = vmatprep.subr.mxu0 %v2429
    %2895 = vmatpush1.msra.mxu0 %v2428
    %2896 = vmatprep.subr.mxu0 %v2425
    %2897 = vmatpush1.msra.mxu0 %v2424
    %2898 = vmatprep.subr.mxu0 %v2421
    %2899 = vmatpush1.msra.mxu0 %v2420
    %2900 = vmatprep.subr.mxu0 %v2417
    %2901 = vmatpush1.msra.mxu0 %v2416
    %2902 = vmatprep.subr.mxu0 %v2413
    %2903 = vmatpush1.msra.mxu0 %v2412
    %2904 = vmatprep.subr.mxu0 %v2409
    %2905 = vmatpush1.msra.mxu0 %v2408
    %2906 = vmatprep.subr.mxu0 %v2405
    %2907 = vmatpush1.msra.mxu0 %v2404
    %2908 = vmatprep.subr.mxu0 %v2401
    %2909 = vmatpush1.msra.mxu0 %v2400
    %2910 = vmatprep.subr.mxu0 %v2397
    %2911 = vmatpush1.msra.mxu0 %v2396
    %2912 = vmatprep.subr.mxu0 %v2393
    %2913 = vmatpush1.msra.mxu0 %v2392
    %2914 = vmatprep.subr.mxu0 0.0
    %2915 = vmatpush2.msra.mxu0 0.0
    %2916 = vmatprep.subr.mxu0 0.0
    %2917 = vmatpush2.msra.mxu0 0.0
    %2918 = vmatprep.subr.mxu0 0.0
    %2919 = vmatpush2.msra.mxu0 0.0
    %2920 = vmatprep.subr.mxu0 0.0
    %2921 = vmatpush2.msra.mxu0 0.0
    %2922 = vmatprep.subr.mxu0 0.0
    %2923 = vmatpush2.msra.mxu0 0.0
    %2924 = vmatprep.subr.mxu0 0.0
    %2925 = vmatpush2.msra.mxu0 0.0
    %2926 = vmatprep.subr.mxu0 0.0
    %2927 = vmatpush2.msra.mxu0 0.0
    %2928 = vmatprep.subr.mxu0 0.0
    %2929 = vmatpush2.msra.mxu0 0.0
    %2930 = vmatprep.subr.mxu0 0.0
    %2931 = vmatpush2.msra.mxu0 0.0
    %2932 = vmatprep.subr.mxu0 0.0
    %2933 = vmatpush2.msra.mxu0 0.0
    %2934 = vmatprep.subr.mxu0 0.0
    %2935 = vmatpush2.msra.mxu0 0.0
    %2936 = vmatprep.subr.mxu0 0.0
    %2937 = vmatpush2.msra.mxu0 0.0
    %2938 = vmatprep.subr.mxu0 0.0
    %2939 = vmatpush2.msra.mxu0 0.0
    %2940 = vmatprep.subr.mxu0 0.0
    %2941 = vmatpush2.msra.mxu0 0.0
    %2942 = vmatprep.subr.mxu0 0.0
    %2943 = vmatpush2.msra.mxu0 0.0
    %2944 = vmatprep.subr.mxu0 0.0
    %2945 = vmatpush2.msra.mxu0 0.0
    %2946 = vmatprep.mubr.f32.mxu0 0.0
    %2947 = vmatmul.mubr.f32.gmra.mxu0 %v2806
    %v2948 = vpop.f32.mrf.mxu0
    %v2949 = vadd.f32 0.0, %v2948
    %v2950 = vpop.f32.mrf.mxu0
    %v2951 = vadd.f32 0.0, %v2950
    %2952 = vdwg.mxu0
    %v2953 = vadd.f32 %v2807, %v2878
    %v2954 = vadd.f32 %v2808, %v2880
    %v2955 = vadd.f32 %v2809, %v2949
    %v2956 = vadd.f32 %v2810, %v2951
    %v2957 = vxor.u32 %v2953, 2147483648
    %v2958 = vxor.u32 %v2954, 2147483648
    %v2959 = vxor.u32 %v2955, 2147483648
    %v2960 = vmul.f32 %v2957, 1.442695
    %v2961 = vpow.pop %v2960
    %v2962 = vmul.f32 %v2958, 1.442695
    %v2963 = vpow.pop %v2962
    %v2964 = vmul.f32 %v2959, 1.442695
    %v2965 = vpow.pop %v2964
    %v2966 = vadd.f32 %v2961, 1.0
    %v2967 = vadd.f32 %v2963, 1.0
    %v2968 = vadd.f32 %v2965, 1.0
    %v2969 = vrcp.pop %v2966
    %v2970 = vmul.f32 1.0, %v2969
    %v2971 = vrcp.pop %v2967
    %v2972 = vmul.f32 1.0, %v2971
    %v2973 = vrcp.pop %v2968
    %v2974 = vmul.f32 1.0, %v2973
    %v2975 = vtanh.pop %v2956
    %v2976 = vmul.f32 %v2972, %v2804
    %v2977 = vmul.f32 %v2970, %v2975
    %v2978 = vadd.f32 %v2976, %v2977
    %v2979 = vtanh.pop %v2978
    %v2980 = vmul.f32 %v2974, %v2979
    %v2981 = vadd.f32 %v1959, %v2255
    %v2982 = vadd.f32 %v1961, %v2257
    %v2983 = vadd.f32 %v2072, %v2368
    %v2984 = vadd.f32 %v2074, %v2370
    %2985 = vmatprep.subr.mxu0 %v2451
    %2986 = vmatpush1.msra.mxu0 %v2450
    %2987 = vmatprep.subr.mxu0 %v2447
    %2988 = vmatpush1.msra.mxu0 %v2446
    %2989 = vmatprep.subr.mxu0 %v2443
    %2990 = vmatpush1.msra.mxu0 %v2442
    %2991 = vmatprep.subr.mxu0 %v2439
    %2992 = vmatpush1.msra.mxu0 %v2438
    %2993 = vmatprep.subr.mxu0 %v2435
    %2994 = vmatpush1.msra.mxu0 %v2434
    %2995 = vmatprep.subr.mxu0 %v2431
    %2996 = vmatpush1.msra.mxu0 %v2430
    %2997 = vmatprep.subr.mxu0 %v2427
    %2998 = vmatpush1.msra.mxu0 %v2426
    %2999 = vmatprep.subr.mxu0 %v2423
    %3000 = vmatpush1.msra.mxu0 %v2422
    %3001 = vmatprep.subr.mxu0 %v2419
    %3002 = vmatpush1.msra.mxu0 %v2418
    %3003 = vmatprep.subr.mxu0 %v2415
    %3004 = vmatpush1.msra.mxu0 %v2414
    %3005 = vmatprep.subr.mxu0 %v2411
    %3006 = vmatpush1.msra.mxu0 %v2410
    %3007 = vmatprep.subr.mxu0 %v2407
    %3008 = vmatpush1.msra.mxu0 %v2406
    %3009 = vmatprep.subr.mxu0 %v2403
    %3010 = vmatpush1.msra.mxu0 %v2402
    %3011 = vmatprep.subr.mxu0 %v2399
    %3012 = vmatpush1.msra.mxu0 %v2398
    %3013 = vmatprep.subr.mxu0 %v2395
    %3014 = vmatpush1.msra.mxu0 %v2394
    %3015 = vmatprep.subr.mxu0 %v2391
    %3016 = vmatpush1.msra.mxu0 %v2390
    %3017 = vmatprep.subr.mxu0 0.0
    %3018 = vmatpush2.msra.mxu0 0.0
    %3019 = vmatprep.subr.mxu0 0.0
    %3020 = vmatpush2.msra.mxu0 0.0
    %3021 = vmatprep.subr.mxu0 0.0
    %3022 = vmatpush2.msra.mxu0 0.0
    %3023 = vmatprep.subr.mxu0 0.0
    %3024 = vmatpush2.msra.mxu0 0.0
    %3025 = vmatprep.subr.mxu0 0.0
    %3026 = vmatpush2.msra.mxu0 0.0
    %3027 = vmatprep.subr.mxu0 0.0
    %3028 = vmatpush2.msra.mxu0 0.0
    %3029 = vmatprep.subr.mxu0 0.0
    %3030 = vmatpush2.msra.mxu0 0.0
    %3031 = vmatprep.subr.mxu0 0.0
    %3032 = vmatpush2.msra.mxu0 0.0
    %3033 = vmatprep.subr.mxu0 0.0
    %3034 = vmatpush2.msra.mxu0 0.0
    %3035 = vmatprep.subr.mxu0 0.0
    %3036 = vmatpush2.msra.mxu0 0.0
    %3037 = vmatprep.subr.mxu0 0.0
    %3038 = vmatpush2.msra.mxu0 0.0
    %3039 = vmatprep.subr.mxu0 0.0
    %3040 = vmatpush2.msra.mxu0 0.0
    %3041 = vmatprep.subr.mxu0 0.0
    %3042 = vmatpush2.msra.mxu0 0.0
    %3043 = vmatprep.subr.mxu0 0.0
    %3044 = vmatpush2.msra.mxu0 0.0
    %3045 = vmatprep.subr.mxu0 0.0
    %3046 = vmatpush2.msra.mxu0 0.0
    %3047 = vmatprep.subr.mxu0 0.0
    %3048 = vmatpush2.msra.mxu0 0.0
    %3049 = vmatprep.mubr.f32.mxu0 0.0
    %3050 = vmatmul.mubr.f32.gmra.mxu0 %v2980
    %v3051 = vpop.f32.mrf.mxu0
    %v3052 = vadd.f32 0.0, %v3051
    %v3053 = vpop.f32.mrf.mxu0
    %v3054 = vadd.f32 0.0, %v3053
    %3055 = vdwg.mxu0
    %3056 = vmatprep.subr.mxu0 %v2453
    %3057 = vmatpush1.msra.mxu0 %v2452
    %3058 = vmatprep.subr.mxu0 %v2449
    %3059 = vmatpush1.msra.mxu0 %v2448
    %3060 = vmatprep.subr.mxu0 %v2445
    %3061 = vmatpush1.msra.mxu0 %v2444
    %3062 = vmatprep.subr.mxu0 %v2441
    %3063 = vmatpush1.msra.mxu0 %v2440
    %3064 = vmatprep.subr.mxu0 %v2437
    %3065 = vmatpush1.msra.mxu0 %v2436
    %3066 = vmatprep.subr.mxu0 %v2433
    %3067 = vmatpush1.msra.mxu0 %v2432
    %3068 = vmatprep.subr.mxu0 %v2429
    %3069 = vmatpush1.msra.mxu0 %v2428
    %3070 = vmatprep.subr.mxu0 %v2425
    %3071 = vmatpush1.msra.mxu0 %v2424
    %3072 = vmatprep.subr.mxu0 %v2421
    %3073 = vmatpush1.msra.mxu0 %v2420
    %3074 = vmatprep.subr.mxu0 %v2417
    %3075 = vmatpush1.msra.mxu0 %v2416
    %3076 = vmatprep.subr.mxu0 %v2413
    %3077 = vmatpush1.msra.mxu0 %v2412
    %3078 = vmatprep.subr.mxu0 %v2409
    %3079 = vmatpush1.msra.mxu0 %v2408
    %3080 = vmatprep.subr.mxu0 %v2405
    %3081 = vmatpush1.msra.mxu0 %v2404
    %3082 = vmatprep.subr.mxu0 %v2401
    %3083 = vmatpush1.msra.mxu0 %v2400
    %3084 = vmatprep.subr.mxu0 %v2397
    %3085 = vmatpush1.msra.mxu0 %v2396
    %3086 = vmatprep.subr.mxu0 %v2393
    %3087 = vmatpush1.msra.mxu0 %v2392
    %3088 = vmatprep.subr.mxu0 0.0
    %3089 = vmatpush2.msra.mxu0 0.0
    %3090 = vmatprep.subr.mxu0 0.0
    %3091 = vmatpush2.msra.mxu0 0.0
    %3092 = vmatprep.subr.mxu0 0.0
    %3093 = vmatpush2.msra.mxu0 0.0
    %3094 = vmatprep.subr.mxu0 0.0
    %3095 = vmatpush2.msra.mxu0 0.0
    %3096 = vmatprep.subr.mxu0 0.0
    %3097 = vmatpush2.msra.mxu0 0.0
    %3098 = vmatprep.subr.mxu0 0.0
    %3099 = vmatpush2.msra.mxu0 0.0
    %3100 = vmatprep.subr.mxu0 0.0
    %3101 = vmatpush2.msra.mxu0 0.0
    %3102 = vmatprep.subr.mxu0 0.0
    %3103 = vmatpush2.msra.mxu0 0.0
    %3104 = vmatprep.subr.mxu0 0.0
    %3105 = vmatpush2.msra.mxu0 0.0
    %3106 = vmatprep.subr.mxu0 0.0
    %3107 = vmatpush2.msra.mxu0 0.0
    %3108 = vmatprep.subr.mxu0 0.0
    %3109 = vmatpush2.msra.mxu0 0.0
    %3110 = vmatprep.subr.mxu0 0.0
    %3111 = vmatpush2.msra.mxu0 0.0
    %3112 = vmatprep.subr.mxu0 0.0
    %3113 = vmatpush2.msra.mxu0 0.0
    %3114 = vmatprep.subr.mxu0 0.0
    %3115 = vmatpush2.msra.mxu0 0.0
    %3116 = vmatprep.subr.mxu0 0.0
    %3117 = vmatpush2.msra.mxu0 0.0
    %3118 = vmatprep.subr.mxu0 0.0
    %3119 = vmatpush2.msra.mxu0 0.0
    %3120 = vmatprep.mubr.f32.mxu0 0.0
    %3121 = vmatmul.mubr.f32.gmra.mxu0 %v2980
    %v3122 = vpop.f32.mrf.mxu0
    %v3123 = vadd.f32 0.0, %v3122
    %v3124 = vpop.f32.mrf.mxu0
    %v3125 = vadd.f32 0.0, %v3124
    %3126 = vdwg.mxu0
    %v3127 = vadd.f32 %v2981, %v3052
    %v3128 = vadd.f32 %v2982, %v3054
    %v3129 = vadd.f32 %v2983, %v3123
    %v3130 = vadd.f32 %v2984, %v3125
    %v3131 = vxor.u32 %v3127, 2147483648
    %v3132 = vxor.u32 %v3128, 2147483648
    %v3133 = vxor.u32 %v3129, 2147483648
    %v3134 = vmul.f32 %v3131, 1.442695
    %v3135 = vpow.pop %v3134
    %v3136 = vmul.f32 %v3132, 1.442695
    %v3137 = vpow.pop %v3136
    %v3138 = vmul.f32 %v3133, 1.442695
    %v3139 = vpow.pop %v3138
    %v3140 = vadd.f32 %v3135, 1.0
    %v3141 = vadd.f32 %v3137, 1.0
    %v3142 = vadd.f32 %v3139, 1.0
    %v3143 = vrcp.pop %v3140
    %v3144 = vmul.f32 1.0, %v3143
    %v3145 = vrcp.pop %v3141
    %v3146 = vmul.f32 1.0, %v3145
    %v3147 = vrcp.pop %v3142
    %v3148 = vmul.f32 1.0, %v3147
    %v3149 = vtanh.pop %v3130
    %v3150 = vmul.f32 %v3146, %v2978
    %v3151 = vmul.f32 %v3144, %v3149
    %v3152 = vadd.f32 %v3150, %v3151
    %v3153 = vtanh.pop %v3152
    %v3154 = vmul.f32 %v3148, %v3153
    %v3155 = vadd.f32 %v1965, %v2249
    %v3156 = vadd.f32 %v1967, %v2251
    %v3157 = vadd.f32 %v2078, %v2362
    %v3158 = vadd.f32 %v2080, %v2364
    %3159 = vmatprep.subr.mxu0 %v2451
    %3160 = vmatpush1.msra.mxu0 %v2450
    %3161 = vmatprep.subr.mxu0 %v2447
    %3162 = vmatpush1.msra.mxu0 %v2446
    %3163 = vmatprep.subr.mxu0 %v2443
    %3164 = vmatpush1.msra.mxu0 %v2442
    %3165 = vmatprep.subr.mxu0 %v2439
    %3166 = vmatpush1.msra.mxu0 %v2438
    %3167 = vmatprep.subr.mxu0 %v2435
    %3168 = vmatpush1.msra.mxu0 %v2434
    %3169 = vmatprep.subr.mxu0 %v2431
    %3170 = vmatpush1.msra.mxu0 %v2430
    %3171 = vmatprep.subr.mxu0 %v2427
    %3172 = vmatpush1.msra.mxu0 %v2426
    %3173 = vmatprep.subr.mxu0 %v2423
    %3174 = vmatpush1.msra.mxu0 %v2422
    %3175 = vmatprep.subr.mxu0 %v2419
    %3176 = vmatpush1.msra.mxu0 %v2418
    %3177 = vmatprep.subr.mxu0 %v2415
    %3178 = vmatpush1.msra.mxu0 %v2414
    %3179 = vmatprep.subr.mxu0 %v2411
    %3180 = vmatpush1.msra.mxu0 %v2410
    %3181 = vmatprep.subr.mxu0 %v2407
    %3182 = vmatpush1.msra.mxu0 %v2406
    %3183 = vmatprep.subr.mxu0 %v2403
    %3184 = vmatpush1.msra.mxu0 %v2402
    %3185 = vmatprep.subr.mxu0 %v2399
    %3186 = vmatpush1.msra.mxu0 %v2398
    %3187 = vmatprep.subr.mxu0 %v2395
    %3188 = vmatpush1.msra.mxu0 %v2394
    %3189 = vmatprep.subr.mxu0 %v2391
    %3190 = vmatpush1.msra.mxu0 %v2390
    %3191 = vmatprep.subr.mxu0 0.0
    %3192 = vmatpush2.msra.mxu0 0.0
    %3193 = vmatprep.subr.mxu0 0.0
    %3194 = vmatpush2.msra.mxu0 0.0
    %3195 = vmatprep.subr.mxu0 0.0
    %3196 = vmatpush2.msra.mxu0 0.0
    %3197 = vmatprep.subr.mxu0 0.0
    %3198 = vmatpush2.msra.mxu0 0.0
    %3199 = vmatprep.subr.mxu0 0.0
    %3200 = vmatpush2.msra.mxu0 0.0
    %3201 = vmatprep.subr.mxu0 0.0
    %3202 = vmatpush2.msra.mxu0 0.0
    %3203 = vmatprep.subr.mxu0 0.0
    %3204 = vmatpush2.msra.mxu0 0.0
    %3205 = vmatprep.subr.mxu0 0.0
    %3206 = vmatpush2.msra.mxu0 0.0
    %3207 = vmatprep.subr.mxu0 0.0
    %3208 = vmatpush2.msra.mxu0 0.0
    %3209 = vmatprep.subr.mxu0 0.0
    %3210 = vmatpush2.msra.mxu0 0.0
    %3211 = vmatprep.subr.mxu0 0.0
    %3212 = vmatpush2.msra.mxu0 0.0
    %3213 = vmatprep.subr.mxu0 0.0
    %3214 = vmatpush2.msra.mxu0 0.0
    %3215 = vmatprep.subr.mxu0 0.0
    %3216 = vmatpush2.msra.mxu0 0.0
    %3217 = vmatprep.subr.mxu0 0.0
    %3218 = vmatpush2.msra.mxu0 0.0
    %3219 = vmatprep.subr.mxu0 0.0
    %3220 = vmatpush2.msra.mxu0 0.0
    %3221 = vmatprep.subr.mxu0 0.0
    %3222 = vmatpush2.msra.mxu0 0.0
    %3223 = vmatprep.mubr.f32.mxu0 0.0
    %3224 = vmatmul.mubr.f32.gmra.mxu0 %v3154
    %v3225 = vpop.f32.mrf.mxu0
    %v3226 = vadd.f32 0.0, %v3225
    %v3227 = vpop.f32.mrf.mxu0
    %v3228 = vadd.f32 0.0, %v3227
    %3229 = vdwg.mxu0
    %3230 = vmatprep.subr.mxu0 %v2453
    %3231 = vmatpush1.msra.mxu0 %v2452
    %3232 = vmatprep.subr.mxu0 %v2449
    %3233 = vmatpush1.msra.mxu0 %v2448
    %3234 = vmatprep.subr.mxu0 %v2445
    %3235 = vmatpush1.msra.mxu0 %v2444
    %3236 = vmatprep.subr.mxu0 %v2441
    %3237 = vmatpush1.msra.mxu0 %v2440
    %3238 = vmatprep.subr.mxu0 %v2437
    %3239 = vmatpush1.msra.mxu0 %v2436
    %3240 = vmatprep.subr.mxu0 %v2433
    %3241 = vmatpush1.msra.mxu0 %v2432
    %3242 = vmatprep.subr.mxu0 %v2429
    %3243 = vmatpush1.msra.mxu0 %v2428
    %3244 = vmatprep.subr.mxu0 %v2425
    %3245 = vmatpush1.msra.mxu0 %v2424
    %3246 = vmatprep.subr.mxu0 %v2421
    %3247 = vmatpush1.msra.mxu0 %v2420
    %3248 = vmatprep.subr.mxu0 %v2417
    %3249 = vmatpush1.msra.mxu0 %v2416
    %3250 = vmatprep.subr.mxu0 %v2413
    %3251 = vmatpush1.msra.mxu0 %v2412
    %3252 = vmatprep.subr.mxu0 %v2409
    %3253 = vmatpush1.msra.mxu0 %v2408
    %3254 = vmatprep.subr.mxu0 %v2405
    %3255 = vmatpush1.msra.mxu0 %v2404
    %3256 = vmatprep.subr.mxu0 %v2401
    %3257 = vmatpush1.msra.mxu0 %v2400
    %3258 = vmatprep.subr.mxu0 %v2397
    %3259 = vmatpush1.msra.mxu0 %v2396
    %3260 = vmatprep.subr.mxu0 %v2393
    %3261 = vmatpush1.msra.mxu0 %v2392
    %3262 = vmatprep.subr.mxu0 0.0
    %3263 = vmatpush2.msra.mxu0 0.0
    %3264 = vmatprep.subr.mxu0 0.0
    %3265 = vmatpush2.msra.mxu0 0.0
    %3266 = vmatprep.subr.mxu0 0.0
    %3267 = vmatpush2.msra.mxu0 0.0
    %3268 = vmatprep.subr.mxu0 0.0
    %3269 = vmatpush2.msra.mxu0 0.0
    %3270 = vmatprep.subr.mxu0 0.0
    %3271 = vmatpush2.msra.mxu0 0.0
    %3272 = vmatprep.subr.mxu0 0.0
    %3273 = vmatpush2.msra.mxu0 0.0
    %3274 = vmatprep.subr.mxu0 0.0
    %3275 = vmatpush2.msra.mxu0 0.0
    %3276 = vmatprep.subr.mxu0 0.0
    %3277 = vmatpush2.msra.mxu0 0.0
    %3278 = vmatprep.subr.mxu0 0.0
    %3279 = vmatpush2.msra.mxu0 0.0
    %3280 = vmatprep.subr.mxu0 0.0
    %3281 = vmatpush2.msra.mxu0 0.0
    %3282 = vmatprep.subr.mxu0 0.0
    %3283 = vmatpush2.msra.mxu0 0.0
    %3284 = vmatprep.subr.mxu0 0.0
    %3285 = vmatpush2.msra.mxu0 0.0
    %3286 = vmatprep.subr.mxu0 0.0
    %3287 = vmatpush2.msra.mxu0 0.0
    %3288 = vmatprep.subr.mxu0 0.0
    %3289 = vmatpush2.msra.mxu0 0.0
    %3290 = vmatprep.subr.mxu0 0.0
    %3291 = vmatpush2.msra.mxu0 0.0
    %3292 = vmatprep.subr.mxu0 0.0
    %3293 = vmatpush2.msra.mxu0 0.0
    %3294 = vmatprep.mubr.f32.mxu0 0.0
    %3295 = vmatmul.mubr.f32.gmra.mxu0 %v3154
    %v3296 = vpop.f32.mrf.mxu0
    %v3297 = vadd.f32 0.0, %v3296
    %v3298 = vpop.f32.mrf.mxu0
    %v3299 = vadd.f32 0.0, %v3298
    %3300 = vdwg.mxu0
    %v3301 = vadd.f32 %v3155, %v3226
    %v3302 = vadd.f32 %v3156, %v3228
    %v3303 = vadd.f32 %v3157, %v3297
    %v3304 = vadd.f32 %v3158, %v3299
    %v3305 = vxor.u32 %v3301, 2147483648
    %v3306 = vxor.u32 %v3302, 2147483648
    %v3307 = vxor.u32 %v3303, 2147483648
    %v3308 = vmul.f32 %v3305, 1.442695
    %v3309 = vpow.pop %v3308
    %v3310 = vmul.f32 %v3306, 1.442695
    %v3311 = vpow.pop %v3310
    %v3312 = vmul.f32 %v3307, 1.442695
    %v3313 = vpow.pop %v3312
    %v3314 = vadd.f32 %v3309, 1.0
    %v3315 = vadd.f32 %v3311, 1.0
    %v3316 = vadd.f32 %v3313, 1.0
    %v3317 = vrcp.pop %v3314
    %v3318 = vmul.f32 1.0, %v3317
    %v3319 = vrcp.pop %v3315
    %v3320 = vmul.f32 1.0, %v3319
    %v3321 = vrcp.pop %v3316
    %v3322 = vmul.f32 1.0, %v3321
    %v3323 = vtanh.pop %v3304
    %v3324 = vmul.f32 %v3320, %v3152
    %v3325 = vmul.f32 %v3318, %v3323
    %v3326 = vadd.f32 %v3324, %v3325
    %v3327 = vtanh.pop %v3326
    %v3328 = vmul.f32 %v3322, %v3327
    %v3329 = vadd.f32 %v1971, %v2243
    %v3330 = vadd.f32 %v1973, %v2245
    %v3331 = vadd.f32 %v2084, %v2356
    %v3332 = vadd.f32 %v2086, %v2358
    %3333 = vmatprep.subr.mxu0 %v2451
    %3334 = vmatpush1.msra.mxu0 %v2450
    %3335 = vmatprep.subr.mxu0 %v2447
    %3336 = vmatpush1.msra.mxu0 %v2446
    %3337 = vmatprep.subr.mxu0 %v2443
    %3338 = vmatpush1.msra.mxu0 %v2442
    %3339 = vmatprep.subr.mxu0 %v2439
    %3340 = vmatpush1.msra.mxu0 %v2438
    %3341 = vmatprep.subr.mxu0 %v2435
    %3342 = vmatpush1.msra.mxu0 %v2434
    %3343 = vmatprep.subr.mxu0 %v2431
    %3344 = vmatpush1.msra.mxu0 %v2430
    %3345 = vmatprep.subr.mxu0 %v2427
    %3346 = vmatpush1.msra.mxu0 %v2426
    %3347 = vmatprep.subr.mxu0 %v2423
    %3348 = vmatpush1.msra.mxu0 %v2422
    %3349 = vmatprep.subr.mxu0 %v2419
    %3350 = vmatpush1.msra.mxu0 %v2418
    %3351 = vmatprep.subr.mxu0 %v2415
    %3352 = vmatpush1.msra.mxu0 %v2414
    %3353 = vmatprep.subr.mxu0 %v2411
    %3354 = vmatpush1.msra.mxu0 %v2410
    %3355 = vmatprep.subr.mxu0 %v2407
    %3356 = vmatpush1.msra.mxu0 %v2406
    %3357 = vmatprep.subr.mxu0 %v2403
    %3358 = vmatpush1.msra.mxu0 %v2402
    %3359 = vmatprep.subr.mxu0 %v2399
    %3360 = vmatpush1.msra.mxu0 %v2398
    %3361 = vmatprep.subr.mxu0 %v2395
    %3362 = vmatpush1.msra.mxu0 %v2394
    %3363 = vmatprep.subr.mxu0 %v2391
    %3364 = vmatpush1.msra.mxu0 %v2390
    %3365 = vmatprep.subr.mxu0 0.0
    %3366 = vmatpush2.msra.mxu0 0.0
    %3367 = vmatprep.subr.mxu0 0.0
    %3368 = vmatpush2.msra.mxu0 0.0
    %3369 = vmatprep.subr.mxu0 0.0
    %3370 = vmatpush2.msra.mxu0 0.0
    %3371 = vmatprep.subr.mxu0 0.0
    %3372 = vmatpush2.msra.mxu0 0.0
    %3373 = vmatprep.subr.mxu0 0.0
    %3374 = vmatpush2.msra.mxu0 0.0
    %3375 = vmatprep.subr.mxu0 0.0
    %3376 = vmatpush2.msra.mxu0 0.0
    %3377 = vmatprep.subr.mxu0 0.0
    %3378 = vmatpush2.msra.mxu0 0.0
    %3379 = vmatprep.subr.mxu0 0.0
    %3380 = vmatpush2.msra.mxu0 0.0
    %3381 = vmatprep.subr.mxu0 0.0
    %3382 = vmatpush2.msra.mxu0 0.0
    %3383 = vmatprep.subr.mxu0 0.0
    %3384 = vmatpush2.msra.mxu0 0.0
    %3385 = vmatprep.subr.mxu0 0.0
    %3386 = vmatpush2.msra.mxu0 0.0
    %3387 = vmatprep.subr.mxu0 0.0
    %3388 = vmatpush2.msra.mxu0 0.0
    %3389 = vmatprep.subr.mxu0 0.0
    %3390 = vmatpush2.msra.mxu0 0.0
    %3391 = vmatprep.subr.mxu0 0.0
    %3392 = vmatpush2.msra.mxu0 0.0
    %3393 = vmatprep.subr.mxu0 0.0
    %3394 = vmatpush2.msra.mxu0 0.0
    %3395 = vmatprep.subr.mxu0 0.0
    %3396 = vmatpush2.msra.mxu0 0.0
    %3397 = vmatprep.mubr.f32.mxu0 0.0
    %3398 = vmatmul.mubr.f32.gmra.mxu0 %v3328
    %v3399 = vpop.f32.mrf.mxu0
    %v3400 = vadd.f32 0.0, %v3399
    %v3401 = vpop.f32.mrf.mxu0
    %v3402 = vadd.f32 0.0, %v3401
    %3403 = vdwg.mxu0
    %3404 = vmatprep.subr.mxu0 %v2453
    %3405 = vmatpush1.msra.mxu0 %v2452
    %3406 = vmatprep.subr.mxu0 %v2449
    %3407 = vmatpush1.msra.mxu0 %v2448
    %3408 = vmatprep.subr.mxu0 %v2445
    %3409 = vmatpush1.msra.mxu0 %v2444
    %3410 = vmatprep.subr.mxu0 %v2441
    %3411 = vmatpush1.msra.mxu0 %v2440
    %3412 = vmatprep.subr.mxu0 %v2437
    %3413 = vmatpush1.msra.mxu0 %v2436
    %3414 = vmatprep.subr.mxu0 %v2433
    %3415 = vmatpush1.msra.mxu0 %v2432
    %3416 = vmatprep.subr.mxu0 %v2429
    %3417 = vmatpush1.msra.mxu0 %v2428
    %3418 = vmatprep.subr.mxu0 %v2425
    %3419 = vmatpush1.msra.mxu0 %v2424
    %3420 = vmatprep.subr.mxu0 %v2421
    %3421 = vmatpush1.msra.mxu0 %v2420
    %3422 = vmatprep.subr.mxu0 %v2417
    %3423 = vmatpush1.msra.mxu0 %v2416
    %3424 = vmatprep.subr.mxu0 %v2413
    %3425 = vmatpush1.msra.mxu0 %v2412
    %3426 = vmatprep.subr.mxu0 %v2409
    %3427 = vmatpush1.msra.mxu0 %v2408
    %3428 = vmatprep.subr.mxu0 %v2405
    %3429 = vmatpush1.msra.mxu0 %v2404
    %3430 = vmatprep.subr.mxu0 %v2401
    %3431 = vmatpush1.msra.mxu0 %v2400
    %3432 = vmatprep.subr.mxu0 %v2397
    %3433 = vmatpush1.msra.mxu0 %v2396
    %3434 = vmatprep.subr.mxu0 %v2393
    %3435 = vmatpush1.msra.mxu0 %v2392
    %3436 = vmatprep.subr.mxu0 0.0
    %3437 = vmatpush2.msra.mxu0 0.0
    %3438 = vmatprep.subr.mxu0 0.0
    %3439 = vmatpush2.msra.mxu0 0.0
    %3440 = vmatprep.subr.mxu0 0.0
    %3441 = vmatpush2.msra.mxu0 0.0
    %3442 = vmatprep.subr.mxu0 0.0
    %3443 = vmatpush2.msra.mxu0 0.0
    %3444 = vmatprep.subr.mxu0 0.0
    %3445 = vmatpush2.msra.mxu0 0.0
    %3446 = vmatprep.subr.mxu0 0.0
    %3447 = vmatpush2.msra.mxu0 0.0
    %3448 = vmatprep.subr.mxu0 0.0
    %3449 = vmatpush2.msra.mxu0 0.0
    %3450 = vmatprep.subr.mxu0 0.0
    %3451 = vmatpush2.msra.mxu0 0.0
    %3452 = vmatprep.subr.mxu0 0.0
    %3453 = vmatpush2.msra.mxu0 0.0
    %3454 = vmatprep.subr.mxu0 0.0
    %3455 = vmatpush2.msra.mxu0 0.0
    %3456 = vmatprep.subr.mxu0 0.0
    %3457 = vmatpush2.msra.mxu0 0.0
    %3458 = vmatprep.subr.mxu0 0.0
    %3459 = vmatpush2.msra.mxu0 0.0
    %3460 = vmatprep.subr.mxu0 0.0
    %3461 = vmatpush2.msra.mxu0 0.0
    %3462 = vmatprep.subr.mxu0 0.0
    %3463 = vmatpush2.msra.mxu0 0.0
    %3464 = vmatprep.subr.mxu0 0.0
    %3465 = vmatpush2.msra.mxu0 0.0
    %3466 = vmatprep.subr.mxu0 0.0
    %3467 = vmatpush2.msra.mxu0 0.0
    %3468 = vmatprep.mubr.f32.mxu0 0.0
    %3469 = vmatmul.mubr.f32.gmra.mxu0 %v3328
    %v3470 = vpop.f32.mrf.mxu0
    %v3471 = vadd.f32 0.0, %v3470
    %v3472 = vpop.f32.mrf.mxu0
    %v3473 = vadd.f32 0.0, %v3472
    %3474 = vdwg.mxu0
    %v3475 = vadd.f32 %v3329, %v3400
    %v3476 = vadd.f32 %v3330, %v3402
    %v3477 = vadd.f32 %v3331, %v3471
    %v3478 = vadd.f32 %v3332, %v3473
    %v3479 = vxor.u32 %v3475, 2147483648
    %v3480 = vxor.u32 %v3476, 2147483648
    %v3481 = vxor.u32 %v3477, 2147483648
    %v3482 = vmul.f32 %v3479, 1.442695
    %v3483 = vpow.pop %v3482
    %v3484 = vmul.f32 %v3480, 1.442695
    %v3485 = vpow.pop %v3484
    %v3486 = vmul.f32 %v3481, 1.442695
    %v3487 = vpow.pop %v3486
    %v3488 = vadd.f32 %v3483, 1.0
    %v3489 = vadd.f32 %v3485, 1.0
    %v3490 = vadd.f32 %v3487, 1.0
    %v3491 = vrcp.pop %v3488
    %v3492 = vmul.f32 1.0, %v3491
    %v3493 = vrcp.pop %v3489
    %v3494 = vmul.f32 1.0, %v3493
    %v3495 = vrcp.pop %v3490
    %v3496 = vmul.f32 1.0, %v3495
    %v3497 = vtanh.pop %v3478
    %v3498 = vmul.f32 %v3494, %v3326
    %v3499 = vmul.f32 %v3492, %v3497
    %v3500 = vadd.f32 %v3498, %v3499
    %v3501 = vtanh.pop %v3500
    %v3502 = vmul.f32 %v3496, %v3501
    %v3503 = vadd.f32 %v1977, %v2237
    %v3504 = vadd.f32 %v1979, %v2239
    %v3505 = vadd.f32 %v2090, %v2350
    %v3506 = vadd.f32 %v2092, %v2352
    %3507 = vmatprep.subr.mxu0 %v2451
    %3508 = vmatpush1.msra.mxu0 %v2450
    %3509 = vmatprep.subr.mxu0 %v2447
    %3510 = vmatpush1.msra.mxu0 %v2446
    %3511 = vmatprep.subr.mxu0 %v2443
    %3512 = vmatpush1.msra.mxu0 %v2442
    %3513 = vmatprep.subr.mxu0 %v2439
    %3514 = vmatpush1.msra.mxu0 %v2438
    %3515 = vmatprep.subr.mxu0 %v2435
    %3516 = vmatpush1.msra.mxu0 %v2434
    %3517 = vmatprep.subr.mxu0 %v2431
    %3518 = vmatpush1.msra.mxu0 %v2430
    %3519 = vmatprep.subr.mxu0 %v2427
    %3520 = vmatpush1.msra.mxu0 %v2426
    %3521 = vmatprep.subr.mxu0 %v2423
    %3522 = vmatpush1.msra.mxu0 %v2422
    %3523 = vmatprep.subr.mxu0 %v2419
    %3524 = vmatpush1.msra.mxu0 %v2418
    %3525 = vmatprep.subr.mxu0 %v2415
    %3526 = vmatpush1.msra.mxu0 %v2414
    %3527 = vmatprep.subr.mxu0 %v2411
    %3528 = vmatpush1.msra.mxu0 %v2410
    %3529 = vmatprep.subr.mxu0 %v2407
    %3530 = vmatpush1.msra.mxu0 %v2406
    %3531 = vmatprep.subr.mxu0 %v2403
    %3532 = vmatpush1.msra.mxu0 %v2402
    %3533 = vmatprep.subr.mxu0 %v2399
    %3534 = vmatpush1.msra.mxu0 %v2398
    %3535 = vmatprep.subr.mxu0 %v2395
    %3536 = vmatpush1.msra.mxu0 %v2394
    %3537 = vmatprep.subr.mxu0 %v2391
    %3538 = vmatpush1.msra.mxu0 %v2390
    %3539 = vmatprep.subr.mxu0 0.0
    %3540 = vmatpush2.msra.mxu0 0.0
    %3541 = vmatprep.subr.mxu0 0.0
    %3542 = vmatpush2.msra.mxu0 0.0
    %3543 = vmatprep.subr.mxu0 0.0
    %3544 = vmatpush2.msra.mxu0 0.0
    %3545 = vmatprep.subr.mxu0 0.0
    %3546 = vmatpush2.msra.mxu0 0.0
    %3547 = vmatprep.subr.mxu0 0.0
    %3548 = vmatpush2.msra.mxu0 0.0
    %3549 = vmatprep.subr.mxu0 0.0
    %3550 = vmatpush2.msra.mxu0 0.0
    %3551 = vmatprep.subr.mxu0 0.0
    %3552 = vmatpush2.msra.mxu0 0.0
    %3553 = vmatprep.subr.mxu0 0.0
    %3554 = vmatpush2.msra.mxu0 0.0
    %3555 = vmatprep.subr.mxu0 0.0
    %3556 = vmatpush2.msra.mxu0 0.0
    %3557 = vmatprep.subr.mxu0 0.0
    %3558 = vmatpush2.msra.mxu0 0.0
    %3559 = vmatprep.subr.mxu0 0.0
    %3560 = vmatpush2.msra.mxu0 0.0
    %3561 = vmatprep.subr.mxu0 0.0
    %3562 = vmatpush2.msra.mxu0 0.0
    %3563 = vmatprep.subr.mxu0 0.0
    %3564 = vmatpush2.msra.mxu0 0.0
    %3565 = vmatprep.subr.mxu0 0.0
    %3566 = vmatpush2.msra.mxu0 0.0
    %3567 = vmatprep.subr.mxu0 0.0
    %3568 = vmatpush2.msra.mxu0 0.0
    %3569 = vmatprep.subr.mxu0 0.0
    %3570 = vmatpush2.msra.mxu0 0.0
    %3571 = vmatprep.mubr.f32.mxu0 0.0
    %3572 = vmatmul.mubr.f32.gmra.mxu0 %v3502
    %v3573 = vpop.f32.mrf.mxu0
    %v3574 = vadd.f32 0.0, %v3573
    %v3575 = vpop.f32.mrf.mxu0
    %v3576 = vadd.f32 0.0, %v3575
    %3577 = vdwg.mxu0
    %3578 = vmatprep.subr.mxu0 %v2453
    %3579 = vmatpush1.msra.mxu0 %v2452
    %3580 = vmatprep.subr.mxu0 %v2449
    %3581 = vmatpush1.msra.mxu0 %v2448
    %3582 = vmatprep.subr.mxu0 %v2445
    %3583 = vmatpush1.msra.mxu0 %v2444
    %3584 = vmatprep.subr.mxu0 %v2441
    %3585 = vmatpush1.msra.mxu0 %v2440
    %3586 = vmatprep.subr.mxu0 %v2437
    %3587 = vmatpush1.msra.mxu0 %v2436
    %3588 = vmatprep.subr.mxu0 %v2433
    %3589 = vmatpush1.msra.mxu0 %v2432
    %3590 = vmatprep.subr.mxu0 %v2429
    %3591 = vmatpush1.msra.mxu0 %v2428
    %3592 = vmatprep.subr.mxu0 %v2425
    %3593 = vmatpush1.msra.mxu0 %v2424
    %3594 = vmatprep.subr.mxu0 %v2421
    %3595 = vmatpush1.msra.mxu0 %v2420
    %3596 = vmatprep.subr.mxu0 %v2417
    %3597 = vmatpush1.msra.mxu0 %v2416
    %3598 = vmatprep.subr.mxu0 %v2413
    %3599 = vmatpush1.msra.mxu0 %v2412
    %3600 = vmatprep.subr.mxu0 %v2409
    %3601 = vmatpush1.msra.mxu0 %v2408
    %3602 = vmatprep.subr.mxu0 %v2405
    %3603 = vmatpush1.msra.mxu0 %v2404
    %3604 = vmatprep.subr.mxu0 %v2401
    %3605 = vmatpush1.msra.mxu0 %v2400
    %3606 = vmatprep.subr.mxu0 %v2397
    %3607 = vmatpush1.msra.mxu0 %v2396
    %3608 = vmatprep.subr.mxu0 %v2393
    %3609 = vmatpush1.msra.mxu0 %v2392
    %3610 = vmatprep.subr.mxu0 0.0
    %3611 = vmatpush2.msra.mxu0 0.0
    %3612 = vmatprep.subr.mxu0 0.0
    %3613 = vmatpush2.msra.mxu0 0.0
    %3614 = vmatprep.subr.mxu0 0.0
    %3615 = vmatpush2.msra.mxu0 0.0
    %3616 = vmatprep.subr.mxu0 0.0
    %3617 = vmatpush2.msra.mxu0 0.0
    %3618 = vmatprep.subr.mxu0 0.0
    %3619 = vmatpush2.msra.mxu0 0.0
    %3620 = vmatprep.subr.mxu0 0.0
    %3621 = vmatpush2.msra.mxu0 0.0
    %3622 = vmatprep.subr.mxu0 0.0
    %3623 = vmatpush2.msra.mxu0 0.0
    %3624 = vmatprep.subr.mxu0 0.0
    %3625 = vmatpush2.msra.mxu0 0.0
    %3626 = vmatprep.subr.mxu0 0.0
    %3627 = vmatpush2.msra.mxu0 0.0
    %3628 = vmatprep.subr.mxu0 0.0
    %3629 = vmatpush2.msra.mxu0 0.0
    %3630 = vmatprep.subr.mxu0 0.0
    %3631 = vmatpush2.msra.mxu0 0.0
    %3632 = vmatprep.subr.mxu0 0.0
    %3633 = vmatpush2.msra.mxu0 0.0
    %3634 = vmatprep.subr.mxu0 0.0
    %3635 = vmatpush2.msra.mxu0 0.0
    %3636 = vmatprep.subr.mxu0 0.0
    %3637 = vmatpush2.msra.mxu0 0.0
    %3638 = vmatprep.subr.mxu0 0.0
    %3639 = vmatpush2.msra.mxu0 0.0
    %3640 = vmatprep.subr.mxu0 0.0
    %3641 = vmatpush2.msra.mxu0 0.0
    %3642 = vmatprep.mubr.f32.mxu0 0.0
    %3643 = vmatmul.mubr.f32.gmra.mxu0 %v3502
    %v3644 = vpop.f32.mrf.mxu0
    %v3645 = vadd.f32 0.0, %v3644
    %v3646 = vpop.f32.mrf.mxu0
    %v3647 = vadd.f32 0.0, %v3646
    %3648 = vdwg.mxu0
    %v3649 = vadd.f32 %v3503, %v3574
    %v3650 = vadd.f32 %v3504, %v3576
    %v3651 = vadd.f32 %v3505, %v3645
    %v3652 = vadd.f32 %v3506, %v3647
    %v3653 = vxor.u32 %v3649, 2147483648
    %v3654 = vxor.u32 %v3650, 2147483648
    %v3655 = vxor.u32 %v3651, 2147483648
    %v3656 = vmul.f32 %v3653, 1.442695
    %v3657 = vpow.pop %v3656
    %v3658 = vmul.f32 %v3654, 1.442695
    %v3659 = vpow.pop %v3658
    %v3660 = vmul.f32 %v3655, 1.442695
    %v3661 = vpow.pop %v3660
    %v3662 = vadd.f32 %v3657, 1.0
    %v3663 = vadd.f32 %v3659, 1.0
    %v3664 = vadd.f32 %v3661, 1.0
    %v3665 = vrcp.pop %v3662
    %v3666 = vmul.f32 1.0, %v3665
    %v3667 = vrcp.pop %v3663
    %v3668 = vmul.f32 1.0, %v3667
    %v3669 = vrcp.pop %v3664
    %v3670 = vmul.f32 1.0, %v3669
    %v3671 = vtanh.pop %v3652
    %v3672 = vmul.f32 %v3668, %v3500
    %v3673 = vmul.f32 %v3666, %v3671
    %v3674 = vadd.f32 %v3672, %v3673
    %v3675 = vtanh.pop %v3674
    %v3676 = vmul.f32 %v3670, %v3675
    %v3677 = vmul.f32 %v3674, %v2458
    %v3678 = vadd.f32 %v1983, %v2231
    %v3679 = vadd.f32 %v1985, %v2233
    %v3680 = vadd.f32 %v2096, %v2344
    %v3681 = vadd.f32 %v2098, %v2346
    %3682 = vmatprep.subr.mxu0 %v2451
    %3683 = vmatpush1.msra.mxu0 %v2450
    %3684 = vmatprep.subr.mxu0 %v2447
    %3685 = vmatpush1.msra.mxu0 %v2446
    %3686 = vmatprep.subr.mxu0 %v2443
    %3687 = vmatpush1.msra.mxu0 %v2442
    %3688 = vmatprep.subr.mxu0 %v2439
    %3689 = vmatpush1.msra.mxu0 %v2438
    %3690 = vmatprep.subr.mxu0 %v2435
    %3691 = vmatpush1.msra.mxu0 %v2434
    %3692 = vmatprep.subr.mxu0 %v2431
    %3693 = vmatpush1.msra.mxu0 %v2430
    %3694 = vmatprep.subr.mxu0 %v2427
    %3695 = vmatpush1.msra.mxu0 %v2426
    %3696 = vmatprep.subr.mxu0 %v2423
    %3697 = vmatpush1.msra.mxu0 %v2422
    %3698 = vmatprep.subr.mxu0 %v2419
    %3699 = vmatpush1.msra.mxu0 %v2418
    %3700 = vmatprep.subr.mxu0 %v2415
    %3701 = vmatpush1.msra.mxu0 %v2414
    %3702 = vmatprep.subr.mxu0 %v2411
    %3703 = vmatpush1.msra.mxu0 %v2410
    %3704 = vmatprep.subr.mxu0 %v2407
    %3705 = vmatpush1.msra.mxu0 %v2406
    %3706 = vmatprep.subr.mxu0 %v2403
    %3707 = vmatpush1.msra.mxu0 %v2402
    %3708 = vmatprep.subr.mxu0 %v2399
    %3709 = vmatpush1.msra.mxu0 %v2398
    %3710 = vmatprep.subr.mxu0 %v2395
    %3711 = vmatpush1.msra.mxu0 %v2394
    %3712 = vmatprep.subr.mxu0 %v2391
    %3713 = vmatpush1.msra.mxu0 %v2390
    %3714 = vmatprep.subr.mxu0 0.0
    %3715 = vmatpush2.msra.mxu0 0.0
    %3716 = vmatprep.subr.mxu0 0.0
    %3717 = vmatpush2.msra.mxu0 0.0
    %3718 = vmatprep.subr.mxu0 0.0
    %3719 = vmatpush2.msra.mxu0 0.0
    %3720 = vmatprep.subr.mxu0 0.0
    %3721 = vmatpush2.msra.mxu0 0.0
    %3722 = vmatprep.subr.mxu0 0.0
    %3723 = vmatpush2.msra.mxu0 0.0
    %3724 = vmatprep.subr.mxu0 0.0
    %3725 = vmatpush2.msra.mxu0 0.0
    %3726 = vmatprep.subr.mxu0 0.0
    %3727 = vmatpush2.msra.mxu0 0.0
    %3728 = vmatprep.subr.mxu0 0.0
    %3729 = vmatpush2.msra.mxu0 0.0
    %3730 = vmatprep.subr.mxu0 0.0
    %3731 = vmatpush2.msra.mxu0 0.0
    %3732 = vmatprep.subr.mxu0 0.0
    %3733 = vmatpush2.msra.mxu0 0.0
    %3734 = vmatprep.subr.mxu0 0.0
    %3735 = vmatpush2.msra.mxu0 0.0
    %3736 = vmatprep.subr.mxu0 0.0
    %3737 = vmatpush2.msra.mxu0 0.0
    %3738 = vmatprep.subr.mxu0 0.0
    %3739 = vmatpush2.msra.mxu0 0.0
    %3740 = vmatprep.subr.mxu0 0.0
    %3741 = vmatpush2.msra.mxu0 0.0
    %3742 = vmatprep.subr.mxu0 0.0
    %3743 = vmatpush2.msra.mxu0 0.0
    %3744 = vmatprep.subr.mxu0 0.0
    %3745 = vmatpush2.msra.mxu0 0.0
    %3746 = vmatprep.mubr.f32.mxu0 0.0
    %3747 = vmatmul.mubr.f32.gmra.mxu0 %v3676
    %v3748 = vpop.f32.mrf.mxu0
    %v3749 = vadd.f32 0.0, %v3748
    %v3750 = vpop.f32.mrf.mxu0
    %v3751 = vadd.f32 0.0, %v3750
    %3752 = vdwg.mxu0
    %3753 = vmatprep.subr.mxu0 %v2453
    %3754 = vmatpush1.msra.mxu0 %v2452
    %3755 = vmatprep.subr.mxu0 %v2449
    %3756 = vmatpush1.msra.mxu0 %v2448
    %3757 = vmatprep.subr.mxu0 %v2445
    %3758 = vmatpush1.msra.mxu0 %v2444
    %3759 = vmatprep.subr.mxu0 %v2441
    %3760 = vmatpush1.msra.mxu0 %v2440
    %3761 = vmatprep.subr.mxu0 %v2437
    %3762 = vmatpush1.msra.mxu0 %v2436
    %3763 = vmatprep.subr.mxu0 %v2433
    %3764 = vmatpush1.msra.mxu0 %v2432
    %3765 = vmatprep.subr.mxu0 %v2429
    %3766 = vmatpush1.msra.mxu0 %v2428
    %3767 = vmatprep.subr.mxu0 %v2425
    %3768 = vmatpush1.msra.mxu0 %v2424
    %3769 = vmatprep.subr.mxu0 %v2421
    %3770 = vmatpush1.msra.mxu0 %v2420
    %3771 = vmatprep.subr.mxu0 %v2417
    %3772 = vmatpush1.msra.mxu0 %v2416
    %3773 = vmatprep.subr.mxu0 %v2413
    %3774 = vmatpush1.msra.mxu0 %v2412
    %3775 = vmatprep.subr.mxu0 %v2409
    %3776 = vmatpush1.msra.mxu0 %v2408
    %3777 = vmatprep.subr.mxu0 %v2405
    %3778 = vmatpush1.msra.mxu0 %v2404
    %3779 = vmatprep.subr.mxu0 %v2401
    %3780 = vmatpush1.msra.mxu0 %v2400
    %3781 = vmatprep.subr.mxu0 %v2397
    %3782 = vmatpush1.msra.mxu0 %v2396
    %3783 = vmatprep.subr.mxu0 %v2393
    %3784 = vmatpush1.msra.mxu0 %v2392
    %3785 = vmatprep.subr.mxu0 0.0
    %3786 = vmatpush2.msra.mxu0 0.0
    %3787 = vmatprep.subr.mxu0 0.0
    %3788 = vmatpush2.msra.mxu0 0.0
    %3789 = vmatprep.subr.mxu0 0.0
    %3790 = vmatpush2.msra.mxu0 0.0
    %3791 = vmatprep.subr.mxu0 0.0
    %3792 = vmatpush2.msra.mxu0 0.0
    %3793 = vmatprep.subr.mxu0 0.0
    %3794 = vmatpush2.msra.mxu0 0.0
    %3795 = vmatprep.subr.mxu0 0.0
    %3796 = vmatpush2.msra.mxu0 0.0
    %3797 = vmatprep.subr.mxu0 0.0
    %3798 = vmatpush2.msra.mxu0 0.0
    %3799 = vmatprep.subr.mxu0 0.0
    %3800 = vmatpush2.msra.mxu0 0.0
    %3801 = vmatprep.subr.mxu0 0.0
    %3802 = vmatpush2.msra.mxu0 0.0
    %3803 = vmatprep.subr.mxu0 0.0
    %3804 = vmatpush2.msra.mxu0 0.0
    %3805 = vmatprep.subr.mxu0 0.0
    %3806 = vmatpush2.msra.mxu0 0.0
    %3807 = vmatprep.subr.mxu0 0.0
    %3808 = vmatpush2.msra.mxu0 0.0
    %3809 = vmatprep.subr.mxu0 0.0
    %3810 = vmatpush2.msra.mxu0 0.0
    %3811 = vmatprep.subr.mxu0 0.0
    %3812 = vmatpush2.msra.mxu0 0.0
    %3813 = vmatprep.subr.mxu0 0.0
    %3814 = vmatpush2.msra.mxu0 0.0
    %3815 = vmatprep.subr.mxu0 0.0
    %3816 = vmatpush2.msra.mxu0 0.0
    %3817 = vmatprep.mubr.f32.mxu0 0.0
    %3818 = vmatmul.mubr.f32.gmra.mxu0 %v3676
    %v3819 = vpop.f32.mrf.mxu0
    %v3820 = vadd.f32 0.0, %v3819
    %v3821 = vpop.f32.mrf.mxu0
    %v3822 = vadd.f32 0.0, %v3821
    %3823 = vdwg.mxu0
    %v3824 = vadd.f32 %v3678, %v3749
    %v3825 = vadd.f32 %v3679, %v3751
    %v3826 = vadd.f32 %v3680, %v3820
    %v3827 = vadd.f32 %v3681, %v3822
    %v3828 = vxor.u32 %v3824, 2147483648
    %v3829 = vxor.u32 %v3825, 2147483648
    %v3830 = vxor.u32 %v3826, 2147483648
    %v3831 = vmul.f32 %v3828, 1.442695
    %v3832 = vpow.pop %v3831
    %v3833 = vmul.f32 %v3829, 1.442695
    %v3834 = vpow.pop %v3833
    %v3835 = vmul.f32 %v3830, 1.442695
    %v3836 = vpow.pop %v3835
    %v3837 = vadd.f32 %v3832, 1.0
    %v3838 = vadd.f32 %v3834, 1.0
    %v3839 = vadd.f32 %v3836, 1.0
    %v3840 = vrcp.pop %v3837
    %v3841 = vmul.f32 1.0, %v3840
    %v3842 = vrcp.pop %v3838
    %v3843 = vmul.f32 1.0, %v3842
    %v3844 = vrcp.pop %v3839
    %v3845 = vmul.f32 1.0, %v3844
    %v3846 = vtanh.pop %v3827
    %v3847 = vmul.f32 %v3843, %v3677
    %v3848 = vmul.f32 %v3841, %v3846
    %v3849 = vadd.f32 %v3847, %v3848
    %v3850 = vtanh.pop %v3849
    %v3851 = vmul.f32 %v3845, %v3850
    %v3852 = vld [vmem:[#allocation10] sm:$0xff]
    %v3853 = vld [vmem:[#allocation10 + $0x8] sm:$0xff]
    %v3854 = vld [vmem:[#allocation10 + $0x10] sm:$0xff]
    %v3855 = vld [vmem:[#allocation10 + $0x18] sm:$0xff]
    %v3856 = vld [vmem:[#allocation10 + $0x20] sm:$0xff]
    %v3857 = vld [vmem:[#allocation10 + $0x28] sm:$0xff]
    %v3858 = vld [vmem:[#allocation10 + $0x30] sm:$0xff]
    %v3859 = vld [vmem:[#allocation10 + $0x38] sm:$0xff]
    %v3860 = vld [vmem:[#allocation10 + $0x40] sm:$0xff]
    %v3861 = vld [vmem:[#allocation10 + $0x48] sm:$0xff]
    %v3862 = vld [vmem:[#allocation10 + $0x50] sm:$0xff]
    %v3863 = vld [vmem:[#allocation10 + $0x58] sm:$0xff]
    %v3864 = vld [vmem:[#allocation10 + $0x60] sm:$0xff]
    %v3865 = vld [vmem:[#allocation10 + $0x68] sm:$0xff]
    %v3866 = vld [vmem:[#allocation10 + $0x70] sm:$0xff]
    %v3867 = vld [vmem:[#allocation10 + $0x78] sm:$0xff]
    %v3868 = vld [vmem:[%s10] sm:$0x1]
    %v3870 = vlaneseq
    %v3871 = vshrl.u32 %v3870, 7
    %v3872 = vsub.s32 0, %v3871
    %v3873 = vrot.slane %v3868, %v3872
    %3875 = vmatprep.subr.mxu0 0.0
    %3876 = vmatpush1.msra.mxu0 %v3867
    %3877 = vmatprep.subr.mxu0 0.0
    %3878 = vmatpush1.msra.mxu0 %v3866
    %3879 = vmatprep.subr.mxu0 0.0
    %3880 = vmatpush1.msra.mxu0 %v3865
    %3881 = vmatprep.subr.mxu0 0.0
    %3882 = vmatpush1.msra.mxu0 %v3864
    %3883 = vmatprep.subr.mxu0 0.0
    %3884 = vmatpush1.msra.mxu0 %v3863
    %3885 = vmatprep.subr.mxu0 0.0
    %3886 = vmatpush1.msra.mxu0 %v3862
    %3887 = vmatprep.subr.mxu0 0.0
    %3888 = vmatpush1.msra.mxu0 %v3861
    %3889 = vmatprep.subr.mxu0 0.0
    %3890 = vmatpush1.msra.mxu0 %v3860
    %3891 = vmatprep.subr.mxu0 0.0
    %3892 = vmatpush1.msra.mxu0 %v3859
    %3893 = vmatprep.subr.mxu0 0.0
    %3894 = vmatpush1.msra.mxu0 %v3858
    %3895 = vmatprep.subr.mxu0 0.0
    %3896 = vmatpush1.msra.mxu0 %v3857
    %3897 = vmatprep.subr.mxu0 0.0
    %3898 = vmatpush1.msra.mxu0 %v3856
    %3899 = vmatprep.subr.mxu0 0.0
    %3900 = vmatpush1.msra.mxu0 %v3855
    %3901 = vmatprep.subr.mxu0 0.0
    %3902 = vmatpush1.msra.mxu0 %v3854
    %3903 = vmatprep.subr.mxu0 0.0
    %3904 = vmatpush1.msra.mxu0 %v3853
    %3905 = vmatprep.subr.mxu0 0.0
    %3906 = vmatpush1.msra.mxu0 %v3852
    %3907 = vmatprep.subr.mxu0 0.0
    %3908 = vmatpush2.msra.mxu0 0.0
    %3909 = vmatprep.subr.mxu0 0.0
    %3910 = vmatpush2.msra.mxu0 0.0
    %3911 = vmatprep.subr.mxu0 0.0
    %3912 = vmatpush2.msra.mxu0 0.0
    %3913 = vmatprep.subr.mxu0 0.0
    %3914 = vmatpush2.msra.mxu0 0.0
    %3915 = vmatprep.subr.mxu0 0.0
    %3916 = vmatpush2.msra.mxu0 0.0
    %3917 = vmatprep.subr.mxu0 0.0
    %3918 = vmatpush2.msra.mxu0 0.0
    %3919 = vmatprep.subr.mxu0 0.0
    %3920 = vmatpush2.msra.mxu0 0.0
    %3921 = vmatprep.subr.mxu0 0.0
    %3922 = vmatpush2.msra.mxu0 0.0
    %3923 = vmatprep.subr.mxu0 0.0
    %3924 = vmatpush2.msra.mxu0 0.0
    %3925 = vmatprep.subr.mxu0 0.0
    %3926 = vmatpush2.msra.mxu0 0.0
    %3927 = vmatprep.subr.mxu0 0.0
    %3928 = vmatpush2.msra.mxu0 0.0
    %3929 = vmatprep.subr.mxu0 0.0
    %3930 = vmatpush2.msra.mxu0 0.0
    %3931 = vmatprep.subr.mxu0 0.0
    %3932 = vmatpush2.msra.mxu0 0.0
    %3933 = vmatprep.subr.mxu0 0.0
    %3934 = vmatpush2.msra.mxu0 0.0
    %3935 = vmatprep.subr.mxu0 0.0
    %3936 = vmatpush2.msra.mxu0 0.0
    %3937 = vmatprep.subr.mxu0 0.0
    %3938 = vmatpush2.msra.mxu0 0.0
    %3939 = vmatprep.mubr.f32.mxu0 0.0
    %3940 = vmatmul.mubr.f32.gmra.mxu0 %v3851
    %v3941 = vpop.f32.mrf.mxu0
    %v3942 = vadd.f32 %v3873, %v3941
    %v3943 = vpop.f32.mrf.mxu0
    %3944 = vdwg.mxu0
    %3945 = vst [vmem:[%s11] sm:$0xff] %v3942
    // Predicated region
    $region66: #{bilstm_forward.1} parent=1 // pred_check
      _
    $region67: #{bilstm_forward.1} parent=1 // pred_check_branch
      %3947 = sbr.rel (0) target = $region69
    $region68: #{bilstm_forward.1} parent=1 // pred_region
      _
    $region69: #{bilstm_forward.1} parent=1 // pred_fallthru
      _
    // Predicated region
    $region70: #{bilstm_forward.1} parent=1 // pred_check
      _
    $region71: #{bilstm_forward.1} parent=1 // pred_check_branch
      %3949 = sbr.rel (0) target = $region73
    $region72: #{bilstm_forward.1} parent=1 // pred_region
      _
    $region73: #{bilstm_forward.1} parent=1 // pred_fallthru
      _
    %3950 = vsyncpa [#allocation4], 1
    %3951 = vsyncpa [#allocation6], 1
    %3952 = vsyncpa [#allocation9], 1

</llo_original>
